<compile_context>
chip_gen: v7x
topology: tpu7x:2x2x1
jax: 0.10.0
libtpu: 0.0.40
codegen_flags: <defaults>
</compile_context>

<pallas_src>
from functools import partial

import jax
import jax.numpy as jnp
import numpy as np
from jax.experimental import pallas as pl
from jax.experimental.pallas import tpu as pltpu

K = 5          # conv kernel size
PAD = 2        # 'same' padding
C_HID = 8      # hidden channels


def _warm_up_kernel(rows, L_true,
                    x_ref, w1_ref, b1_ref, a1_ref,
                    w2_ref, b2_ref, a2_ref,
                    w3_ref, b3_ref,
                    out_ref):
    tile_n, Lp = x_ref.shape
    n_chunks = tile_n // rows

    # --- hoisted per-grid-step setup (outside the chunk loop) ---------------
    lane = jax.lax.broadcasted_iota(jnp.int32, (rows, Lp), 1)
    # Boundary masks for the four non-zero shifts, computed once (no per-call
    # re-derivation).  They use the TRUE length so lanes >= L_true act as the
    # torch zero padding for every layer.
    masks = {
        1: lane < (L_true - 1),
        2: lane < (L_true - 2),
        -1: lane >= 1,
        -2: lane >= 2,
    }

    def shift_l(v, s):
        # y[:, l] = v[:, l + s] for 0 <= l + s < L_true, else 0
        if s == 0:
            return v
        rolled = pltpu.roll(v, (-s) % Lp, axis=1)     # XLU lane rotate
        return jnp.where(masks[s], rolled, 0.0)

    # Loop-invariant SMEM scalar reads hoisted out of the chunk loop
    # (biases, PReLU alphas, conv1 and conv3 weights).  conv2's 320 weights are
    # read inside the loop; at rows=16 the VALU slot binds well before the
    # scalar slot does.
    w1 = [w1_ref[i] for i in range(C_HID * K)]
    b1 = [b1_ref[i] for i in range(C_HID)]
    a1 = a1_ref[0]
    b2 = [b2_ref[i] for i in range(C_HID)]
    a2 = a2_ref[0]
    w3 = [w3_ref[i] for i in range(C_HID * K)]
    b3 = b3_ref[0]

    @pl.loop(0, n_chunks)
    def _chunk(c):
        r0 = pl.multiple_of(c * rows, rows)
        x = x_ref[pl.ds(r0, rows), :]                 # (rows, Lp), L on lanes

        # ---- Conv1d(1 -> 8) + PReLU : broadcast-FMA over 5 shifted taps ----
        xs = [shift_l(x, k - PAD) for k in range(K)]  # taps reused by all 8 ch
        h1 = []
        for co in range(C_HID):
            acc = xs[0] * w1[co * K]
            for k in range(1, K):
                acc = acc + xs[k] * w1[co * K + k]
            acc = acc + b1[co]
            h1.append(jnp.where(acc >= 0, acc, a1 * acc))

        # ---- Conv1d(8 -> 8) + PReLU, with Conv1d(8 -> 1) fused in ----------
        # As each h2[co] is produced it is immediately folded into 5 running
        # conv3 tap accumulators, so the h2 list never materializes.
        taps = [None] * K
        for co in range(C_HID):
            acc = None
            for k in range(K):
                t = h1[0] * w2_ref[(co * C_HID) * K + k]
                for ci in range(1, C_HID):
                    t = t + h1[ci] * w2_ref[(co * C_HID + ci) * K + k]
                ts = shift_l(t, k - PAD)
                acc = ts if acc is None else acc + ts
            acc = acc + b2[co]
            h2_co = jnp.where(acc >= 0, acc, a2 * acc)
            for k in range(K):
                contrib = h2_co * w3[co * K + k]
                taps[k] = contrib if taps[k] is None else taps[k] + contrib

        # ---- finalize Conv1d(8 -> 1): shift the 5 tap sums once ------------
        out = shift_l(taps[0], 0 - PAD)
        for k in range(1, K):
            out = out + shift_l(taps[k], k - PAD)
        out_ref[pl.ds(r0, rows), :] = out + b3        # full-width lane store


def warm_up_forward(x_ncl, params, *, tile_n=256, rows=16):
    """x_ncl: (N, 1, L) float32; params in PyTorch Conv1d/PReLU layouts."""
    w1, b1, a1, w2, b2, a2, w3, b3 = params
    N, c_in, L = x_ncl.shape
    assert c_in == 1

    # Lane-pad L up to a multiple of 128 so loads/stores stay unmasked.
    Lp = ((L + 127) // 128) * 128

    # rows: multiple of 8 sublanes; tile_n: multiple of rows.
    rows = max(8, (rows // 8) * 8)
    rows = min(rows, ((N + 7) // 8) * 8)
    n_rows_pad = ((N + rows - 1) // rows) * rows

    tile_n = max(rows, (tile_n // rows) * rows)
    tile_n = min(tile_n, n_rows_pad)
    # Keep >= 2 grid blocks whenever there is enough work (v7x has 2 TCs).
    if tile_n >= N and N > rows:
        tile_n = (((N + 1) // 2 + rows - 1) // rows) * rows
    n_blocks = pl.cdiv(N, tile_n)

    # Free contiguous reshape; pad lanes with zeros only if L % 128 != 0.
    x2 = x_ncl.reshape(N, L).astype(jnp.float32)
    if Lp != L:
        x2 = jnp.pad(x2, ((0, 0), (0, Lp - L)))

    # Flatten all parameters to 1-D f32 arrays living in SMEM (scalar reads).
    w1f = jnp.asarray(w1, jnp.float32).reshape(-1)    # idx = co*K + k
    w2f = jnp.asarray(w2, jnp.float32).reshape(-1)    # idx = (co*8 + ci)*K + k
    w3f = jnp.asarray(w3, jnp.float32).reshape(-1)    # idx = ci*K + k
    b1f = jnp.asarray(b1, jnp.float32).reshape(-1)
    b2f = jnp.asarray(b2, jnp.float32).reshape(-1)
    b3f = jnp.asarray(b3, jnp.float32).reshape(-1)
    a1f = jnp.asarray(a1, jnp.float32).reshape(-1)
    a2f = jnp.asarray(a2, jnp.float32).reshape(-1)

    smem = pl.BlockSpec(memory_space=pltpu.MemorySpace.SMEM)

    out2 = pl.pallas_call(
        partial(_warm_up_kernel, rows, L),
        out_shape=jax.ShapeDtypeStruct((N, Lp), jnp.float32),
        grid=(n_blocks,),
        in_specs=[
            pl.BlockSpec((tile_n, Lp), lambda n: (n, 0)),  # x, lane-dense
            smem, smem, smem,                              # w1, b1, a1
            smem, smem, smem,                              # w2, b2, a2
            smem, smem,                                    # w3, b3
        ],
        out_specs=pl.BlockSpec((tile_n, Lp), lambda n: (n, 0)),
        compiler_params=pltpu.CompilerParams(
            dimension_semantics=("parallel",)),
    )(x2, w1f, b1f, a1f, w2f, b2f, a2f, w3f, b3f)

    out2 = out2[:, :L] if Lp != L else out2
    return out2.reshape(N, 1, L)


def _reference(x_ncl, params):
    """Plain-JAX reference matching torch Conv1d/PReLU semantics."""
    w1, b1, a1, w2, b2, a2, w3, b3 = params

    def conv(x, w, b):
        y = jax.lax.conv_general_dilated(
            x, w, window_strides=(1,), padding=[(PAD, PAD)],
            dimension_numbers=("NCH", "OIH", "NCH"))
        return y + b[None, :, None]

    def prelu(x, a):
        return jnp.where(x >= 0, x, a * x)

    h = prelu(conv(x_ncl, w1, b1), a1)
    h = prelu(conv(h, w2, b2), a2)
    return conv(h, w3, b3)


if __name__ == "__main__":
    key = jax.random.PRNGKey(0)
    kx, k1, k2, k3, kb1, kb2, kb3 = jax.random.split(key, 7)

    # Shapes matching the module's own warm_up loop: randn(20, 1, 100).
    N, L = 20, 100
    x = jax.random.normal(kx, (N, 1, L), dtype=jnp.float32)

    # Deterministic synthetic parameters (PyTorch Conv1d / PReLU layouts).
    w1 = jax.random.normal(k1, (C_HID, 1, K), jnp.float32) * 0.3
    b1 = jax.random.normal(kb1, (C_HID,), jnp.float32) * 0.1
    w2 = jax.random.normal(k2, (C_HID, C_HID, K), jnp.float32) * 0.1
    b2 = jax.random.normal(kb2, (C_HID,), jnp.float32) * 0.1
    w3 = jax.random.normal(k3, (1, C_HID, K), jnp.float32) * 0.1
    b3 = jax.random.normal(kb3, (1,), jnp.float32) * 0.1
    a1 = jnp.full((1,), 0.25, jnp.float32)   # nn.PReLU() default init
    a2 = jnp.full((1,), 0.25, jnp.float32)
    params = (w1, b1, a1, w2, b2, a2, w3, b3)

    out = warm_up_forward(x, params)        # rows=16, 2-block grid for N=20
    jax.block_until_ready(out)

    ref = _reference(x, params)
    assert out.shape == (N, 1, L)
    np.testing.assert_allclose(np.asarray(out), np.asarray(ref),
                               rtol=1e-5, atol=1e-5)
    print("KERNEL_OK")
</pallas_src>

<mosaic_0001>
module attributes {stable_mosaic.version = 11 : i64} {
  func.func @_warm_up_kernel(%arg0: i32, %arg1: memref<16x128xf32, #tpu.memory_space<vmem>>, %arg2: memref<40xf32, #tpu.memory_space<smem>>, %arg3: memref<8xf32, #tpu.memory_space<smem>>, %arg4: memref<1xf32, #tpu.memory_space<smem>>, %arg5: memref<320xf32, #tpu.memory_space<smem>>, %arg6: memref<8xf32, #tpu.memory_space<smem>>, %arg7: memref<1xf32, #tpu.memory_space<smem>>, %arg8: memref<40xf32, #tpu.memory_space<smem>>, %arg9: memref<1xf32, #tpu.memory_space<smem>>, %arg10: memref<16x128xf32, #tpu.memory_space<vmem>>) attributes {dimension_semantics = [#tpu.dimension_semantics<parallel>], iteration_bounds = array<i64: 2>, scalar_prefetch = 0 : i64, scratch_operands = 0 : i64, tpu.core_type = #tpu.core_type<tc>, window_params = [{transform_indices = @transform_0, window_bounds = array<i64: 16, 128>}, {transform_indices = @transform_1, window_bounds = array<i64: 40>}, {transform_indices = @transform_2, window_bounds = array<i64: 8>}, {transform_indices = @transform_3, window_bounds = array<i64: 1>}, {transform_indices = @transform_4, window_bounds = array<i64: 320>}, {transform_indices = @transform_5, window_bounds = array<i64: 8>}, {transform_indices = @transform_6, window_bounds = array<i64: 1>}, {transform_indices = @transform_7, window_bounds = array<i64: 40>}, {transform_indices = @transform_8, window_bounds = array<i64: 1>}, {transform_indices = @transform_9, window_bounds = array<i64: 16, 128>}]} {
    %0 = tpu.iota {dimensions = array<i32: 1>} : vector<16x128xi32>
    %c99_i32 = arith.constant 99 : i32
    %1 = vector.broadcast %c99_i32 : i32 to vector<16x128xi32>
    %2 = arith.cmpi slt, %0, %1 : vector<16x128xi32>
    %c98_i32 = arith.constant 98 : i32
    %3 = vector.broadcast %c98_i32 : i32 to vector<16x128xi32>
    %4 = arith.cmpi slt, %0, %3 : vector<16x128xi32>
    %c1_i32 = arith.constant 1 : i32
    %5 = vector.broadcast %c1_i32 : i32 to vector<16x128xi32>
    %6 = arith.cmpi sge, %0, %5 : vector<16x128xi32>
    %c2_i32 = arith.constant 2 : i32
    %7 = vector.broadcast %c2_i32 : i32 to vector<16x128xi32>
    %8 = arith.cmpi sge, %0, %7 : vector<16x128xi32>
    %c0 = arith.constant 0 : index
    %9 = memref.load %arg2[%c0] : memref<40xf32, #tpu.memory_space<smem>>
    %c1 = arith.constant 1 : index
    %10 = memref.load %arg2[%c1] : memref<40xf32, #tpu.memory_space<smem>>
    %c2 = arith.constant 2 : index
    %11 = memref.load %arg2[%c2] : memref<40xf32, #tpu.memory_space<smem>>
    %c3 = arith.constant 3 : index
    %12 = memref.load %arg2[%c3] : memref<40xf32, #tpu.memory_space<smem>>
    %c4 = arith.constant 4 : index
    %13 = memref.load %arg2[%c4] : memref<40xf32, #tpu.memory_space<smem>>
    %c5 = arith.constant 5 : index
    %14 = memref.load %arg2[%c5] : memref<40xf32, #tpu.memory_space<smem>>
    %c6 = arith.constant 6 : index
    %15 = memref.load %arg2[%c6] : memref<40xf32, #tpu.memory_space<smem>>
    %c7 = arith.constant 7 : index
    %16 = memref.load %arg2[%c7] : memref<40xf32, #tpu.memory_space<smem>>
    %c8 = arith.constant 8 : index
    %17 = memref.load %arg2[%c8] : memref<40xf32, #tpu.memory_space<smem>>
    %c9 = arith.constant 9 : index
    %18 = memref.load %arg2[%c9] : memref<40xf32, #tpu.memory_space<smem>>
    %c10 = arith.constant 10 : index
    %19 = memref.load %arg2[%c10] : memref<40xf32, #tpu.memory_space<smem>>
    %c11 = arith.constant 11 : index
    %20 = memref.load %arg2[%c11] : memref<40xf32, #tpu.memory_space<smem>>
    %c12 = arith.constant 12 : index
    %21 = memref.load %arg2[%c12] : memref<40xf32, #tpu.memory_space<smem>>
    %c13 = arith.constant 13 : index
    %22 = memref.load %arg2[%c13] : memref<40xf32, #tpu.memory_space<smem>>
    %c14 = arith.constant 14 : index
    %23 = memref.load %arg2[%c14] : memref<40xf32, #tpu.memory_space<smem>>
    %c15 = arith.constant 15 : index
    %24 = memref.load %arg2[%c15] : memref<40xf32, #tpu.memory_space<smem>>
    %c16 = arith.constant 16 : index
    %25 = memref.load %arg2[%c16] : memref<40xf32, #tpu.memory_space<smem>>
    %c17 = arith.constant 17 : index
    %26 = memref.load %arg2[%c17] : memref<40xf32, #tpu.memory_space<smem>>
    %c18 = arith.constant 18 : index
    %27 = memref.load %arg2[%c18] : memref<40xf32, #tpu.memory_space<smem>>
    %c19 = arith.constant 19 : index
    %28 = memref.load %arg2[%c19] : memref<40xf32, #tpu.memory_space<smem>>
    %c20 = arith.constant 20 : index
    %29 = memref.load %arg2[%c20] : memref<40xf32, #tpu.memory_space<smem>>
    %c21 = arith.constant 21 : index
    %30 = memref.load %arg2[%c21] : memref<40xf32, #tpu.memory_space<smem>>
    %c22 = arith.constant 22 : index
    %31 = memref.load %arg2[%c22] : memref<40xf32, #tpu.memory_space<smem>>
    %c23 = arith.constant 23 : index
    %32 = memref.load %arg2[%c23] : memref<40xf32, #tpu.memory_space<smem>>
    %c24 = arith.constant 24 : index
    %33 = memref.load %arg2[%c24] : memref<40xf32, #tpu.memory_space<smem>>
    %c25 = arith.constant 25 : index
    %34 = memref.load %arg2[%c25] : memref<40xf32, #tpu.memory_space<smem>>
    %c26 = arith.constant 26 : index
    %35 = memref.load %arg2[%c26] : memref<40xf32, #tpu.memory_space<smem>>
    %c27 = arith.constant 27 : index
    %36 = memref.load %arg2[%c27] : memref<40xf32, #tpu.memory_space<smem>>
    %c28 = arith.constant 28 : index
    %37 = memref.load %arg2[%c28] : memref<40xf32, #tpu.memory_space<smem>>
    %c29 = arith.constant 29 : index
    %38 = memref.load %arg2[%c29] : memref<40xf32, #tpu.memory_space<smem>>
    %c30 = arith.constant 30 : index
    %39 = memref.load %arg2[%c30] : memref<40xf32, #tpu.memory_space<smem>>
    %c31 = arith.constant 31 : index
    %40 = memref.load %arg2[%c31] : memref<40xf32, #tpu.memory_space<smem>>
    %c32 = arith.constant 32 : index
    %41 = memref.load %arg2[%c32] : memref<40xf32, #tpu.memory_space<smem>>
    %c33 = arith.constant 33 : index
    %42 = memref.load %arg2[%c33] : memref<40xf32, #tpu.memory_space<smem>>
    %c34 = arith.constant 34 : index
    %43 = memref.load %arg2[%c34] : memref<40xf32, #tpu.memory_space<smem>>
    %c35 = arith.constant 35 : index
    %44 = memref.load %arg2[%c35] : memref<40xf32, #tpu.memory_space<smem>>
    %c36 = arith.constant 36 : index
    %45 = memref.load %arg2[%c36] : memref<40xf32, #tpu.memory_space<smem>>
    %c37 = arith.constant 37 : index
    %46 = memref.load %arg2[%c37] : memref<40xf32, #tpu.memory_space<smem>>
    %c38 = arith.constant 38 : index
    %47 = memref.load %arg2[%c38] : memref<40xf32, #tpu.memory_space<smem>>
    %c39 = arith.constant 39 : index
    %48 = memref.load %arg2[%c39] : memref<40xf32, #tpu.memory_space<smem>>
    %c0_0 = arith.constant 0 : index
    %49 = memref.load %arg3[%c0_0] : memref<8xf32, #tpu.memory_space<smem>>
    %c1_1 = arith.constant 1 : index
    %50 = memref.load %arg3[%c1_1] : memref<8xf32, #tpu.memory_space<smem>>
    %c2_2 = arith.constant 2 : index
    %51 = memref.load %arg3[%c2_2] : memref<8xf32, #tpu.memory_space<smem>>
    %c3_3 = arith.constant 3 : index
    %52 = memref.load %arg3[%c3_3] : memref<8xf32, #tpu.memory_space<smem>>
    %c4_4 = arith.constant 4 : index
    %53 = memref.load %arg3[%c4_4] : memref<8xf32, #tpu.memory_space<smem>>
    %c5_5 = arith.constant 5 : index
    %54 = memref.load %arg3[%c5_5] : memref<8xf32, #tpu.memory_space<smem>>
    %c6_6 = arith.constant 6 : index
    %55 = memref.load %arg3[%c6_6] : memref<8xf32, #tpu.memory_space<smem>>
    %c7_7 = arith.constant 7 : index
    %56 = memref.load %arg3[%c7_7] : memref<8xf32, #tpu.memory_space<smem>>
    %c0_8 = arith.constant 0 : index
    %57 = memref.load %arg4[%c0_8] : memref<1xf32, #tpu.memory_space<smem>>
    %c0_9 = arith.constant 0 : index
    %58 = memref.load %arg6[%c0_9] : memref<8xf32, #tpu.memory_space<smem>>
    %c1_10 = arith.constant 1 : index
    %59 = memref.load %arg6[%c1_10] : memref<8xf32, #tpu.memory_space<smem>>
    %c2_11 = arith.constant 2 : index
    %60 = memref.load %arg6[%c2_11] : memref<8xf32, #tpu.memory_space<smem>>
    %c3_12 = arith.constant 3 : index
    %61 = memref.load %arg6[%c3_12] : memref<8xf32, #tpu.memory_space<smem>>
    %c4_13 = arith.constant 4 : index
    %62 = memref.load %arg6[%c4_13] : memref<8xf32, #tpu.memory_space<smem>>
    %c5_14 = arith.constant 5 : index
    %63 = memref.load %arg6[%c5_14] : memref<8xf32, #tpu.memory_space<smem>>
    %c6_15 = arith.constant 6 : index
    %64 = memref.load %arg6[%c6_15] : memref<8xf32, #tpu.memory_space<smem>>
    %c7_16 = arith.constant 7 : index
    %65 = memref.load %arg6[%c7_16] : memref<8xf32, #tpu.memory_space<smem>>
    %c0_17 = arith.constant 0 : index
    %66 = memref.load %arg7[%c0_17] : memref<1xf32, #tpu.memory_space<smem>>
    %c0_18 = arith.constant 0 : index
    %67 = memref.load %arg8[%c0_18] : memref<40xf32, #tpu.memory_space<smem>>
    %c1_19 = arith.constant 1 : index
    %68 = memref.load %arg8[%c1_19] : memref<40xf32, #tpu.memory_space<smem>>
    %c2_20 = arith.constant 2 : index
    %69 = memref.load %arg8[%c2_20] : memref<40xf32, #tpu.memory_space<smem>>
    %c3_21 = arith.constant 3 : index
    %70 = memref.load %arg8[%c3_21] : memref<40xf32, #tpu.memory_space<smem>>
    %c4_22 = arith.constant 4 : index
    %71 = memref.load %arg8[%c4_22] : memref<40xf32, #tpu.memory_space<smem>>
    %c5_23 = arith.constant 5 : index
    %72 = memref.load %arg8[%c5_23] : memref<40xf32, #tpu.memory_space<smem>>
    %c6_24 = arith.constant 6 : index
    %73 = memref.load %arg8[%c6_24] : memref<40xf32, #tpu.memory_space<smem>>
    %c7_25 = arith.constant 7 : index
    %74 = memref.load %arg8[%c7_25] : memref<40xf32, #tpu.memory_space<smem>>
    %c8_26 = arith.constant 8 : index
    %75 = memref.load %arg8[%c8_26] : memref<40xf32, #tpu.memory_space<smem>>
    %c9_27 = arith.constant 9 : index
    %76 = memref.load %arg8[%c9_27] : memref<40xf32, #tpu.memory_space<smem>>
    %c10_28 = arith.constant 10 : index
    %77 = memref.load %arg8[%c10_28] : memref<40xf32, #tpu.memory_space<smem>>
    %c11_29 = arith.constant 11 : index
    %78 = memref.load %arg8[%c11_29] : memref<40xf32, #tpu.memory_space<smem>>
    %c12_30 = arith.constant 12 : index
    %79 = memref.load %arg8[%c12_30] : memref<40xf32, #tpu.memory_space<smem>>
    %c13_31 = arith.constant 13 : index
    %80 = memref.load %arg8[%c13_31] : memref<40xf32, #tpu.memory_space<smem>>
    %c14_32 = arith.constant 14 : index
    %81 = memref.load %arg8[%c14_32] : memref<40xf32, #tpu.memory_space<smem>>
    %c15_33 = arith.constant 15 : index
    %82 = memref.load %arg8[%c15_33] : memref<40xf32, #tpu.memory_space<smem>>
    %c16_34 = arith.constant 16 : index
    %83 = memref.load %arg8[%c16_34] : memref<40xf32, #tpu.memory_space<smem>>
    %c17_35 = arith.constant 17 : index
    %84 = memref.load %arg8[%c17_35] : memref<40xf32, #tpu.memory_space<smem>>
    %c18_36 = arith.constant 18 : index
    %85 = memref.load %arg8[%c18_36] : memref<40xf32, #tpu.memory_space<smem>>
    %c19_37 = arith.constant 19 : index
    %86 = memref.load %arg8[%c19_37] : memref<40xf32, #tpu.memory_space<smem>>
    %c20_38 = arith.constant 20 : index
    %87 = memref.load %arg8[%c20_38] : memref<40xf32, #tpu.memory_space<smem>>
    %c21_39 = arith.constant 21 : index
    %88 = memref.load %arg8[%c21_39] : memref<40xf32, #tpu.memory_space<smem>>
    %c22_40 = arith.constant 22 : index
    %89 = memref.load %arg8[%c22_40] : memref<40xf32, #tpu.memory_space<smem>>
    %c23_41 = arith.constant 23 : index
    %90 = memref.load %arg8[%c23_41] : memref<40xf32, #tpu.memory_space<smem>>
    %c24_42 = arith.constant 24 : index
    %91 = memref.load %arg8[%c24_42] : memref<40xf32, #tpu.memory_space<smem>>
    %c25_43 = arith.constant 25 : index
    %92 = memref.load %arg8[%c25_43] : memref<40xf32, #tpu.memory_space<smem>>
    %c26_44 = arith.constant 26 : index
    %93 = memref.load %arg8[%c26_44] : memref<40xf32, #tpu.memory_space<smem>>
    %c27_45 = arith.constant 27 : index
    %94 = memref.load %arg8[%c27_45] : memref<40xf32, #tpu.memory_space<smem>>
    %c28_46 = arith.constant 28 : index
    %95 = memref.load %arg8[%c28_46] : memref<40xf32, #tpu.memory_space<smem>>
    %c29_47 = arith.constant 29 : index
    %96 = memref.load %arg8[%c29_47] : memref<40xf32, #tpu.memory_space<smem>>
    %c30_48 = arith.constant 30 : index
    %97 = memref.load %arg8[%c30_48] : memref<40xf32, #tpu.memory_space<smem>>
    %c31_49 = arith.constant 31 : index
    %98 = memref.load %arg8[%c31_49] : memref<40xf32, #tpu.memory_space<smem>>
    %c32_50 = arith.constant 32 : index
    %99 = memref.load %arg8[%c32_50] : memref<40xf32, #tpu.memory_space<smem>>
    %c33_51 = arith.constant 33 : index
    %100 = memref.load %arg8[%c33_51] : memref<40xf32, #tpu.memory_space<smem>>
    %c34_52 = arith.constant 34 : index
    %101 = memref.load %arg8[%c34_52] : memref<40xf32, #tpu.memory_space<smem>>
    %c35_53 = arith.constant 35 : index
    %102 = memref.load %arg8[%c35_53] : memref<40xf32, #tpu.memory_space<smem>>
    %c36_54 = arith.constant 36 : index
    %103 = memref.load %arg8[%c36_54] : memref<40xf32, #tpu.memory_space<smem>>
    %c37_55 = arith.constant 37 : index
    %104 = memref.load %arg8[%c37_55] : memref<40xf32, #tpu.memory_space<smem>>
    %c38_56 = arith.constant 38 : index
    %105 = memref.load %arg8[%c38_56] : memref<40xf32, #tpu.memory_space<smem>>
    %c39_57 = arith.constant 39 : index
    %106 = memref.load %arg8[%c39_57] : memref<40xf32, #tpu.memory_space<smem>>
    %c0_58 = arith.constant 0 : index
    %107 = memref.load %arg9[%c0_58] : memref<1xf32, #tpu.memory_space<smem>>
    %c0_i32 = arith.constant 0 : i32
    %c1_i32_59 = arith.constant 1 : i32
    %108 = arith.muli %c0_i32, %c1_i32_59 : i32
    %c0_i32_60 = arith.constant 0 : i32
    %109 = arith.addi %c0_i32_60, %108 : i32
    %c16_i32 = arith.constant 16 : i32
    %110 = arith.muli %109, %c16_i32 : i32
    %111 = tpu.assume_multiple %110, 16 : i32
    %112 = arith.index_cast %111 : i32 to index
    %c0_61 = arith.constant 0 : index
    %113 = vector.load %arg1[%112, %c0_61] : memref<16x128xf32, #tpu.memory_space<vmem>>, vector<16x128xf32>
    %c2_i32_62 = arith.constant 2 : i32
    %114 = tpu.dynamic_rotate %113 by %c2_i32_62 dim 1 : vector<16x128xf32>, i32 -> vector<16x128xf32>
    %cst = arith.constant 0.000000e+00 : f32
    %115 = vector.broadcast %cst : f32 to vector<16x128xf32>
    %116 = arith.select %8, %114, %115 : vector<16x128xi1>, vector<16x128xf32>
    %c1_i32_63 = arith.constant 1 : i32
    %117 = tpu.dynamic_rotate %113 by %c1_i32_63 dim 1 : vector<16x128xf32>, i32 -> vector<16x128xf32>
    %cst_64 = arith.constant 0.000000e+00 : f32
    %118 = vector.broadcast %cst_64 : f32 to vector<16x128xf32>
    %119 = arith.select %6, %117, %118 : vector<16x128xi1>, vector<16x128xf32>
    %c127_i32 = arith.constant 127 : i32
    %120 = tpu.dynamic_rotate %113 by %c127_i32 dim 1 : vector<16x128xf32>, i32 -> vector<16x128xf32>
    %cst_65 = arith.constant 0.000000e+00 : f32
    %121 = vector.broadcast %cst_65 : f32 to vector<16x128xf32>
    %122 = arith.select %2, %120, %121 : vector<16x128xi1>, vector<16x128xf32>
    %c126_i32 = arith.constant 126 : i32
    %123 = tpu.dynamic_rotate %113 by %c126_i32 dim 1 : vector<16x128xf32>, i32 -> vector<16x128xf32>
    %cst_66 = arith.constant 0.000000e+00 : f32
    %124 = vector.broadcast %cst_66 : f32 to vector<16x128xf32>
    %125 = arith.select %4, %123, %124 : vector<16x128xi1>, vector<16x128xf32>
    %126 = vector.broadcast %9 : f32 to vector<16x128xf32>
    %127 = arith.mulf %116, %126 : vector<16x128xf32>
    %128 = vector.broadcast %10 : f32 to vector<16x128xf32>
    %129 = arith.mulf %119, %128 : vector<16x128xf32>
    %130 = arith.addf %127, %129 : vector<16x128xf32>
    %131 = vector.broadcast %11 : f32 to vector<16x128xf32>
    %132 = arith.mulf %113, %131 : vector<16x128xf32>
    %133 = arith.addf %130, %132 : vector<16x128xf32>
    %134 = vector.broadcast %12 : f32 to vector<16x128xf32>
    %135 = arith.mulf %122, %134 : vector<16x128xf32>
    %136 = arith.addf %133, %135 : vector<16x128xf32>
    %137 = vector.broadcast %13 : f32 to vector<16x128xf32>
    %138 = arith.mulf %125, %137 : vector<16x128xf32>
    %139 = arith.addf %136, %138 : vector<16x128xf32>
    %140 = vector.broadcast %49 : f32 to vector<16x128xf32>
    %141 = arith.addf %139, %140 : vector<16x128xf32>
    %cst_67 = arith.constant 0.000000e+00 : f32
    %142 = vector.broadcast %cst_67 : f32 to vector<16x128xf32>
    %143 = arith.cmpf oge, %141, %142 : vector<16x128xf32>
    %144 = vector.broadcast %57 : f32 to vector<16x128xf32>
    %145 = arith.mulf %144, %141 : vector<16x128xf32>
    %146 = arith.select %143, %141, %145 : vector<16x128xi1>, vector<16x128xf32>
    %147 = vector.broadcast %14 : f32 to vector<16x128xf32>
    %148 = arith.mulf %116, %147 : vector<16x128xf32>
    %149 = vector.broadcast %15 : f32 to vector<16x128xf32>
    %150 = arith.mulf %119, %149 : vector<16x128xf32>
    %151 = arith.addf %148, %150 : vector<16x128xf32>
    %152 = vector.broadcast %16 : f32 to vector<16x128xf32>
    %153 = arith.mulf %113, %152 : vector<16x128xf32>
    %154 = arith.addf %151, %153 : vector<16x128xf32>
    %155 = vector.broadcast %17 : f32 to vector<16x128xf32>
    %156 = arith.mulf %122, %155 : vector<16x128xf32>
    %157 = arith.addf %154, %156 : vector<16x128xf32>
    %158 = vector.broadcast %18 : f32 to vector<16x128xf32>
    %159 = arith.mulf %125, %158 : vector<16x128xf32>
    %160 = arith.addf %157, %159 : vector<16x128xf32>
    %161 = vector.broadcast %50 : f32 to vector<16x128xf32>
    %162 = arith.addf %160, %161 : vector<16x128xf32>
    %cst_68 = arith.constant 0.000000e+00 : f32
    %163 = vector.broadcast %cst_68 : f32 to vector<16x128xf32>
    %164 = arith.cmpf oge, %162, %163 : vector<16x128xf32>
    %165 = vector.broadcast %57 : f32 to vector<16x128xf32>
    %166 = arith.mulf %165, %162 : vector<16x128xf32>
    %167 = arith.select %164, %162, %166 : vector<16x128xi1>, vector<16x128xf32>
    %168 = vector.broadcast %19 : f32 to vector<16x128xf32>
    %169 = arith.mulf %116, %168 : vector<16x128xf32>
    %170 = vector.broadcast %20 : f32 to vector<16x128xf32>
    %171 = arith.mulf %119, %170 : vector<16x128xf32>
    %172 = arith.addf %169, %171 : vector<16x128xf32>
    %173 = vector.broadcast %21 : f32 to vector<16x128xf32>
    %174 = arith.mulf %113, %173 : vector<16x128xf32>
    %175 = arith.addf %172, %174 : vector<16x128xf32>
    %176 = vector.broadcast %22 : f32 to vector<16x128xf32>
    %177 = arith.mulf %122, %176 : vector<16x128xf32>
    %178 = arith.addf %175, %177 : vector<16x128xf32>
    %179 = vector.broadcast %23 : f32 to vector<16x128xf32>
    %180 = arith.mulf %125, %179 : vector<16x128xf32>
    %181 = arith.addf %178, %180 : vector<16x128xf32>
    %182 = vector.broadcast %51 : f32 to vector<16x128xf32>
    %183 = arith.addf %181, %182 : vector<16x128xf32>
    %cst_69 = arith.constant 0.000000e+00 : f32
    %184 = vector.broadcast %cst_69 : f32 to vector<16x128xf32>
    %185 = arith.cmpf oge, %183, %184 : vector<16x128xf32>
    %186 = vector.broadcast %57 : f32 to vector<16x128xf32>
    %187 = arith.mulf %186, %183 : vector<16x128xf32>
    %188 = arith.select %185, %183, %187 : vector<16x128xi1>, vector<16x128xf32>
    %189 = vector.broadcast %24 : f32 to vector<16x128xf32>
    %190 = arith.mulf %116, %189 : vector<16x128xf32>
    %191 = vector.broadcast %25 : f32 to vector<16x128xf32>
    %192 = arith.mulf %119, %191 : vector<16x128xf32>
    %193 = arith.addf %190, %192 : vector<16x128xf32>
    %194 = vector.broadcast %26 : f32 to vector<16x128xf32>
    %195 = arith.mulf %113, %194 : vector<16x128xf32>
    %196 = arith.addf %193, %195 : vector<16x128xf32>
    %197 = vector.broadcast %27 : f32 to vector<16x128xf32>
    %198 = arith.mulf %122, %197 : vector<16x128xf32>
    %199 = arith.addf %196, %198 : vector<16x128xf32>
    %200 = vector.broadcast %28 : f32 to vector<16x128xf32>
    %201 = arith.mulf %125, %200 : vector<16x128xf32>
    %202 = arith.addf %199, %201 : vector<16x128xf32>
    %203 = vector.broadcast %52 : f32 to vector<16x128xf32>
    %204 = arith.addf %202, %203 : vector<16x128xf32>
    %cst_70 = arith.constant 0.000000e+00 : f32
    %205 = vector.broadcast %cst_70 : f32 to vector<16x128xf32>
    %206 = arith.cmpf oge, %204, %205 : vector<16x128xf32>
    %207 = vector.broadcast %57 : f32 to vector<16x128xf32>
    %208 = arith.mulf %207, %204 : vector<16x128xf32>
    %209 = arith.select %206, %204, %208 : vector<16x128xi1>, vector<16x128xf32>
    %210 = vector.broadcast %29 : f32 to vector<16x128xf32>
    %211 = arith.mulf %116, %210 : vector<16x128xf32>
    %212 = vector.broadcast %30 : f32 to vector<16x128xf32>
    %213 = arith.mulf %119, %212 : vector<16x128xf32>
    %214 = arith.addf %211, %213 : vector<16x128xf32>
    %215 = vector.broadcast %31 : f32 to vector<16x128xf32>
    %216 = arith.mulf %113, %215 : vector<16x128xf32>
    %217 = arith.addf %214, %216 : vector<16x128xf32>
    %218 = vector.broadcast %32 : f32 to vector<16x128xf32>
    %219 = arith.mulf %122, %218 : vector<16x128xf32>
    %220 = arith.addf %217, %219 : vector<16x128xf32>
    %221 = vector.broadcast %33 : f32 to vector<16x128xf32>
    %222 = arith.mulf %125, %221 : vector<16x128xf32>
    %223 = arith.addf %220, %222 : vector<16x128xf32>
    %224 = vector.broadcast %53 : f32 to vector<16x128xf32>
    %225 = arith.addf %223, %224 : vector<16x128xf32>
    %cst_71 = arith.constant 0.000000e+00 : f32
    %226 = vector.broadcast %cst_71 : f32 to vector<16x128xf32>
    %227 = arith.cmpf oge, %225, %226 : vector<16x128xf32>
    %228 = vector.broadcast %57 : f32 to vector<16x128xf32>
    %229 = arith.mulf %228, %225 : vector<16x128xf32>
    %230 = arith.select %227, %225, %229 : vector<16x128xi1>, vector<16x128xf32>
    %231 = vector.broadcast %34 : f32 to vector<16x128xf32>
    %232 = arith.mulf %116, %231 : vector<16x128xf32>
    %233 = vector.broadcast %35 : f32 to vector<16x128xf32>
    %234 = arith.mulf %119, %233 : vector<16x128xf32>
    %235 = arith.addf %232, %234 : vector<16x128xf32>
    %236 = vector.broadcast %36 : f32 to vector<16x128xf32>
    %237 = arith.mulf %113, %236 : vector<16x128xf32>
    %238 = arith.addf %235, %237 : vector<16x128xf32>
    %239 = vector.broadcast %37 : f32 to vector<16x128xf32>
    %240 = arith.mulf %122, %239 : vector<16x128xf32>
    %241 = arith.addf %238, %240 : vector<16x128xf32>
    %242 = vector.broadcast %38 : f32 to vector<16x128xf32>
    %243 = arith.mulf %125, %242 : vector<16x128xf32>
    %244 = arith.addf %241, %243 : vector<16x128xf32>
    %245 = vector.broadcast %54 : f32 to vector<16x128xf32>
    %246 = arith.addf %244, %245 : vector<16x128xf32>
    %cst_72 = arith.constant 0.000000e+00 : f32
    %247 = vector.broadcast %cst_72 : f32 to vector<16x128xf32>
    %248 = arith.cmpf oge, %246, %247 : vector<16x128xf32>
    %249 = vector.broadcast %57 : f32 to vector<16x128xf32>
    %250 = arith.mulf %249, %246 : vector<16x128xf32>
    %251 = arith.select %248, %246, %250 : vector<16x128xi1>, vector<16x128xf32>
    %252 = vector.broadcast %39 : f32 to vector<16x128xf32>
    %253 = arith.mulf %116, %252 : vector<16x128xf32>
    %254 = vector.broadcast %40 : f32 to vector<16x128xf32>
    %255 = arith.mulf %119, %254 : vector<16x128xf32>
    %256 = arith.addf %253, %255 : vector<16x128xf32>
    %257 = vector.broadcast %41 : f32 to vector<16x128xf32>
    %258 = arith.mulf %113, %257 : vector<16x128xf32>
    %259 = arith.addf %256, %258 : vector<16x128xf32>
    %260 = vector.broadcast %42 : f32 to vector<16x128xf32>
    %261 = arith.mulf %122, %260 : vector<16x128xf32>
    %262 = arith.addf %259, %261 : vector<16x128xf32>
    %263 = vector.broadcast %43 : f32 to vector<16x128xf32>
    %264 = arith.mulf %125, %263 : vector<16x128xf32>
    %265 = arith.addf %262, %264 : vector<16x128xf32>
    %266 = vector.broadcast %55 : f32 to vector<16x128xf32>
    %267 = arith.addf %265, %266 : vector<16x128xf32>
    %cst_73 = arith.constant 0.000000e+00 : f32
    %268 = vector.broadcast %cst_73 : f32 to vector<16x128xf32>
    %269 = arith.cmpf oge, %267, %268 : vector<16x128xf32>
    %270 = vector.broadcast %57 : f32 to vector<16x128xf32>
    %271 = arith.mulf %270, %267 : vector<16x128xf32>
    %272 = arith.select %269, %267, %271 : vector<16x128xi1>, vector<16x128xf32>
    %273 = vector.broadcast %44 : f32 to vector<16x128xf32>
    %274 = arith.mulf %116, %273 : vector<16x128xf32>
    %275 = vector.broadcast %45 : f32 to vector<16x128xf32>
    %276 = arith.mulf %119, %275 : vector<16x128xf32>
    %277 = arith.addf %274, %276 : vector<16x128xf32>
    %278 = vector.broadcast %46 : f32 to vector<16x128xf32>
    %279 = arith.mulf %113, %278 : vector<16x128xf32>
    %280 = arith.addf %277, %279 : vector<16x128xf32>
    %281 = vector.broadcast %47 : f32 to vector<16x128xf32>
    %282 = arith.mulf %122, %281 : vector<16x128xf32>
    %283 = arith.addf %280, %282 : vector<16x128xf32>
    %284 = vector.broadcast %48 : f32 to vector<16x128xf32>
    %285 = arith.mulf %125, %284 : vector<16x128xf32>
    %286 = arith.addf %283, %285 : vector<16x128xf32>
    %287 = vector.broadcast %56 : f32 to vector<16x128xf32>
    %288 = arith.addf %286, %287 : vector<16x128xf32>
    %cst_74 = arith.constant 0.000000e+00 : f32
    %289 = vector.broadcast %cst_74 : f32 to vector<16x128xf32>
    %290 = arith.cmpf oge, %288, %289 : vector<16x128xf32>
    %291 = vector.broadcast %57 : f32 to vector<16x128xf32>
    %292 = arith.mulf %291, %288 : vector<16x128xf32>
    %293 = arith.select %290, %288, %292 : vector<16x128xi1>, vector<16x128xf32>
    %c0_75 = arith.constant 0 : index
    %294 = memref.load %arg5[%c0_75] : memref<320xf32, #tpu.memory_space<smem>>
    %295 = vector.broadcast %294 : f32 to vector<16x128xf32>
    %296 = arith.mulf %146, %295 : vector<16x128xf32>
    %c5_76 = arith.constant 5 : index
    %297 = memref.load %arg5[%c5_76] : memref<320xf32, #tpu.memory_space<smem>>
    %298 = vector.broadcast %297 : f32 to vector<16x128xf32>
    %299 = arith.mulf %167, %298 : vector<16x128xf32>
    %300 = arith.addf %296, %299 : vector<16x128xf32>
    %c10_77 = arith.constant 10 : index
    %301 = memref.load %arg5[%c10_77] : memref<320xf32, #tpu.memory_space<smem>>
    %302 = vector.broadcast %301 : f32 to vector<16x128xf32>
    %303 = arith.mulf %188, %302 : vector<16x128xf32>
    %304 = arith.addf %300, %303 : vector<16x128xf32>
    %c15_78 = arith.constant 15 : index
    %305 = memref.load %arg5[%c15_78] : memref<320xf32, #tpu.memory_space<smem>>
    %306 = vector.broadcast %305 : f32 to vector<16x128xf32>
    %307 = arith.mulf %209, %306 : vector<16x128xf32>
    %308 = arith.addf %304, %307 : vector<16x128xf32>
    %c20_79 = arith.constant 20 : index
    %309 = memref.load %arg5[%c20_79] : memref<320xf32, #tpu.memory_space<smem>>
    %310 = vector.broadcast %309 : f32 to vector<16x128xf32>
    %311 = arith.mulf %230, %310 : vector<16x128xf32>
    %312 = arith.addf %308, %311 : vector<16x128xf32>
    %c25_80 = arith.constant 25 : index
    %313 = memref.load %arg5[%c25_80] : memref<320xf32, #tpu.memory_space<smem>>
    %314 = vector.broadcast %313 : f32 to vector<16x128xf32>
    %315 = arith.mulf %251, %314 : vector<16x128xf32>
    %316 = arith.addf %312, %315 : vector<16x128xf32>
    %c30_81 = arith.constant 30 : index
    %317 = memref.load %arg5[%c30_81] : memref<320xf32, #tpu.memory_space<smem>>
    %318 = vector.broadcast %317 : f32 to vector<16x128xf32>
    %319 = arith.mulf %272, %318 : vector<16x128xf32>
    %320 = arith.addf %316, %319 : vector<16x128xf32>
    %c35_82 = arith.constant 35 : index
    %321 = memref.load %arg5[%c35_82] : memref<320xf32, #tpu.memory_space<smem>>
    %322 = vector.broadcast %321 : f32 to vector<16x128xf32>
    %323 = arith.mulf %293, %322 : vector<16x128xf32>
    %324 = arith.addf %320, %323 : vector<16x128xf32>
    %c2_i32_83 = arith.constant 2 : i32
    %325 = tpu.dynamic_rotate %324 by %c2_i32_83 dim 1 : vector<16x128xf32>, i32 -> vector<16x128xf32>
    %cst_84 = arith.constant 0.000000e+00 : f32
    %326 = vector.broadcast %cst_84 : f32 to vector<16x128xf32>
    %327 = arith.select %8, %325, %326 : vector<16x128xi1>, vector<16x128xf32>
    %c1_85 = arith.constant 1 : index
    %328 = memref.load %arg5[%c1_85] : memref<320xf32, #tpu.memory_space<smem>>
    %329 = vector.broadcast %328 : f32 to vector<16x128xf32>
    %330 = arith.mulf %146, %329 : vector<16x128xf32>
    %c6_86 = arith.constant 6 : index
    %331 = memref.load %arg5[%c6_86] : memref<320xf32, #tpu.memory_space<smem>>
    %332 = vector.broadcast %331 : f32 to vector<16x128xf32>
    %333 = arith.mulf %167, %332 : vector<16x128xf32>
    %334 = arith.addf %330, %333 : vector<16x128xf32>
    %c11_87 = arith.constant 11 : index
    %335 = memref.load %arg5[%c11_87] : memref<320xf32, #tpu.memory_space<smem>>
    %336 = vector.broadcast %335 : f32 to vector<16x128xf32>
    %337 = arith.mulf %188, %336 : vector<16x128xf32>
    %338 = arith.addf %334, %337 : vector<16x128xf32>
    %c16_88 = arith.constant 16 : index
    %339 = memref.load %arg5[%c16_88] : memref<320xf32, #tpu.memory_space<smem>>
    %340 = vector.broadcast %339 : f32 to vector<16x128xf32>
    %341 = arith.mulf %209, %340 : vector<16x128xf32>
    %342 = arith.addf %338, %341 : vector<16x128xf32>
    %c21_89 = arith.constant 21 : index
    %343 = memref.load %arg5[%c21_89] : memref<320xf32, #tpu.memory_space<smem>>
    %344 = vector.broadcast %343 : f32 to vector<16x128xf32>
    %345 = arith.mulf %230, %344 : vector<16x128xf32>
    %346 = arith.addf %342, %345 : vector<16x128xf32>
    %c26_90 = arith.constant 26 : index
    %347 = memref.load %arg5[%c26_90] : memref<320xf32, #tpu.memory_space<smem>>
    %348 = vector.broadcast %347 : f32 to vector<16x128xf32>
    %349 = arith.mulf %251, %348 : vector<16x128xf32>
    %350 = arith.addf %346, %349 : vector<16x128xf32>
    %c31_91 = arith.constant 31 : index
    %351 = memref.load %arg5[%c31_91] : memref<320xf32, #tpu.memory_space<smem>>
    %352 = vector.broadcast %351 : f32 to vector<16x128xf32>
    %353 = arith.mulf %272, %352 : vector<16x128xf32>
    %354 = arith.addf %350, %353 : vector<16x128xf32>
    %c36_92 = arith.constant 36 : index
    %355 = memref.load %arg5[%c36_92] : memref<320xf32, #tpu.memory_space<smem>>
    %356 = vector.broadcast %355 : f32 to vector<16x128xf32>
    %357 = arith.mulf %293, %356 : vector<16x128xf32>
    %358 = arith.addf %354, %357 : vector<16x128xf32>
    %c1_i32_93 = arith.constant 1 : i32
    %359 = tpu.dynamic_rotate %358 by %c1_i32_93 dim 1 : vector<16x128xf32>, i32 -> vector<16x128xf32>
    %cst_94 = arith.constant 0.000000e+00 : f32
    %360 = vector.broadcast %cst_94 : f32 to vector<16x128xf32>
    %361 = arith.select %6, %359, %360 : vector<16x128xi1>, vector<16x128xf32>
    %362 = arith.addf %327, %361 : vector<16x128xf32>
    %c2_95 = arith.constant 2 : index
    %363 = memref.load %arg5[%c2_95] : memref<320xf32, #tpu.memory_space<smem>>
    %364 = vector.broadcast %363 : f32 to vector<16x128xf32>
    %365 = arith.mulf %146, %364 : vector<16x128xf32>
    %c7_96 = arith.constant 7 : index
    %366 = memref.load %arg5[%c7_96] : memref<320xf32, #tpu.memory_space<smem>>
    %367 = vector.broadcast %366 : f32 to vector<16x128xf32>
    %368 = arith.mulf %167, %367 : vector<16x128xf32>
    %369 = arith.addf %365, %368 : vector<16x128xf32>
    %c12_97 = arith.constant 12 : index
    %370 = memref.load %arg5[%c12_97] : memref<320xf32, #tpu.memory_space<smem>>
    %371 = vector.broadcast %370 : f32 to vector<16x128xf32>
    %372 = arith.mulf %188, %371 : vector<16x128xf32>
    %373 = arith.addf %369, %372 : vector<16x128xf32>
    %c17_98 = arith.constant 17 : index
    %374 = memref.load %arg5[%c17_98] : memref<320xf32, #tpu.memory_space<smem>>
    %375 = vector.broadcast %374 : f32 to vector<16x128xf32>
    %376 = arith.mulf %209, %375 : vector<16x128xf32>
    %377 = arith.addf %373, %376 : vector<16x128xf32>
    %c22_99 = arith.constant 22 : index
    %378 = memref.load %arg5[%c22_99] : memref<320xf32, #tpu.memory_space<smem>>
    %379 = vector.broadcast %378 : f32 to vector<16x128xf32>
    %380 = arith.mulf %230, %379 : vector<16x128xf32>
    %381 = arith.addf %377, %380 : vector<16x128xf32>
    %c27_100 = arith.constant 27 : index
    %382 = memref.load %arg5[%c27_100] : memref<320xf32, #tpu.memory_space<smem>>
    %383 = vector.broadcast %382 : f32 to vector<16x128xf32>
    %384 = arith.mulf %251, %383 : vector<16x128xf32>
    %385 = arith.addf %381, %384 : vector<16x128xf32>
    %c32_101 = arith.constant 32 : index
    %386 = memref.load %arg5[%c32_101] : memref<320xf32, #tpu.memory_space<smem>>
    %387 = vector.broadcast %386 : f32 to vector<16x128xf32>
    %388 = arith.mulf %272, %387 : vector<16x128xf32>
    %389 = arith.addf %385, %388 : vector<16x128xf32>
    %c37_102 = arith.constant 37 : index
    %390 = memref.load %arg5[%c37_102] : memref<320xf32, #tpu.memory_space<smem>>
    %391 = vector.broadcast %390 : f32 to vector<16x128xf32>
    %392 = arith.mulf %293, %391 : vector<16x128xf32>
    %393 = arith.addf %389, %392 : vector<16x128xf32>
    %394 = arith.addf %362, %393 : vector<16x128xf32>
    %c3_103 = arith.constant 3 : index
    %395 = memref.load %arg5[%c3_103] : memref<320xf32, #tpu.memory_space<smem>>
    %396 = vector.broadcast %395 : f32 to vector<16x128xf32>
    %397 = arith.mulf %146, %396 : vector<16x128xf32>
    %c8_104 = arith.constant 8 : index
    %398 = memref.load %arg5[%c8_104] : memref<320xf32, #tpu.memory_space<smem>>
    %399 = vector.broadcast %398 : f32 to vector<16x128xf32>
    %400 = arith.mulf %167, %399 : vector<16x128xf32>
    %401 = arith.addf %397, %400 : vector<16x128xf32>
    %c13_105 = arith.constant 13 : index
    %402 = memref.load %arg5[%c13_105] : memref<320xf32, #tpu.memory_space<smem>>
    %403 = vector.broadcast %402 : f32 to vector<16x128xf32>
    %404 = arith.mulf %188, %403 : vector<16x128xf32>
    %405 = arith.addf %401, %404 : vector<16x128xf32>
    %c18_106 = arith.constant 18 : index
    %406 = memref.load %arg5[%c18_106] : memref<320xf32, #tpu.memory_space<smem>>
    %407 = vector.broadcast %406 : f32 to vector<16x128xf32>
    %408 = arith.mulf %209, %407 : vector<16x128xf32>
    %409 = arith.addf %405, %408 : vector<16x128xf32>
    %c23_107 = arith.constant 23 : index
    %410 = memref.load %arg5[%c23_107] : memref<320xf32, #tpu.memory_space<smem>>
    %411 = vector.broadcast %410 : f32 to vector<16x128xf32>
    %412 = arith.mulf %230, %411 : vector<16x128xf32>
    %413 = arith.addf %409, %412 : vector<16x128xf32>
    %c28_108 = arith.constant 28 : index
    %414 = memref.load %arg5[%c28_108] : memref<320xf32, #tpu.memory_space<smem>>
    %415 = vector.broadcast %414 : f32 to vector<16x128xf32>
    %416 = arith.mulf %251, %415 : vector<16x128xf32>
    %417 = arith.addf %413, %416 : vector<16x128xf32>
    %c33_109 = arith.constant 33 : index
    %418 = memref.load %arg5[%c33_109] : memref<320xf32, #tpu.memory_space<smem>>
    %419 = vector.broadcast %418 : f32 to vector<16x128xf32>
    %420 = arith.mulf %272, %419 : vector<16x128xf32>
    %421 = arith.addf %417, %420 : vector<16x128xf32>
    %c38_110 = arith.constant 38 : index
    %422 = memref.load %arg5[%c38_110] : memref<320xf32, #tpu.memory_space<smem>>
    %423 = vector.broadcast %422 : f32 to vector<16x128xf32>
    %424 = arith.mulf %293, %423 : vector<16x128xf32>
    %425 = arith.addf %421, %424 : vector<16x128xf32>
    %c127_i32_111 = arith.constant 127 : i32
    %426 = tpu.dynamic_rotate %425 by %c127_i32_111 dim 1 : vector<16x128xf32>, i32 -> vector<16x128xf32>
    %cst_112 = arith.constant 0.000000e+00 : f32
    %427 = vector.broadcast %cst_112 : f32 to vector<16x128xf32>
    %428 = arith.select %2, %426, %427 : vector<16x128xi1>, vector<16x128xf32>
    %429 = arith.addf %394, %428 : vector<16x128xf32>
    %c4_113 = arith.constant 4 : index
    %430 = memref.load %arg5[%c4_113] : memref<320xf32, #tpu.memory_space<smem>>
    %431 = vector.broadcast %430 : f32 to vector<16x128xf32>
    %432 = arith.mulf %146, %431 : vector<16x128xf32>
    %c9_114 = arith.constant 9 : index
    %433 = memref.load %arg5[%c9_114] : memref<320xf32, #tpu.memory_space<smem>>
    %434 = vector.broadcast %433 : f32 to vector<16x128xf32>
    %435 = arith.mulf %167, %434 : vector<16x128xf32>
    %436 = arith.addf %432, %435 : vector<16x128xf32>
    %c14_115 = arith.constant 14 : index
    %437 = memref.load %arg5[%c14_115] : memref<320xf32, #tpu.memory_space<smem>>
    %438 = vector.broadcast %437 : f32 to vector<16x128xf32>
    %439 = arith.mulf %188, %438 : vector<16x128xf32>
    %440 = arith.addf %436, %439 : vector<16x128xf32>
    %c19_116 = arith.constant 19 : index
    %441 = memref.load %arg5[%c19_116] : memref<320xf32, #tpu.memory_space<smem>>
    %442 = vector.broadcast %441 : f32 to vector<16x128xf32>
    %443 = arith.mulf %209, %442 : vector<16x128xf32>
    %444 = arith.addf %440, %443 : vector<16x128xf32>
    %c24_117 = arith.constant 24 : index
    %445 = memref.load %arg5[%c24_117] : memref<320xf32, #tpu.memory_space<smem>>
    %446 = vector.broadcast %445 : f32 to vector<16x128xf32>
    %447 = arith.mulf %230, %446 : vector<16x128xf32>
    %448 = arith.addf %444, %447 : vector<16x128xf32>
    %c29_118 = arith.constant 29 : index
    %449 = memref.load %arg5[%c29_118] : memref<320xf32, #tpu.memory_space<smem>>
    %450 = vector.broadcast %449 : f32 to vector<16x128xf32>
    %451 = arith.mulf %251, %450 : vector<16x128xf32>
    %452 = arith.addf %448, %451 : vector<16x128xf32>
    %c34_119 = arith.constant 34 : index
    %453 = memref.load %arg5[%c34_119] : memref<320xf32, #tpu.memory_space<smem>>
    %454 = vector.broadcast %453 : f32 to vector<16x128xf32>
    %455 = arith.mulf %272, %454 : vector<16x128xf32>
    %456 = arith.addf %452, %455 : vector<16x128xf32>
    %c39_120 = arith.constant 39 : index
    %457 = memref.load %arg5[%c39_120] : memref<320xf32, #tpu.memory_space<smem>>
    %458 = vector.broadcast %457 : f32 to vector<16x128xf32>
    %459 = arith.mulf %293, %458 : vector<16x128xf32>
    %460 = arith.addf %456, %459 : vector<16x128xf32>
    %c126_i32_121 = arith.constant 126 : i32
    %461 = tpu.dynamic_rotate %460 by %c126_i32_121 dim 1 : vector<16x128xf32>, i32 -> vector<16x128xf32>
    %cst_122 = arith.constant 0.000000e+00 : f32
    %462 = vector.broadcast %cst_122 : f32 to vector<16x128xf32>
    %463 = arith.select %4, %461, %462 : vector<16x128xi1>, vector<16x128xf32>
    %464 = arith.addf %429, %463 : vector<16x128xf32>
    %465 = vector.broadcast %58 : f32 to vector<16x128xf32>
    %466 = arith.addf %464, %465 : vector<16x128xf32>
    %cst_123 = arith.constant 0.000000e+00 : f32
    %467 = vector.broadcast %cst_123 : f32 to vector<16x128xf32>
    %468 = arith.cmpf oge, %466, %467 : vector<16x128xf32>
    %469 = vector.broadcast %66 : f32 to vector<16x128xf32>
    %470 = arith.mulf %469, %466 : vector<16x128xf32>
    %471 = arith.select %468, %466, %470 : vector<16x128xi1>, vector<16x128xf32>
    %472 = vector.broadcast %67 : f32 to vector<16x128xf32>
    %473 = arith.mulf %471, %472 : vector<16x128xf32>
    %474 = vector.broadcast %68 : f32 to vector<16x128xf32>
    %475 = arith.mulf %471, %474 : vector<16x128xf32>
    %476 = vector.broadcast %69 : f32 to vector<16x128xf32>
    %477 = arith.mulf %471, %476 : vector<16x128xf32>
    %478 = vector.broadcast %70 : f32 to vector<16x128xf32>
    %479 = arith.mulf %471, %478 : vector<16x128xf32>
    %480 = vector.broadcast %71 : f32 to vector<16x128xf32>
    %481 = arith.mulf %471, %480 : vector<16x128xf32>
    %c40 = arith.constant 40 : index
    %482 = memref.load %arg5[%c40] : memref<320xf32, #tpu.memory_space<smem>>
    %483 = vector.broadcast %482 : f32 to vector<16x128xf32>
    %484 = arith.mulf %146, %483 : vector<16x128xf32>
    %c45 = arith.constant 45 : index
    %485 = memref.load %arg5[%c45] : memref<320xf32, #tpu.memory_space<smem>>
    %486 = vector.broadcast %485 : f32 to vector<16x128xf32>
    %487 = arith.mulf %167, %486 : vector<16x128xf32>
    %488 = arith.addf %484, %487 : vector<16x128xf32>
    %c50 = arith.constant 50 : index
    %489 = memref.load %arg5[%c50] : memref<320xf32, #tpu.memory_space<smem>>
    %490 = vector.broadcast %489 : f32 to vector<16x128xf32>
    %491 = arith.mulf %188, %490 : vector<16x128xf32>
    %492 = arith.addf %488, %491 : vector<16x128xf32>
    %c55 = arith.constant 55 : index
    %493 = memref.load %arg5[%c55] : memref<320xf32, #tpu.memory_space<smem>>
    %494 = vector.broadcast %493 : f32 to vector<16x128xf32>
    %495 = arith.mulf %209, %494 : vector<16x128xf32>
    %496 = arith.addf %492, %495 : vector<16x128xf32>
    %c60 = arith.constant 60 : index
    %497 = memref.load %arg5[%c60] : memref<320xf32, #tpu.memory_space<smem>>
    %498 = vector.broadcast %497 : f32 to vector<16x128xf32>
    %499 = arith.mulf %230, %498 : vector<16x128xf32>
    %500 = arith.addf %496, %499 : vector<16x128xf32>
    %c65 = arith.constant 65 : index
    %501 = memref.load %arg5[%c65] : memref<320xf32, #tpu.memory_space<smem>>
    %502 = vector.broadcast %501 : f32 to vector<16x128xf32>
    %503 = arith.mulf %251, %502 : vector<16x128xf32>
    %504 = arith.addf %500, %503 : vector<16x128xf32>
    %c70 = arith.constant 70 : index
    %505 = memref.load %arg5[%c70] : memref<320xf32, #tpu.memory_space<smem>>
    %506 = vector.broadcast %505 : f32 to vector<16x128xf32>
    %507 = arith.mulf %272, %506 : vector<16x128xf32>
    %508 = arith.addf %504, %507 : vector<16x128xf32>
    %c75 = arith.constant 75 : index
    %509 = memref.load %arg5[%c75] : memref<320xf32, #tpu.memory_space<smem>>
    %510 = vector.broadcast %509 : f32 to vector<16x128xf32>
    %511 = arith.mulf %293, %510 : vector<16x128xf32>
    %512 = arith.addf %508, %511 : vector<16x128xf32>
    %c2_i32_124 = arith.constant 2 : i32
    %513 = tpu.dynamic_rotate %512 by %c2_i32_124 dim 1 : vector<16x128xf32>, i32 -> vector<16x128xf32>
    %cst_125 = arith.constant 0.000000e+00 : f32
    %514 = vector.broadcast %cst_125 : f32 to vector<16x128xf32>
    %515 = arith.select %8, %513, %514 : vector<16x128xi1>, vector<16x128xf32>
    %c41 = arith.constant 41 : index
    %516 = memref.load %arg5[%c41] : memref<320xf32, #tpu.memory_space<smem>>
    %517 = vector.broadcast %516 : f32 to vector<16x128xf32>
    %518 = arith.mulf %146, %517 : vector<16x128xf32>
    %c46 = arith.constant 46 : index
    %519 = memref.load %arg5[%c46] : memref<320xf32, #tpu.memory_space<smem>>
    %520 = vector.broadcast %519 : f32 to vector<16x128xf32>
    %521 = arith.mulf %167, %520 : vector<16x128xf32>
    %522 = arith.addf %518, %521 : vector<16x128xf32>
    %c51 = arith.constant 51 : index
    %523 = memref.load %arg5[%c51] : memref<320xf32, #tpu.memory_space<smem>>
    %524 = vector.broadcast %523 : f32 to vector<16x128xf32>
    %525 = arith.mulf %188, %524 : vector<16x128xf32>
    %526 = arith.addf %522, %525 : vector<16x128xf32>
    %c56 = arith.constant 56 : index
    %527 = memref.load %arg5[%c56] : memref<320xf32, #tpu.memory_space<smem>>
    %528 = vector.broadcast %527 : f32 to vector<16x128xf32>
    %529 = arith.mulf %209, %528 : vector<16x128xf32>
    %530 = arith.addf %526, %529 : vector<16x128xf32>
    %c61 = arith.constant 61 : index
    %531 = memref.load %arg5[%c61] : memref<320xf32, #tpu.memory_space<smem>>
    %532 = vector.broadcast %531 : f32 to vector<16x128xf32>
    %533 = arith.mulf %230, %532 : vector<16x128xf32>
    %534 = arith.addf %530, %533 : vector<16x128xf32>
    %c66 = arith.constant 66 : index
    %535 = memref.load %arg5[%c66] : memref<320xf32, #tpu.memory_space<smem>>
    %536 = vector.broadcast %535 : f32 to vector<16x128xf32>
    %537 = arith.mulf %251, %536 : vector<16x128xf32>
    %538 = arith.addf %534, %537 : vector<16x128xf32>
    %c71 = arith.constant 71 : index
    %539 = memref.load %arg5[%c71] : memref<320xf32, #tpu.memory_space<smem>>
    %540 = vector.broadcast %539 : f32 to vector<16x128xf32>
    %541 = arith.mulf %272, %540 : vector<16x128xf32>
    %542 = arith.addf %538, %541 : vector<16x128xf32>
    %c76 = arith.constant 76 : index
    %543 = memref.load %arg5[%c76] : memref<320xf32, #tpu.memory_space<smem>>
    %544 = vector.broadcast %543 : f32 to vector<16x128xf32>
    %545 = arith.mulf %293, %544 : vector<16x128xf32>
    %546 = arith.addf %542, %545 : vector<16x128xf32>
    %c1_i32_126 = arith.constant 1 : i32
    %547 = tpu.dynamic_rotate %546 by %c1_i32_126 dim 1 : vector<16x128xf32>, i32 -> vector<16x128xf32>
    %cst_127 = arith.constant 0.000000e+00 : f32
    %548 = vector.broadcast %cst_127 : f32 to vector<16x128xf32>
    %549 = arith.select %6, %547, %548 : vector<16x128xi1>, vector<16x128xf32>
    %550 = arith.addf %515, %549 : vector<16x128xf32>
    %c42 = arith.constant 42 : index
    %551 = memref.load %arg5[%c42] : memref<320xf32, #tpu.memory_space<smem>>
    %552 = vector.broadcast %551 : f32 to vector<16x128xf32>
    %553 = arith.mulf %146, %552 : vector<16x128xf32>
    %c47 = arith.constant 47 : index
    %554 = memref.load %arg5[%c47] : memref<320xf32, #tpu.memory_space<smem>>
    %555 = vector.broadcast %554 : f32 to vector<16x128xf32>
    %556 = arith.mulf %167, %555 : vector<16x128xf32>
    %557 = arith.addf %553, %556 : vector<16x128xf32>
    %c52 = arith.constant 52 : index
    %558 = memref.load %arg5[%c52] : memref<320xf32, #tpu.memory_space<smem>>
    %559 = vector.broadcast %558 : f32 to vector<16x128xf32>
    %560 = arith.mulf %188, %559 : vector<16x128xf32>
    %561 = arith.addf %557, %560 : vector<16x128xf32>
    %c57 = arith.constant 57 : index
    %562 = memref.load %arg5[%c57] : memref<320xf32, #tpu.memory_space<smem>>
    %563 = vector.broadcast %562 : f32 to vector<16x128xf32>
    %564 = arith.mulf %209, %563 : vector<16x128xf32>
    %565 = arith.addf %561, %564 : vector<16x128xf32>
    %c62 = arith.constant 62 : index
    %566 = memref.load %arg5[%c62] : memref<320xf32, #tpu.memory_space<smem>>
    %567 = vector.broadcast %566 : f32 to vector<16x128xf32>
    %568 = arith.mulf %230, %567 : vector<16x128xf32>
    %569 = arith.addf %565, %568 : vector<16x128xf32>
    %c67 = arith.constant 67 : index
    %570 = memref.load %arg5[%c67] : memref<320xf32, #tpu.memory_space<smem>>
    %571 = vector.broadcast %570 : f32 to vector<16x128xf32>
    %572 = arith.mulf %251, %571 : vector<16x128xf32>
    %573 = arith.addf %569, %572 : vector<16x128xf32>
    %c72 = arith.constant 72 : index
    %574 = memref.load %arg5[%c72] : memref<320xf32, #tpu.memory_space<smem>>
    %575 = vector.broadcast %574 : f32 to vector<16x128xf32>
    %576 = arith.mulf %272, %575 : vector<16x128xf32>
    %577 = arith.addf %573, %576 : vector<16x128xf32>
    %c77 = arith.constant 77 : index
    %578 = memref.load %arg5[%c77] : memref<320xf32, #tpu.memory_space<smem>>
    %579 = vector.broadcast %578 : f32 to vector<16x128xf32>
    %580 = arith.mulf %293, %579 : vector<16x128xf32>
    %581 = arith.addf %577, %580 : vector<16x128xf32>
    %582 = arith.addf %550, %581 : vector<16x128xf32>
    %c43 = arith.constant 43 : index
    %583 = memref.load %arg5[%c43] : memref<320xf32, #tpu.memory_space<smem>>
    %584 = vector.broadcast %583 : f32 to vector<16x128xf32>
    %585 = arith.mulf %146, %584 : vector<16x128xf32>
    %c48 = arith.constant 48 : index
    %586 = memref.load %arg5[%c48] : memref<320xf32, #tpu.memory_space<smem>>
    %587 = vector.broadcast %586 : f32 to vector<16x128xf32>
    %588 = arith.mulf %167, %587 : vector<16x128xf32>
    %589 = arith.addf %585, %588 : vector<16x128xf32>
    %c53 = arith.constant 53 : index
    %590 = memref.load %arg5[%c53] : memref<320xf32, #tpu.memory_space<smem>>
    %591 = vector.broadcast %590 : f32 to vector<16x128xf32>
    %592 = arith.mulf %188, %591 : vector<16x128xf32>
    %593 = arith.addf %589, %592 : vector<16x128xf32>
    %c58 = arith.constant 58 : index
    %594 = memref.load %arg5[%c58] : memref<320xf32, #tpu.memory_space<smem>>
    %595 = vector.broadcast %594 : f32 to vector<16x128xf32>
    %596 = arith.mulf %209, %595 : vector<16x128xf32>
    %597 = arith.addf %593, %596 : vector<16x128xf32>
    %c63 = arith.constant 63 : index
    %598 = memref.load %arg5[%c63] : memref<320xf32, #tpu.memory_space<smem>>
    %599 = vector.broadcast %598 : f32 to vector<16x128xf32>
    %600 = arith.mulf %230, %599 : vector<16x128xf32>
    %601 = arith.addf %597, %600 : vector<16x128xf32>
    %c68 = arith.constant 68 : index
    %602 = memref.load %arg5[%c68] : memref<320xf32, #tpu.memory_space<smem>>
    %603 = vector.broadcast %602 : f32 to vector<16x128xf32>
    %604 = arith.mulf %251, %603 : vector<16x128xf32>
    %605 = arith.addf %601, %604 : vector<16x128xf32>
    %c73 = arith.constant 73 : index
    %606 = memref.load %arg5[%c73] : memref<320xf32, #tpu.memory_space<smem>>
    %607 = vector.broadcast %606 : f32 to vector<16x128xf32>
    %608 = arith.mulf %272, %607 : vector<16x128xf32>
    %609 = arith.addf %605, %608 : vector<16x128xf32>
    %c78 = arith.constant 78 : index
    %610 = memref.load %arg5[%c78] : memref<320xf32, #tpu.memory_space<smem>>
    %611 = vector.broadcast %610 : f32 to vector<16x128xf32>
    %612 = arith.mulf %293, %611 : vector<16x128xf32>
    %613 = arith.addf %609, %612 : vector<16x128xf32>
    %c127_i32_128 = arith.constant 127 : i32
    %614 = tpu.dynamic_rotate %613 by %c127_i32_128 dim 1 : vector<16x128xf32>, i32 -> vector<16x128xf32>
    %cst_129 = arith.constant 0.000000e+00 : f32
    %615 = vector.broadcast %cst_129 : f32 to vector<16x128xf32>
    %616 = arith.select %2, %614, %615 : vector<16x128xi1>, vector<16x128xf32>
    %617 = arith.addf %582, %616 : vector<16x128xf32>
    %c44 = arith.constant 44 : index
    %618 = memref.load %arg5[%c44] : memref<320xf32, #tpu.memory_space<smem>>
    %619 = vector.broadcast %618 : f32 to vector<16x128xf32>
    %620 = arith.mulf %146, %619 : vector<16x128xf32>
    %c49 = arith.constant 49 : index
    %621 = memref.load %arg5[%c49] : memref<320xf32, #tpu.memory_space<smem>>
    %622 = vector.broadcast %621 : f32 to vector<16x128xf32>
    %623 = arith.mulf %167, %622 : vector<16x128xf32>
    %624 = arith.addf %620, %623 : vector<16x128xf32>
    %c54 = arith.constant 54 : index
    %625 = memref.load %arg5[%c54] : memref<320xf32, #tpu.memory_space<smem>>
    %626 = vector.broadcast %625 : f32 to vector<16x128xf32>
    %627 = arith.mulf %188, %626 : vector<16x128xf32>
    %628 = arith.addf %624, %627 : vector<16x128xf32>
    %c59 = arith.constant 59 : index
    %629 = memref.load %arg5[%c59] : memref<320xf32, #tpu.memory_space<smem>>
    %630 = vector.broadcast %629 : f32 to vector<16x128xf32>
    %631 = arith.mulf %209, %630 : vector<16x128xf32>
    %632 = arith.addf %628, %631 : vector<16x128xf32>
    %c64 = arith.constant 64 : index
    %633 = memref.load %arg5[%c64] : memref<320xf32, #tpu.memory_space<smem>>
    %634 = vector.broadcast %633 : f32 to vector<16x128xf32>
    %635 = arith.mulf %230, %634 : vector<16x128xf32>
    %636 = arith.addf %632, %635 : vector<16x128xf32>
    %c69 = arith.constant 69 : index
    %637 = memref.load %arg5[%c69] : memref<320xf32, #tpu.memory_space<smem>>
    %638 = vector.broadcast %637 : f32 to vector<16x128xf32>
    %639 = arith.mulf %251, %638 : vector<16x128xf32>
    %640 = arith.addf %636, %639 : vector<16x128xf32>
    %c74 = arith.constant 74 : index
    %641 = memref.load %arg5[%c74] : memref<320xf32, #tpu.memory_space<smem>>
    %642 = vector.broadcast %641 : f32 to vector<16x128xf32>
    %643 = arith.mulf %272, %642 : vector<16x128xf32>
    %644 = arith.addf %640, %643 : vector<16x128xf32>
    %c79 = arith.constant 79 : index
    %645 = memref.load %arg5[%c79] : memref<320xf32, #tpu.memory_space<smem>>
    %646 = vector.broadcast %645 : f32 to vector<16x128xf32>
    %647 = arith.mulf %293, %646 : vector<16x128xf32>
    %648 = arith.addf %644, %647 : vector<16x128xf32>
    %c126_i32_130 = arith.constant 126 : i32
    %649 = tpu.dynamic_rotate %648 by %c126_i32_130 dim 1 : vector<16x128xf32>, i32 -> vector<16x128xf32>
    %cst_131 = arith.constant 0.000000e+00 : f32
    %650 = vector.broadcast %cst_131 : f32 to vector<16x128xf32>
    %651 = arith.select %4, %649, %650 : vector<16x128xi1>, vector<16x128xf32>
    %652 = arith.addf %617, %651 : vector<16x128xf32>
    %653 = vector.broadcast %59 : f32 to vector<16x128xf32>
    %654 = arith.addf %652, %653 : vector<16x128xf32>
    %cst_132 = arith.constant 0.000000e+00 : f32
    %655 = vector.broadcast %cst_132 : f32 to vector<16x128xf32>
    %656 = arith.cmpf oge, %654, %655 : vector<16x128xf32>
    %657 = vector.broadcast %66 : f32 to vector<16x128xf32>
    %658 = arith.mulf %657, %654 : vector<16x128xf32>
    %659 = arith.select %656, %654, %658 : vector<16x128xi1>, vector<16x128xf32>
    %660 = vector.broadcast %72 : f32 to vector<16x128xf32>
    %661 = arith.mulf %659, %660 : vector<16x128xf32>
    %662 = arith.addf %473, %661 : vector<16x128xf32>
    %663 = vector.broadcast %73 : f32 to vector<16x128xf32>
    %664 = arith.mulf %659, %663 : vector<16x128xf32>
    %665 = arith.addf %475, %664 : vector<16x128xf32>
    %666 = vector.broadcast %74 : f32 to vector<16x128xf32>
    %667 = arith.mulf %659, %666 : vector<16x128xf32>
    %668 = arith.addf %477, %667 : vector<16x128xf32>
    %669 = vector.broadcast %75 : f32 to vector<16x128xf32>
    %670 = arith.mulf %659, %669 : vector<16x128xf32>
    %671 = arith.addf %479, %670 : vector<16x128xf32>
    %672 = vector.broadcast %76 : f32 to vector<16x128xf32>
    %673 = arith.mulf %659, %672 : vector<16x128xf32>
    %674 = arith.addf %481, %673 : vector<16x128xf32>
    %c80 = arith.constant 80 : index
    %675 = memref.load %arg5[%c80] : memref<320xf32, #tpu.memory_space<smem>>
    %676 = vector.broadcast %675 : f32 to vector<16x128xf32>
    %677 = arith.mulf %146, %676 : vector<16x128xf32>
    %c85 = arith.constant 85 : index
    %678 = memref.load %arg5[%c85] : memref<320xf32, #tpu.memory_space<smem>>
    %679 = vector.broadcast %678 : f32 to vector<16x128xf32>
    %680 = arith.mulf %167, %679 : vector<16x128xf32>
    %681 = arith.addf %677, %680 : vector<16x128xf32>
    %c90 = arith.constant 90 : index
    %682 = memref.load %arg5[%c90] : memref<320xf32, #tpu.memory_space<smem>>
    %683 = vector.broadcast %682 : f32 to vector<16x128xf32>
    %684 = arith.mulf %188, %683 : vector<16x128xf32>
    %685 = arith.addf %681, %684 : vector<16x128xf32>
    %c95 = arith.constant 95 : index
    %686 = memref.load %arg5[%c95] : memref<320xf32, #tpu.memory_space<smem>>
    %687 = vector.broadcast %686 : f32 to vector<16x128xf32>
    %688 = arith.mulf %209, %687 : vector<16x128xf32>
    %689 = arith.addf %685, %688 : vector<16x128xf32>
    %c100 = arith.constant 100 : index
    %690 = memref.load %arg5[%c100] : memref<320xf32, #tpu.memory_space<smem>>
    %691 = vector.broadcast %690 : f32 to vector<16x128xf32>
    %692 = arith.mulf %230, %691 : vector<16x128xf32>
    %693 = arith.addf %689, %692 : vector<16x128xf32>
    %c105 = arith.constant 105 : index
    %694 = memref.load %arg5[%c105] : memref<320xf32, #tpu.memory_space<smem>>
    %695 = vector.broadcast %694 : f32 to vector<16x128xf32>
    %696 = arith.mulf %251, %695 : vector<16x128xf32>
    %697 = arith.addf %693, %696 : vector<16x128xf32>
    %c110 = arith.constant 110 : index
    %698 = memref.load %arg5[%c110] : memref<320xf32, #tpu.memory_space<smem>>
    %699 = vector.broadcast %698 : f32 to vector<16x128xf32>
    %700 = arith.mulf %272, %699 : vector<16x128xf32>
    %701 = arith.addf %697, %700 : vector<16x128xf32>
    %c115 = arith.constant 115 : index
    %702 = memref.load %arg5[%c115] : memref<320xf32, #tpu.memory_space<smem>>
    %703 = vector.broadcast %702 : f32 to vector<16x128xf32>
    %704 = arith.mulf %293, %703 : vector<16x128xf32>
    %705 = arith.addf %701, %704 : vector<16x128xf32>
    %c2_i32_133 = arith.constant 2 : i32
    %706 = tpu.dynamic_rotate %705 by %c2_i32_133 dim 1 : vector<16x128xf32>, i32 -> vector<16x128xf32>
    %cst_134 = arith.constant 0.000000e+00 : f32
    %707 = vector.broadcast %cst_134 : f32 to vector<16x128xf32>
    %708 = arith.select %8, %706, %707 : vector<16x128xi1>, vector<16x128xf32>
    %c81 = arith.constant 81 : index
    %709 = memref.load %arg5[%c81] : memref<320xf32, #tpu.memory_space<smem>>
    %710 = vector.broadcast %709 : f32 to vector<16x128xf32>
    %711 = arith.mulf %146, %710 : vector<16x128xf32>
    %c86 = arith.constant 86 : index
    %712 = memref.load %arg5[%c86] : memref<320xf32, #tpu.memory_space<smem>>
    %713 = vector.broadcast %712 : f32 to vector<16x128xf32>
    %714 = arith.mulf %167, %713 : vector<16x128xf32>
    %715 = arith.addf %711, %714 : vector<16x128xf32>
    %c91 = arith.constant 91 : index
    %716 = memref.load %arg5[%c91] : memref<320xf32, #tpu.memory_space<smem>>
    %717 = vector.broadcast %716 : f32 to vector<16x128xf32>
    %718 = arith.mulf %188, %717 : vector<16x128xf32>
    %719 = arith.addf %715, %718 : vector<16x128xf32>
    %c96 = arith.constant 96 : index
    %720 = memref.load %arg5[%c96] : memref<320xf32, #tpu.memory_space<smem>>
    %721 = vector.broadcast %720 : f32 to vector<16x128xf32>
    %722 = arith.mulf %209, %721 : vector<16x128xf32>
    %723 = arith.addf %719, %722 : vector<16x128xf32>
    %c101 = arith.constant 101 : index
    %724 = memref.load %arg5[%c101] : memref<320xf32, #tpu.memory_space<smem>>
    %725 = vector.broadcast %724 : f32 to vector<16x128xf32>
    %726 = arith.mulf %230, %725 : vector<16x128xf32>
    %727 = arith.addf %723, %726 : vector<16x128xf32>
    %c106 = arith.constant 106 : index
    %728 = memref.load %arg5[%c106] : memref<320xf32, #tpu.memory_space<smem>>
    %729 = vector.broadcast %728 : f32 to vector<16x128xf32>
    %730 = arith.mulf %251, %729 : vector<16x128xf32>
    %731 = arith.addf %727, %730 : vector<16x128xf32>
    %c111 = arith.constant 111 : index
    %732 = memref.load %arg5[%c111] : memref<320xf32, #tpu.memory_space<smem>>
    %733 = vector.broadcast %732 : f32 to vector<16x128xf32>
    %734 = arith.mulf %272, %733 : vector<16x128xf32>
    %735 = arith.addf %731, %734 : vector<16x128xf32>
    %c116 = arith.constant 116 : index
    %736 = memref.load %arg5[%c116] : memref<320xf32, #tpu.memory_space<smem>>
    %737 = vector.broadcast %736 : f32 to vector<16x128xf32>
    %738 = arith.mulf %293, %737 : vector<16x128xf32>
    %739 = arith.addf %735, %738 : vector<16x128xf32>
    %c1_i32_135 = arith.constant 1 : i32
    %740 = tpu.dynamic_rotate %739 by %c1_i32_135 dim 1 : vector<16x128xf32>, i32 -> vector<16x128xf32>
    %cst_136 = arith.constant 0.000000e+00 : f32
    %741 = vector.broadcast %cst_136 : f32 to vector<16x128xf32>
    %742 = arith.select %6, %740, %741 : vector<16x128xi1>, vector<16x128xf32>
    %743 = arith.addf %708, %742 : vector<16x128xf32>
    %c82 = arith.constant 82 : index
    %744 = memref.load %arg5[%c82] : memref<320xf32, #tpu.memory_space<smem>>
    %745 = vector.broadcast %744 : f32 to vector<16x128xf32>
    %746 = arith.mulf %146, %745 : vector<16x128xf32>
    %c87 = arith.constant 87 : index
    %747 = memref.load %arg5[%c87] : memref<320xf32, #tpu.memory_space<smem>>
    %748 = vector.broadcast %747 : f32 to vector<16x128xf32>
    %749 = arith.mulf %167, %748 : vector<16x128xf32>
    %750 = arith.addf %746, %749 : vector<16x128xf32>
    %c92 = arith.constant 92 : index
    %751 = memref.load %arg5[%c92] : memref<320xf32, #tpu.memory_space<smem>>
    %752 = vector.broadcast %751 : f32 to vector<16x128xf32>
    %753 = arith.mulf %188, %752 : vector<16x128xf32>
    %754 = arith.addf %750, %753 : vector<16x128xf32>
    %c97 = arith.constant 97 : index
    %755 = memref.load %arg5[%c97] : memref<320xf32, #tpu.memory_space<smem>>
    %756 = vector.broadcast %755 : f32 to vector<16x128xf32>
    %757 = arith.mulf %209, %756 : vector<16x128xf32>
    %758 = arith.addf %754, %757 : vector<16x128xf32>
    %c102 = arith.constant 102 : index
    %759 = memref.load %arg5[%c102] : memref<320xf32, #tpu.memory_space<smem>>
    %760 = vector.broadcast %759 : f32 to vector<16x128xf32>
    %761 = arith.mulf %230, %760 : vector<16x128xf32>
    %762 = arith.addf %758, %761 : vector<16x128xf32>
    %c107 = arith.constant 107 : index
    %763 = memref.load %arg5[%c107] : memref<320xf32, #tpu.memory_space<smem>>
    %764 = vector.broadcast %763 : f32 to vector<16x128xf32>
    %765 = arith.mulf %251, %764 : vector<16x128xf32>
    %766 = arith.addf %762, %765 : vector<16x128xf32>
    %c112 = arith.constant 112 : index
    %767 = memref.load %arg5[%c112] : memref<320xf32, #tpu.memory_space<smem>>
    %768 = vector.broadcast %767 : f32 to vector<16x128xf32>
    %769 = arith.mulf %272, %768 : vector<16x128xf32>
    %770 = arith.addf %766, %769 : vector<16x128xf32>
    %c117 = arith.constant 117 : index
    %771 = memref.load %arg5[%c117] : memref<320xf32, #tpu.memory_space<smem>>
    %772 = vector.broadcast %771 : f32 to vector<16x128xf32>
    %773 = arith.mulf %293, %772 : vector<16x128xf32>
    %774 = arith.addf %770, %773 : vector<16x128xf32>
    %775 = arith.addf %743, %774 : vector<16x128xf32>
    %c83 = arith.constant 83 : index
    %776 = memref.load %arg5[%c83] : memref<320xf32, #tpu.memory_space<smem>>
    %777 = vector.broadcast %776 : f32 to vector<16x128xf32>
    %778 = arith.mulf %146, %777 : vector<16x128xf32>
    %c88 = arith.constant 88 : index
    %779 = memref.load %arg5[%c88] : memref<320xf32, #tpu.memory_space<smem>>
    %780 = vector.broadcast %779 : f32 to vector<16x128xf32>
    %781 = arith.mulf %167, %780 : vector<16x128xf32>
    %782 = arith.addf %778, %781 : vector<16x128xf32>
    %c93 = arith.constant 93 : index
    %783 = memref.load %arg5[%c93] : memref<320xf32, #tpu.memory_space<smem>>
    %784 = vector.broadcast %783 : f32 to vector<16x128xf32>
    %785 = arith.mulf %188, %784 : vector<16x128xf32>
    %786 = arith.addf %782, %785 : vector<16x128xf32>
    %c98 = arith.constant 98 : index
    %787 = memref.load %arg5[%c98] : memref<320xf32, #tpu.memory_space<smem>>
    %788 = vector.broadcast %787 : f32 to vector<16x128xf32>
    %789 = arith.mulf %209, %788 : vector<16x128xf32>
    %790 = arith.addf %786, %789 : vector<16x128xf32>
    %c103 = arith.constant 103 : index
    %791 = memref.load %arg5[%c103] : memref<320xf32, #tpu.memory_space<smem>>
    %792 = vector.broadcast %791 : f32 to vector<16x128xf32>
    %793 = arith.mulf %230, %792 : vector<16x128xf32>
    %794 = arith.addf %790, %793 : vector<16x128xf32>
    %c108 = arith.constant 108 : index
    %795 = memref.load %arg5[%c108] : memref<320xf32, #tpu.memory_space<smem>>
    %796 = vector.broadcast %795 : f32 to vector<16x128xf32>
    %797 = arith.mulf %251, %796 : vector<16x128xf32>
    %798 = arith.addf %794, %797 : vector<16x128xf32>
    %c113 = arith.constant 113 : index
    %799 = memref.load %arg5[%c113] : memref<320xf32, #tpu.memory_space<smem>>
    %800 = vector.broadcast %799 : f32 to vector<16x128xf32>
    %801 = arith.mulf %272, %800 : vector<16x128xf32>
    %802 = arith.addf %798, %801 : vector<16x128xf32>
    %c118 = arith.constant 118 : index
    %803 = memref.load %arg5[%c118] : memref<320xf32, #tpu.memory_space<smem>>
    %804 = vector.broadcast %803 : f32 to vector<16x128xf32>
    %805 = arith.mulf %293, %804 : vector<16x128xf32>
    %806 = arith.addf %802, %805 : vector<16x128xf32>
    %c127_i32_137 = arith.constant 127 : i32
    %807 = tpu.dynamic_rotate %806 by %c127_i32_137 dim 1 : vector<16x128xf32>, i32 -> vector<16x128xf32>
    %cst_138 = arith.constant 0.000000e+00 : f32
    %808 = vector.broadcast %cst_138 : f32 to vector<16x128xf32>
    %809 = arith.select %2, %807, %808 : vector<16x128xi1>, vector<16x128xf32>
    %810 = arith.addf %775, %809 : vector<16x128xf32>
    %c84 = arith.constant 84 : index
    %811 = memref.load %arg5[%c84] : memref<320xf32, #tpu.memory_space<smem>>
    %812 = vector.broadcast %811 : f32 to vector<16x128xf32>
    %813 = arith.mulf %146, %812 : vector<16x128xf32>
    %c89 = arith.constant 89 : index
    %814 = memref.load %arg5[%c89] : memref<320xf32, #tpu.memory_space<smem>>
    %815 = vector.broadcast %814 : f32 to vector<16x128xf32>
    %816 = arith.mulf %167, %815 : vector<16x128xf32>
    %817 = arith.addf %813, %816 : vector<16x128xf32>
    %c94 = arith.constant 94 : index
    %818 = memref.load %arg5[%c94] : memref<320xf32, #tpu.memory_space<smem>>
    %819 = vector.broadcast %818 : f32 to vector<16x128xf32>
    %820 = arith.mulf %188, %819 : vector<16x128xf32>
    %821 = arith.addf %817, %820 : vector<16x128xf32>
    %c99 = arith.constant 99 : index
    %822 = memref.load %arg5[%c99] : memref<320xf32, #tpu.memory_space<smem>>
    %823 = vector.broadcast %822 : f32 to vector<16x128xf32>
    %824 = arith.mulf %209, %823 : vector<16x128xf32>
    %825 = arith.addf %821, %824 : vector<16x128xf32>
    %c104 = arith.constant 104 : index
    %826 = memref.load %arg5[%c104] : memref<320xf32, #tpu.memory_space<smem>>
    %827 = vector.broadcast %826 : f32 to vector<16x128xf32>
    %828 = arith.mulf %230, %827 : vector<16x128xf32>
    %829 = arith.addf %825, %828 : vector<16x128xf32>
    %c109 = arith.constant 109 : index
    %830 = memref.load %arg5[%c109] : memref<320xf32, #tpu.memory_space<smem>>
    %831 = vector.broadcast %830 : f32 to vector<16x128xf32>
    %832 = arith.mulf %251, %831 : vector<16x128xf32>
    %833 = arith.addf %829, %832 : vector<16x128xf32>
    %c114 = arith.constant 114 : index
    %834 = memref.load %arg5[%c114] : memref<320xf32, #tpu.memory_space<smem>>
    %835 = vector.broadcast %834 : f32 to vector<16x128xf32>
    %836 = arith.mulf %272, %835 : vector<16x128xf32>
    %837 = arith.addf %833, %836 : vector<16x128xf32>
    %c119 = arith.constant 119 : index
    %838 = memref.load %arg5[%c119] : memref<320xf32, #tpu.memory_space<smem>>
    %839 = vector.broadcast %838 : f32 to vector<16x128xf32>
    %840 = arith.mulf %293, %839 : vector<16x128xf32>
    %841 = arith.addf %837, %840 : vector<16x128xf32>
    %c126_i32_139 = arith.constant 126 : i32
    %842 = tpu.dynamic_rotate %841 by %c126_i32_139 dim 1 : vector<16x128xf32>, i32 -> vector<16x128xf32>
    %cst_140 = arith.constant 0.000000e+00 : f32
    %843 = vector.broadcast %cst_140 : f32 to vector<16x128xf32>
    %844 = arith.select %4, %842, %843 : vector<16x128xi1>, vector<16x128xf32>
    %845 = arith.addf %810, %844 : vector<16x128xf32>
    %846 = vector.broadcast %60 : f32 to vector<16x128xf32>
    %847 = arith.addf %845, %846 : vector<16x128xf32>
    %cst_141 = arith.constant 0.000000e+00 : f32
    %848 = vector.broadcast %cst_141 : f32 to vector<16x128xf32>
    %849 = arith.cmpf oge, %847, %848 : vector<16x128xf32>
    %850 = vector.broadcast %66 : f32 to vector<16x128xf32>
    %851 = arith.mulf %850, %847 : vector<16x128xf32>
    %852 = arith.select %849, %847, %851 : vector<16x128xi1>, vector<16x128xf32>
    %853 = vector.broadcast %77 : f32 to vector<16x128xf32>
    %854 = arith.mulf %852, %853 : vector<16x128xf32>
    %855 = arith.addf %662, %854 : vector<16x128xf32>
    %856 = vector.broadcast %78 : f32 to vector<16x128xf32>
    %857 = arith.mulf %852, %856 : vector<16x128xf32>
    %858 = arith.addf %665, %857 : vector<16x128xf32>
    %859 = vector.broadcast %79 : f32 to vector<16x128xf32>
    %860 = arith.mulf %852, %859 : vector<16x128xf32>
    %861 = arith.addf %668, %860 : vector<16x128xf32>
    %862 = vector.broadcast %80 : f32 to vector<16x128xf32>
    %863 = arith.mulf %852, %862 : vector<16x128xf32>
    %864 = arith.addf %671, %863 : vector<16x128xf32>
    %865 = vector.broadcast %81 : f32 to vector<16x128xf32>
    %866 = arith.mulf %852, %865 : vector<16x128xf32>
    %867 = arith.addf %674, %866 : vector<16x128xf32>
    %c120 = arith.constant 120 : index
    %868 = memref.load %arg5[%c120] : memref<320xf32, #tpu.memory_space<smem>>
    %869 = vector.broadcast %868 : f32 to vector<16x128xf32>
    %870 = arith.mulf %146, %869 : vector<16x128xf32>
    %c125 = arith.constant 125 : index
    %871 = memref.load %arg5[%c125] : memref<320xf32, #tpu.memory_space<smem>>
    %872 = vector.broadcast %871 : f32 to vector<16x128xf32>
    %873 = arith.mulf %167, %872 : vector<16x128xf32>
    %874 = arith.addf %870, %873 : vector<16x128xf32>
    %c130 = arith.constant 130 : index
    %875 = memref.load %arg5[%c130] : memref<320xf32, #tpu.memory_space<smem>>
    %876 = vector.broadcast %875 : f32 to vector<16x128xf32>
    %877 = arith.mulf %188, %876 : vector<16x128xf32>
    %878 = arith.addf %874, %877 : vector<16x128xf32>
    %c135 = arith.constant 135 : index
    %879 = memref.load %arg5[%c135] : memref<320xf32, #tpu.memory_space<smem>>
    %880 = vector.broadcast %879 : f32 to vector<16x128xf32>
    %881 = arith.mulf %209, %880 : vector<16x128xf32>
    %882 = arith.addf %878, %881 : vector<16x128xf32>
    %c140 = arith.constant 140 : index
    %883 = memref.load %arg5[%c140] : memref<320xf32, #tpu.memory_space<smem>>
    %884 = vector.broadcast %883 : f32 to vector<16x128xf32>
    %885 = arith.mulf %230, %884 : vector<16x128xf32>
    %886 = arith.addf %882, %885 : vector<16x128xf32>
    %c145 = arith.constant 145 : index
    %887 = memref.load %arg5[%c145] : memref<320xf32, #tpu.memory_space<smem>>
    %888 = vector.broadcast %887 : f32 to vector<16x128xf32>
    %889 = arith.mulf %251, %888 : vector<16x128xf32>
    %890 = arith.addf %886, %889 : vector<16x128xf32>
    %c150 = arith.constant 150 : index
    %891 = memref.load %arg5[%c150] : memref<320xf32, #tpu.memory_space<smem>>
    %892 = vector.broadcast %891 : f32 to vector<16x128xf32>
    %893 = arith.mulf %272, %892 : vector<16x128xf32>
    %894 = arith.addf %890, %893 : vector<16x128xf32>
    %c155 = arith.constant 155 : index
    %895 = memref.load %arg5[%c155] : memref<320xf32, #tpu.memory_space<smem>>
    %896 = vector.broadcast %895 : f32 to vector<16x128xf32>
    %897 = arith.mulf %293, %896 : vector<16x128xf32>
    %898 = arith.addf %894, %897 : vector<16x128xf32>
    %c2_i32_142 = arith.constant 2 : i32
    %899 = tpu.dynamic_rotate %898 by %c2_i32_142 dim 1 : vector<16x128xf32>, i32 -> vector<16x128xf32>
    %cst_143 = arith.constant 0.000000e+00 : f32
    %900 = vector.broadcast %cst_143 : f32 to vector<16x128xf32>
    %901 = arith.select %8, %899, %900 : vector<16x128xi1>, vector<16x128xf32>
    %c121 = arith.constant 121 : index
    %902 = memref.load %arg5[%c121] : memref<320xf32, #tpu.memory_space<smem>>
    %903 = vector.broadcast %902 : f32 to vector<16x128xf32>
    %904 = arith.mulf %146, %903 : vector<16x128xf32>
    %c126 = arith.constant 126 : index
    %905 = memref.load %arg5[%c126] : memref<320xf32, #tpu.memory_space<smem>>
    %906 = vector.broadcast %905 : f32 to vector<16x128xf32>
    %907 = arith.mulf %167, %906 : vector<16x128xf32>
    %908 = arith.addf %904, %907 : vector<16x128xf32>
    %c131 = arith.constant 131 : index
    %909 = memref.load %arg5[%c131] : memref<320xf32, #tpu.memory_space<smem>>
    %910 = vector.broadcast %909 : f32 to vector<16x128xf32>
    %911 = arith.mulf %188, %910 : vector<16x128xf32>
    %912 = arith.addf %908, %911 : vector<16x128xf32>
    %c136 = arith.constant 136 : index
    %913 = memref.load %arg5[%c136] : memref<320xf32, #tpu.memory_space<smem>>
    %914 = vector.broadcast %913 : f32 to vector<16x128xf32>
    %915 = arith.mulf %209, %914 : vector<16x128xf32>
    %916 = arith.addf %912, %915 : vector<16x128xf32>
    %c141 = arith.constant 141 : index
    %917 = memref.load %arg5[%c141] : memref<320xf32, #tpu.memory_space<smem>>
    %918 = vector.broadcast %917 : f32 to vector<16x128xf32>
    %919 = arith.mulf %230, %918 : vector<16x128xf32>
    %920 = arith.addf %916, %919 : vector<16x128xf32>
    %c146 = arith.constant 146 : index
    %921 = memref.load %arg5[%c146] : memref<320xf32, #tpu.memory_space<smem>>
    %922 = vector.broadcast %921 : f32 to vector<16x128xf32>
    %923 = arith.mulf %251, %922 : vector<16x128xf32>
    %924 = arith.addf %920, %923 : vector<16x128xf32>
    %c151 = arith.constant 151 : index
    %925 = memref.load %arg5[%c151] : memref<320xf32, #tpu.memory_space<smem>>
    %926 = vector.broadcast %925 : f32 to vector<16x128xf32>
    %927 = arith.mulf %272, %926 : vector<16x128xf32>
    %928 = arith.addf %924, %927 : vector<16x128xf32>
    %c156 = arith.constant 156 : index
    %929 = memref.load %arg5[%c156] : memref<320xf32, #tpu.memory_space<smem>>
    %930 = vector.broadcast %929 : f32 to vector<16x128xf32>
    %931 = arith.mulf %293, %930 : vector<16x128xf32>
    %932 = arith.addf %928, %931 : vector<16x128xf32>
    %c1_i32_144 = arith.constant 1 : i32
    %933 = tpu.dynamic_rotate %932 by %c1_i32_144 dim 1 : vector<16x128xf32>, i32 -> vector<16x128xf32>
    %cst_145 = arith.constant 0.000000e+00 : f32
    %934 = vector.broadcast %cst_145 : f32 to vector<16x128xf32>
    %935 = arith.select %6, %933, %934 : vector<16x128xi1>, vector<16x128xf32>
    %936 = arith.addf %901, %935 : vector<16x128xf32>
    %c122 = arith.constant 122 : index
    %937 = memref.load %arg5[%c122] : memref<320xf32, #tpu.memory_space<smem>>
    %938 = vector.broadcast %937 : f32 to vector<16x128xf32>
    %939 = arith.mulf %146, %938 : vector<16x128xf32>
    %c127 = arith.constant 127 : index
    %940 = memref.load %arg5[%c127] : memref<320xf32, #tpu.memory_space<smem>>
    %941 = vector.broadcast %940 : f32 to vector<16x128xf32>
    %942 = arith.mulf %167, %941 : vector<16x128xf32>
    %943 = arith.addf %939, %942 : vector<16x128xf32>
    %c132 = arith.constant 132 : index
    %944 = memref.load %arg5[%c132] : memref<320xf32, #tpu.memory_space<smem>>
    %945 = vector.broadcast %944 : f32 to vector<16x128xf32>
    %946 = arith.mulf %188, %945 : vector<16x128xf32>
    %947 = arith.addf %943, %946 : vector<16x128xf32>
    %c137 = arith.constant 137 : index
    %948 = memref.load %arg5[%c137] : memref<320xf32, #tpu.memory_space<smem>>
    %949 = vector.broadcast %948 : f32 to vector<16x128xf32>
    %950 = arith.mulf %209, %949 : vector<16x128xf32>
    %951 = arith.addf %947, %950 : vector<16x128xf32>
    %c142 = arith.constant 142 : index
    %952 = memref.load %arg5[%c142] : memref<320xf32, #tpu.memory_space<smem>>
    %953 = vector.broadcast %952 : f32 to vector<16x128xf32>
    %954 = arith.mulf %230, %953 : vector<16x128xf32>
    %955 = arith.addf %951, %954 : vector<16x128xf32>
    %c147 = arith.constant 147 : index
    %956 = memref.load %arg5[%c147] : memref<320xf32, #tpu.memory_space<smem>>
    %957 = vector.broadcast %956 : f32 to vector<16x128xf32>
    %958 = arith.mulf %251, %957 : vector<16x128xf32>
    %959 = arith.addf %955, %958 : vector<16x128xf32>
    %c152 = arith.constant 152 : index
    %960 = memref.load %arg5[%c152] : memref<320xf32, #tpu.memory_space<smem>>
    %961 = vector.broadcast %960 : f32 to vector<16x128xf32>
    %962 = arith.mulf %272, %961 : vector<16x128xf32>
    %963 = arith.addf %959, %962 : vector<16x128xf32>
    %c157 = arith.constant 157 : index
    %964 = memref.load %arg5[%c157] : memref<320xf32, #tpu.memory_space<smem>>
    %965 = vector.broadcast %964 : f32 to vector<16x128xf32>
    %966 = arith.mulf %293, %965 : vector<16x128xf32>
    %967 = arith.addf %963, %966 : vector<16x128xf32>
    %968 = arith.addf %936, %967 : vector<16x128xf32>
    %c123 = arith.constant 123 : index
    %969 = memref.load %arg5[%c123] : memref<320xf32, #tpu.memory_space<smem>>
    %970 = vector.broadcast %969 : f32 to vector<16x128xf32>
    %971 = arith.mulf %146, %970 : vector<16x128xf32>
    %c128 = arith.constant 128 : index
    %972 = memref.load %arg5[%c128] : memref<320xf32, #tpu.memory_space<smem>>
    %973 = vector.broadcast %972 : f32 to vector<16x128xf32>
    %974 = arith.mulf %167, %973 : vector<16x128xf32>
    %975 = arith.addf %971, %974 : vector<16x128xf32>
    %c133 = arith.constant 133 : index
    %976 = memref.load %arg5[%c133] : memref<320xf32, #tpu.memory_space<smem>>
    %977 = vector.broadcast %976 : f32 to vector<16x128xf32>
    %978 = arith.mulf %188, %977 : vector<16x128xf32>
    %979 = arith.addf %975, %978 : vector<16x128xf32>
    %c138 = arith.constant 138 : index
    %980 = memref.load %arg5[%c138] : memref<320xf32, #tpu.memory_space<smem>>
    %981 = vector.broadcast %980 : f32 to vector<16x128xf32>
    %982 = arith.mulf %209, %981 : vector<16x128xf32>
    %983 = arith.addf %979, %982 : vector<16x128xf32>
    %c143 = arith.constant 143 : index
    %984 = memref.load %arg5[%c143] : memref<320xf32, #tpu.memory_space<smem>>
    %985 = vector.broadcast %984 : f32 to vector<16x128xf32>
    %986 = arith.mulf %230, %985 : vector<16x128xf32>
    %987 = arith.addf %983, %986 : vector<16x128xf32>
    %c148 = arith.constant 148 : index
    %988 = memref.load %arg5[%c148] : memref<320xf32, #tpu.memory_space<smem>>
    %989 = vector.broadcast %988 : f32 to vector<16x128xf32>
    %990 = arith.mulf %251, %989 : vector<16x128xf32>
    %991 = arith.addf %987, %990 : vector<16x128xf32>
    %c153 = arith.constant 153 : index
    %992 = memref.load %arg5[%c153] : memref<320xf32, #tpu.memory_space<smem>>
    %993 = vector.broadcast %992 : f32 to vector<16x128xf32>
    %994 = arith.mulf %272, %993 : vector<16x128xf32>
    %995 = arith.addf %991, %994 : vector<16x128xf32>
    %c158 = arith.constant 158 : index
    %996 = memref.load %arg5[%c158] : memref<320xf32, #tpu.memory_space<smem>>
    %997 = vector.broadcast %996 : f32 to vector<16x128xf32>
    %998 = arith.mulf %293, %997 : vector<16x128xf32>
    %999 = arith.addf %995, %998 : vector<16x128xf32>
    %c127_i32_146 = arith.constant 127 : i32
    %1000 = tpu.dynamic_rotate %999 by %c127_i32_146 dim 1 : vector<16x128xf32>, i32 -> vector<16x128xf32>
    %cst_147 = arith.constant 0.000000e+00 : f32
    %1001 = vector.broadcast %cst_147 : f32 to vector<16x128xf32>
    %1002 = arith.select %2, %1000, %1001 : vector<16x128xi1>, vector<16x128xf32>
    %1003 = arith.addf %968, %1002 : vector<16x128xf32>
    %c124 = arith.constant 124 : index
    %1004 = memref.load %arg5[%c124] : memref<320xf32, #tpu.memory_space<smem>>
    %1005 = vector.broadcast %1004 : f32 to vector<16x128xf32>
    %1006 = arith.mulf %146, %1005 : vector<16x128xf32>
    %c129 = arith.constant 129 : index
    %1007 = memref.load %arg5[%c129] : memref<320xf32, #tpu.memory_space<smem>>
    %1008 = vector.broadcast %1007 : f32 to vector<16x128xf32>
    %1009 = arith.mulf %167, %1008 : vector<16x128xf32>
    %1010 = arith.addf %1006, %1009 : vector<16x128xf32>
    %c134 = arith.constant 134 : index
    %1011 = memref.load %arg5[%c134] : memref<320xf32, #tpu.memory_space<smem>>
    %1012 = vector.broadcast %1011 : f32 to vector<16x128xf32>
    %1013 = arith.mulf %188, %1012 : vector<16x128xf32>
    %1014 = arith.addf %1010, %1013 : vector<16x128xf32>
    %c139 = arith.constant 139 : index
    %1015 = memref.load %arg5[%c139] : memref<320xf32, #tpu.memory_space<smem>>
    %1016 = vector.broadcast %1015 : f32 to vector<16x128xf32>
    %1017 = arith.mulf %209, %1016 : vector<16x128xf32>
    %1018 = arith.addf %1014, %1017 : vector<16x128xf32>
    %c144 = arith.constant 144 : index
    %1019 = memref.load %arg5[%c144] : memref<320xf32, #tpu.memory_space<smem>>
    %1020 = vector.broadcast %1019 : f32 to vector<16x128xf32>
    %1021 = arith.mulf %230, %1020 : vector<16x128xf32>
    %1022 = arith.addf %1018, %1021 : vector<16x128xf32>
    %c149 = arith.constant 149 : index
    %1023 = memref.load %arg5[%c149] : memref<320xf32, #tpu.memory_space<smem>>
    %1024 = vector.broadcast %1023 : f32 to vector<16x128xf32>
    %1025 = arith.mulf %251, %1024 : vector<16x128xf32>
    %1026 = arith.addf %1022, %1025 : vector<16x128xf32>
    %c154 = arith.constant 154 : index
    %1027 = memref.load %arg5[%c154] : memref<320xf32, #tpu.memory_space<smem>>
    %1028 = vector.broadcast %1027 : f32 to vector<16x128xf32>
    %1029 = arith.mulf %272, %1028 : vector<16x128xf32>
    %1030 = arith.addf %1026, %1029 : vector<16x128xf32>
    %c159 = arith.constant 159 : index
    %1031 = memref.load %arg5[%c159] : memref<320xf32, #tpu.memory_space<smem>>
    %1032 = vector.broadcast %1031 : f32 to vector<16x128xf32>
    %1033 = arith.mulf %293, %1032 : vector<16x128xf32>
    %1034 = arith.addf %1030, %1033 : vector<16x128xf32>
    %c126_i32_148 = arith.constant 126 : i32
    %1035 = tpu.dynamic_rotate %1034 by %c126_i32_148 dim 1 : vector<16x128xf32>, i32 -> vector<16x128xf32>
    %cst_149 = arith.constant 0.000000e+00 : f32
    %1036 = vector.broadcast %cst_149 : f32 to vector<16x128xf32>
    %1037 = arith.select %4, %1035, %1036 : vector<16x128xi1>, vector<16x128xf32>
    %1038 = arith.addf %1003, %1037 : vector<16x128xf32>
    %1039 = vector.broadcast %61 : f32 to vector<16x128xf32>
    %1040 = arith.addf %1038, %1039 : vector<16x128xf32>
    %cst_150 = arith.constant 0.000000e+00 : f32
    %1041 = vector.broadcast %cst_150 : f32 to vector<16x128xf32>
    %1042 = arith.cmpf oge, %1040, %1041 : vector<16x128xf32>
    %1043 = vector.broadcast %66 : f32 to vector<16x128xf32>
    %1044 = arith.mulf %1043, %1040 : vector<16x128xf32>
    %1045 = arith.select %1042, %1040, %1044 : vector<16x128xi1>, vector<16x128xf32>
    %1046 = vector.broadcast %82 : f32 to vector<16x128xf32>
    %1047 = arith.mulf %1045, %1046 : vector<16x128xf32>
    %1048 = arith.addf %855, %1047 : vector<16x128xf32>
    %1049 = vector.broadcast %83 : f32 to vector<16x128xf32>
    %1050 = arith.mulf %1045, %1049 : vector<16x128xf32>
    %1051 = arith.addf %858, %1050 : vector<16x128xf32>
    %1052 = vector.broadcast %84 : f32 to vector<16x128xf32>
    %1053 = arith.mulf %1045, %1052 : vector<16x128xf32>
    %1054 = arith.addf %861, %1053 : vector<16x128xf32>
    %1055 = vector.broadcast %85 : f32 to vector<16x128xf32>
    %1056 = arith.mulf %1045, %1055 : vector<16x128xf32>
    %1057 = arith.addf %864, %1056 : vector<16x128xf32>
    %1058 = vector.broadcast %86 : f32 to vector<16x128xf32>
    %1059 = arith.mulf %1045, %1058 : vector<16x128xf32>
    %1060 = arith.addf %867, %1059 : vector<16x128xf32>
    %c160 = arith.constant 160 : index
    %1061 = memref.load %arg5[%c160] : memref<320xf32, #tpu.memory_space<smem>>
    %1062 = vector.broadcast %1061 : f32 to vector<16x128xf32>
    %1063 = arith.mulf %146, %1062 : vector<16x128xf32>
    %c165 = arith.constant 165 : index
    %1064 = memref.load %arg5[%c165] : memref<320xf32, #tpu.memory_space<smem>>
    %1065 = vector.broadcast %1064 : f32 to vector<16x128xf32>
    %1066 = arith.mulf %167, %1065 : vector<16x128xf32>
    %1067 = arith.addf %1063, %1066 : vector<16x128xf32>
    %c170 = arith.constant 170 : index
    %1068 = memref.load %arg5[%c170] : memref<320xf32, #tpu.memory_space<smem>>
    %1069 = vector.broadcast %1068 : f32 to vector<16x128xf32>
    %1070 = arith.mulf %188, %1069 : vector<16x128xf32>
    %1071 = arith.addf %1067, %1070 : vector<16x128xf32>
    %c175 = arith.constant 175 : index
    %1072 = memref.load %arg5[%c175] : memref<320xf32, #tpu.memory_space<smem>>
    %1073 = vector.broadcast %1072 : f32 to vector<16x128xf32>
    %1074 = arith.mulf %209, %1073 : vector<16x128xf32>
    %1075 = arith.addf %1071, %1074 : vector<16x128xf32>
    %c180 = arith.constant 180 : index
    %1076 = memref.load %arg5[%c180] : memref<320xf32, #tpu.memory_space<smem>>
    %1077 = vector.broadcast %1076 : f32 to vector<16x128xf32>
    %1078 = arith.mulf %230, %1077 : vector<16x128xf32>
    %1079 = arith.addf %1075, %1078 : vector<16x128xf32>
    %c185 = arith.constant 185 : index
    %1080 = memref.load %arg5[%c185] : memref<320xf32, #tpu.memory_space<smem>>
    %1081 = vector.broadcast %1080 : f32 to vector<16x128xf32>
    %1082 = arith.mulf %251, %1081 : vector<16x128xf32>
    %1083 = arith.addf %1079, %1082 : vector<16x128xf32>
    %c190 = arith.constant 190 : index
    %1084 = memref.load %arg5[%c190] : memref<320xf32, #tpu.memory_space<smem>>
    %1085 = vector.broadcast %1084 : f32 to vector<16x128xf32>
    %1086 = arith.mulf %272, %1085 : vector<16x128xf32>
    %1087 = arith.addf %1083, %1086 : vector<16x128xf32>
    %c195 = arith.constant 195 : index
    %1088 = memref.load %arg5[%c195] : memref<320xf32, #tpu.memory_space<smem>>
    %1089 = vector.broadcast %1088 : f32 to vector<16x128xf32>
    %1090 = arith.mulf %293, %1089 : vector<16x128xf32>
    %1091 = arith.addf %1087, %1090 : vector<16x128xf32>
    %c2_i32_151 = arith.constant 2 : i32
    %1092 = tpu.dynamic_rotate %1091 by %c2_i32_151 dim 1 : vector<16x128xf32>, i32 -> vector<16x128xf32>
    %cst_152 = arith.constant 0.000000e+00 : f32
    %1093 = vector.broadcast %cst_152 : f32 to vector<16x128xf32>
    %1094 = arith.select %8, %1092, %1093 : vector<16x128xi1>, vector<16x128xf32>
    %c161 = arith.constant 161 : index
    %1095 = memref.load %arg5[%c161] : memref<320xf32, #tpu.memory_space<smem>>
    %1096 = vector.broadcast %1095 : f32 to vector<16x128xf32>
    %1097 = arith.mulf %146, %1096 : vector<16x128xf32>
    %c166 = arith.constant 166 : index
    %1098 = memref.load %arg5[%c166] : memref<320xf32, #tpu.memory_space<smem>>
    %1099 = vector.broadcast %1098 : f32 to vector<16x128xf32>
    %1100 = arith.mulf %167, %1099 : vector<16x128xf32>
    %1101 = arith.addf %1097, %1100 : vector<16x128xf32>
    %c171 = arith.constant 171 : index
    %1102 = memref.load %arg5[%c171] : memref<320xf32, #tpu.memory_space<smem>>
    %1103 = vector.broadcast %1102 : f32 to vector<16x128xf32>
    %1104 = arith.mulf %188, %1103 : vector<16x128xf32>
    %1105 = arith.addf %1101, %1104 : vector<16x128xf32>
    %c176 = arith.constant 176 : index
    %1106 = memref.load %arg5[%c176] : memref<320xf32, #tpu.memory_space<smem>>
    %1107 = vector.broadcast %1106 : f32 to vector<16x128xf32>
    %1108 = arith.mulf %209, %1107 : vector<16x128xf32>
    %1109 = arith.addf %1105, %1108 : vector<16x128xf32>
    %c181 = arith.constant 181 : index
    %1110 = memref.load %arg5[%c181] : memref<320xf32, #tpu.memory_space<smem>>
    %1111 = vector.broadcast %1110 : f32 to vector<16x128xf32>
    %1112 = arith.mulf %230, %1111 : vector<16x128xf32>
    %1113 = arith.addf %1109, %1112 : vector<16x128xf32>
    %c186 = arith.constant 186 : index
    %1114 = memref.load %arg5[%c186] : memref<320xf32, #tpu.memory_space<smem>>
    %1115 = vector.broadcast %1114 : f32 to vector<16x128xf32>
    %1116 = arith.mulf %251, %1115 : vector<16x128xf32>
    %1117 = arith.addf %1113, %1116 : vector<16x128xf32>
    %c191 = arith.constant 191 : index
    %1118 = memref.load %arg5[%c191] : memref<320xf32, #tpu.memory_space<smem>>
    %1119 = vector.broadcast %1118 : f32 to vector<16x128xf32>
    %1120 = arith.mulf %272, %1119 : vector<16x128xf32>
    %1121 = arith.addf %1117, %1120 : vector<16x128xf32>
    %c196 = arith.constant 196 : index
    %1122 = memref.load %arg5[%c196] : memref<320xf32, #tpu.memory_space<smem>>
    %1123 = vector.broadcast %1122 : f32 to vector<16x128xf32>
    %1124 = arith.mulf %293, %1123 : vector<16x128xf32>
    %1125 = arith.addf %1121, %1124 : vector<16x128xf32>
    %c1_i32_153 = arith.constant 1 : i32
    %1126 = tpu.dynamic_rotate %1125 by %c1_i32_153 dim 1 : vector<16x128xf32>, i32 -> vector<16x128xf32>
    %cst_154 = arith.constant 0.000000e+00 : f32
    %1127 = vector.broadcast %cst_154 : f32 to vector<16x128xf32>
    %1128 = arith.select %6, %1126, %1127 : vector<16x128xi1>, vector<16x128xf32>
    %1129 = arith.addf %1094, %1128 : vector<16x128xf32>
    %c162 = arith.constant 162 : index
    %1130 = memref.load %arg5[%c162] : memref<320xf32, #tpu.memory_space<smem>>
    %1131 = vector.broadcast %1130 : f32 to vector<16x128xf32>
    %1132 = arith.mulf %146, %1131 : vector<16x128xf32>
    %c167 = arith.constant 167 : index
    %1133 = memref.load %arg5[%c167] : memref<320xf32, #tpu.memory_space<smem>>
    %1134 = vector.broadcast %1133 : f32 to vector<16x128xf32>
    %1135 = arith.mulf %167, %1134 : vector<16x128xf32>
    %1136 = arith.addf %1132, %1135 : vector<16x128xf32>
    %c172 = arith.constant 172 : index
    %1137 = memref.load %arg5[%c172] : memref<320xf32, #tpu.memory_space<smem>>
    %1138 = vector.broadcast %1137 : f32 to vector<16x128xf32>
    %1139 = arith.mulf %188, %1138 : vector<16x128xf32>
    %1140 = arith.addf %1136, %1139 : vector<16x128xf32>
    %c177 = arith.constant 177 : index
    %1141 = memref.load %arg5[%c177] : memref<320xf32, #tpu.memory_space<smem>>
    %1142 = vector.broadcast %1141 : f32 to vector<16x128xf32>
    %1143 = arith.mulf %209, %1142 : vector<16x128xf32>
    %1144 = arith.addf %1140, %1143 : vector<16x128xf32>
    %c182 = arith.constant 182 : index
    %1145 = memref.load %arg5[%c182] : memref<320xf32, #tpu.memory_space<smem>>
    %1146 = vector.broadcast %1145 : f32 to vector<16x128xf32>
    %1147 = arith.mulf %230, %1146 : vector<16x128xf32>
    %1148 = arith.addf %1144, %1147 : vector<16x128xf32>
    %c187 = arith.constant 187 : index
    %1149 = memref.load %arg5[%c187] : memref<320xf32, #tpu.memory_space<smem>>
    %1150 = vector.broadcast %1149 : f32 to vector<16x128xf32>
    %1151 = arith.mulf %251, %1150 : vector<16x128xf32>
    %1152 = arith.addf %1148, %1151 : vector<16x128xf32>
    %c192 = arith.constant 192 : index
    %1153 = memref.load %arg5[%c192] : memref<320xf32, #tpu.memory_space<smem>>
    %1154 = vector.broadcast %1153 : f32 to vector<16x128xf32>
    %1155 = arith.mulf %272, %1154 : vector<16x128xf32>
    %1156 = arith.addf %1152, %1155 : vector<16x128xf32>
    %c197 = arith.constant 197 : index
    %1157 = memref.load %arg5[%c197] : memref<320xf32, #tpu.memory_space<smem>>
    %1158 = vector.broadcast %1157 : f32 to vector<16x128xf32>
    %1159 = arith.mulf %293, %1158 : vector<16x128xf32>
    %1160 = arith.addf %1156, %1159 : vector<16x128xf32>
    %1161 = arith.addf %1129, %1160 : vector<16x128xf32>
    %c163 = arith.constant 163 : index
    %1162 = memref.load %arg5[%c163] : memref<320xf32, #tpu.memory_space<smem>>
    %1163 = vector.broadcast %1162 : f32 to vector<16x128xf32>
    %1164 = arith.mulf %146, %1163 : vector<16x128xf32>
    %c168 = arith.constant 168 : index
    %1165 = memref.load %arg5[%c168] : memref<320xf32, #tpu.memory_space<smem>>
    %1166 = vector.broadcast %1165 : f32 to vector<16x128xf32>
    %1167 = arith.mulf %167, %1166 : vector<16x128xf32>
    %1168 = arith.addf %1164, %1167 : vector<16x128xf32>
    %c173 = arith.constant 173 : index
    %1169 = memref.load %arg5[%c173] : memref<320xf32, #tpu.memory_space<smem>>
    %1170 = vector.broadcast %1169 : f32 to vector<16x128xf32>
    %1171 = arith.mulf %188, %1170 : vector<16x128xf32>
    %1172 = arith.addf %1168, %1171 : vector<16x128xf32>
    %c178 = arith.constant 178 : index
    %1173 = memref.load %arg5[%c178] : memref<320xf32, #tpu.memory_space<smem>>
    %1174 = vector.broadcast %1173 : f32 to vector<16x128xf32>
    %1175 = arith.mulf %209, %1174 : vector<16x128xf32>
    %1176 = arith.addf %1172, %1175 : vector<16x128xf32>
    %c183 = arith.constant 183 : index
    %1177 = memref.load %arg5[%c183] : memref<320xf32, #tpu.memory_space<smem>>
    %1178 = vector.broadcast %1177 : f32 to vector<16x128xf32>
    %1179 = arith.mulf %230, %1178 : vector<16x128xf32>
    %1180 = arith.addf %1176, %1179 : vector<16x128xf32>
    %c188 = arith.constant 188 : index
    %1181 = memref.load %arg5[%c188] : memref<320xf32, #tpu.memory_space<smem>>
    %1182 = vector.broadcast %1181 : f32 to vector<16x128xf32>
    %1183 = arith.mulf %251, %1182 : vector<16x128xf32>
    %1184 = arith.addf %1180, %1183 : vector<16x128xf32>
    %c193 = arith.constant 193 : index
    %1185 = memref.load %arg5[%c193] : memref<320xf32, #tpu.memory_space<smem>>
    %1186 = vector.broadcast %1185 : f32 to vector<16x128xf32>
    %1187 = arith.mulf %272, %1186 : vector<16x128xf32>
    %1188 = arith.addf %1184, %1187 : vector<16x128xf32>
    %c198 = arith.constant 198 : index
    %1189 = memref.load %arg5[%c198] : memref<320xf32, #tpu.memory_space<smem>>
    %1190 = vector.broadcast %1189 : f32 to vector<16x128xf32>
    %1191 = arith.mulf %293, %1190 : vector<16x128xf32>
    %1192 = arith.addf %1188, %1191 : vector<16x128xf32>
    %c127_i32_155 = arith.constant 127 : i32
    %1193 = tpu.dynamic_rotate %1192 by %c127_i32_155 dim 1 : vector<16x128xf32>, i32 -> vector<16x128xf32>
    %cst_156 = arith.constant 0.000000e+00 : f32
    %1194 = vector.broadcast %cst_156 : f32 to vector<16x128xf32>
    %1195 = arith.select %2, %1193, %1194 : vector<16x128xi1>, vector<16x128xf32>
    %1196 = arith.addf %1161, %1195 : vector<16x128xf32>
    %c164 = arith.constant 164 : index
    %1197 = memref.load %arg5[%c164] : memref<320xf32, #tpu.memory_space<smem>>
    %1198 = vector.broadcast %1197 : f32 to vector<16x128xf32>
    %1199 = arith.mulf %146, %1198 : vector<16x128xf32>
    %c169 = arith.constant 169 : index
    %1200 = memref.load %arg5[%c169] : memref<320xf32, #tpu.memory_space<smem>>
    %1201 = vector.broadcast %1200 : f32 to vector<16x128xf32>
    %1202 = arith.mulf %167, %1201 : vector<16x128xf32>
    %1203 = arith.addf %1199, %1202 : vector<16x128xf32>
    %c174 = arith.constant 174 : index
    %1204 = memref.load %arg5[%c174] : memref<320xf32, #tpu.memory_space<smem>>
    %1205 = vector.broadcast %1204 : f32 to vector<16x128xf32>
    %1206 = arith.mulf %188, %1205 : vector<16x128xf32>
    %1207 = arith.addf %1203, %1206 : vector<16x128xf32>
    %c179 = arith.constant 179 : index
    %1208 = memref.load %arg5[%c179] : memref<320xf32, #tpu.memory_space<smem>>
    %1209 = vector.broadcast %1208 : f32 to vector<16x128xf32>
    %1210 = arith.mulf %209, %1209 : vector<16x128xf32>
    %1211 = arith.addf %1207, %1210 : vector<16x128xf32>
    %c184 = arith.constant 184 : index
    %1212 = memref.load %arg5[%c184] : memref<320xf32, #tpu.memory_space<smem>>
    %1213 = vector.broadcast %1212 : f32 to vector<16x128xf32>
    %1214 = arith.mulf %230, %1213 : vector<16x128xf32>
    %1215 = arith.addf %1211, %1214 : vector<16x128xf32>
    %c189 = arith.constant 189 : index
    %1216 = memref.load %arg5[%c189] : memref<320xf32, #tpu.memory_space<smem>>
    %1217 = vector.broadcast %1216 : f32 to vector<16x128xf32>
    %1218 = arith.mulf %251, %1217 : vector<16x128xf32>
    %1219 = arith.addf %1215, %1218 : vector<16x128xf32>
    %c194 = arith.constant 194 : index
    %1220 = memref.load %arg5[%c194] : memref<320xf32, #tpu.memory_space<smem>>
    %1221 = vector.broadcast %1220 : f32 to vector<16x128xf32>
    %1222 = arith.mulf %272, %1221 : vector<16x128xf32>
    %1223 = arith.addf %1219, %1222 : vector<16x128xf32>
    %c199 = arith.constant 199 : index
    %1224 = memref.load %arg5[%c199] : memref<320xf32, #tpu.memory_space<smem>>
    %1225 = vector.broadcast %1224 : f32 to vector<16x128xf32>
    %1226 = arith.mulf %293, %1225 : vector<16x128xf32>
    %1227 = arith.addf %1223, %1226 : vector<16x128xf32>
    %c126_i32_157 = arith.constant 126 : i32
    %1228 = tpu.dynamic_rotate %1227 by %c126_i32_157 dim 1 : vector<16x128xf32>, i32 -> vector<16x128xf32>
    %cst_158 = arith.constant 0.000000e+00 : f32
    %1229 = vector.broadcast %cst_158 : f32 to vector<16x128xf32>
    %1230 = arith.select %4, %1228, %1229 : vector<16x128xi1>, vector<16x128xf32>
    %1231 = arith.addf %1196, %1230 : vector<16x128xf32>
    %1232 = vector.broadcast %62 : f32 to vector<16x128xf32>
    %1233 = arith.addf %1231, %1232 : vector<16x128xf32>
    %cst_159 = arith.constant 0.000000e+00 : f32
    %1234 = vector.broadcast %cst_159 : f32 to vector<16x128xf32>
    %1235 = arith.cmpf oge, %1233, %1234 : vector<16x128xf32>
    %1236 = vector.broadcast %66 : f32 to vector<16x128xf32>
    %1237 = arith.mulf %1236, %1233 : vector<16x128xf32>
    %1238 = arith.select %1235, %1233, %1237 : vector<16x128xi1>, vector<16x128xf32>
    %1239 = vector.broadcast %87 : f32 to vector<16x128xf32>
    %1240 = arith.mulf %1238, %1239 : vector<16x128xf32>
    %1241 = arith.addf %1048, %1240 : vector<16x128xf32>
    %1242 = vector.broadcast %88 : f32 to vector<16x128xf32>
    %1243 = arith.mulf %1238, %1242 : vector<16x128xf32>
    %1244 = arith.addf %1051, %1243 : vector<16x128xf32>
    %1245 = vector.broadcast %89 : f32 to vector<16x128xf32>
    %1246 = arith.mulf %1238, %1245 : vector<16x128xf32>
    %1247 = arith.addf %1054, %1246 : vector<16x128xf32>
    %1248 = vector.broadcast %90 : f32 to vector<16x128xf32>
    %1249 = arith.mulf %1238, %1248 : vector<16x128xf32>
    %1250 = arith.addf %1057, %1249 : vector<16x128xf32>
    %1251 = vector.broadcast %91 : f32 to vector<16x128xf32>
    %1252 = arith.mulf %1238, %1251 : vector<16x128xf32>
    %1253 = arith.addf %1060, %1252 : vector<16x128xf32>
    %c200 = arith.constant 200 : index
    %1254 = memref.load %arg5[%c200] : memref<320xf32, #tpu.memory_space<smem>>
    %1255 = vector.broadcast %1254 : f32 to vector<16x128xf32>
    %1256 = arith.mulf %146, %1255 : vector<16x128xf32>
    %c205 = arith.constant 205 : index
    %1257 = memref.load %arg5[%c205] : memref<320xf32, #tpu.memory_space<smem>>
    %1258 = vector.broadcast %1257 : f32 to vector<16x128xf32>
    %1259 = arith.mulf %167, %1258 : vector<16x128xf32>
    %1260 = arith.addf %1256, %1259 : vector<16x128xf32>
    %c210 = arith.constant 210 : index
    %1261 = memref.load %arg5[%c210] : memref<320xf32, #tpu.memory_space<smem>>
    %1262 = vector.broadcast %1261 : f32 to vector<16x128xf32>
    %1263 = arith.mulf %188, %1262 : vector<16x128xf32>
    %1264 = arith.addf %1260, %1263 : vector<16x128xf32>
    %c215 = arith.constant 215 : index
    %1265 = memref.load %arg5[%c215] : memref<320xf32, #tpu.memory_space<smem>>
    %1266 = vector.broadcast %1265 : f32 to vector<16x128xf32>
    %1267 = arith.mulf %209, %1266 : vector<16x128xf32>
    %1268 = arith.addf %1264, %1267 : vector<16x128xf32>
    %c220 = arith.constant 220 : index
    %1269 = memref.load %arg5[%c220] : memref<320xf32, #tpu.memory_space<smem>>
    %1270 = vector.broadcast %1269 : f32 to vector<16x128xf32>
    %1271 = arith.mulf %230, %1270 : vector<16x128xf32>
    %1272 = arith.addf %1268, %1271 : vector<16x128xf32>
    %c225 = arith.constant 225 : index
    %1273 = memref.load %arg5[%c225] : memref<320xf32, #tpu.memory_space<smem>>
    %1274 = vector.broadcast %1273 : f32 to vector<16x128xf32>
    %1275 = arith.mulf %251, %1274 : vector<16x128xf32>
    %1276 = arith.addf %1272, %1275 : vector<16x128xf32>
    %c230 = arith.constant 230 : index
    %1277 = memref.load %arg5[%c230] : memref<320xf32, #tpu.memory_space<smem>>
    %1278 = vector.broadcast %1277 : f32 to vector<16x128xf32>
    %1279 = arith.mulf %272, %1278 : vector<16x128xf32>
    %1280 = arith.addf %1276, %1279 : vector<16x128xf32>
    %c235 = arith.constant 235 : index
    %1281 = memref.load %arg5[%c235] : memref<320xf32, #tpu.memory_space<smem>>
    %1282 = vector.broadcast %1281 : f32 to vector<16x128xf32>
    %1283 = arith.mulf %293, %1282 : vector<16x128xf32>
    %1284 = arith.addf %1280, %1283 : vector<16x128xf32>
    %c2_i32_160 = arith.constant 2 : i32
    %1285 = tpu.dynamic_rotate %1284 by %c2_i32_160 dim 1 : vector<16x128xf32>, i32 -> vector<16x128xf32>
    %cst_161 = arith.constant 0.000000e+00 : f32
    %1286 = vector.broadcast %cst_161 : f32 to vector<16x128xf32>
    %1287 = arith.select %8, %1285, %1286 : vector<16x128xi1>, vector<16x128xf32>
    %c201 = arith.constant 201 : index
    %1288 = memref.load %arg5[%c201] : memref<320xf32, #tpu.memory_space<smem>>
    %1289 = vector.broadcast %1288 : f32 to vector<16x128xf32>
    %1290 = arith.mulf %146, %1289 : vector<16x128xf32>
    %c206 = arith.constant 206 : index
    %1291 = memref.load %arg5[%c206] : memref<320xf32, #tpu.memory_space<smem>>
    %1292 = vector.broadcast %1291 : f32 to vector<16x128xf32>
    %1293 = arith.mulf %167, %1292 : vector<16x128xf32>
    %1294 = arith.addf %1290, %1293 : vector<16x128xf32>
    %c211 = arith.constant 211 : index
    %1295 = memref.load %arg5[%c211] : memref<320xf32, #tpu.memory_space<smem>>
    %1296 = vector.broadcast %1295 : f32 to vector<16x128xf32>
    %1297 = arith.mulf %188, %1296 : vector<16x128xf32>
    %1298 = arith.addf %1294, %1297 : vector<16x128xf32>
    %c216 = arith.constant 216 : index
    %1299 = memref.load %arg5[%c216] : memref<320xf32, #tpu.memory_space<smem>>
    %1300 = vector.broadcast %1299 : f32 to vector<16x128xf32>
    %1301 = arith.mulf %209, %1300 : vector<16x128xf32>
    %1302 = arith.addf %1298, %1301 : vector<16x128xf32>
    %c221 = arith.constant 221 : index
    %1303 = memref.load %arg5[%c221] : memref<320xf32, #tpu.memory_space<smem>>
    %1304 = vector.broadcast %1303 : f32 to vector<16x128xf32>
    %1305 = arith.mulf %230, %1304 : vector<16x128xf32>
    %1306 = arith.addf %1302, %1305 : vector<16x128xf32>
    %c226 = arith.constant 226 : index
    %1307 = memref.load %arg5[%c226] : memref<320xf32, #tpu.memory_space<smem>>
    %1308 = vector.broadcast %1307 : f32 to vector<16x128xf32>
    %1309 = arith.mulf %251, %1308 : vector<16x128xf32>
    %1310 = arith.addf %1306, %1309 : vector<16x128xf32>
    %c231 = arith.constant 231 : index
    %1311 = memref.load %arg5[%c231] : memref<320xf32, #tpu.memory_space<smem>>
    %1312 = vector.broadcast %1311 : f32 to vector<16x128xf32>
    %1313 = arith.mulf %272, %1312 : vector<16x128xf32>
    %1314 = arith.addf %1310, %1313 : vector<16x128xf32>
    %c236 = arith.constant 236 : index
    %1315 = memref.load %arg5[%c236] : memref<320xf32, #tpu.memory_space<smem>>
    %1316 = vector.broadcast %1315 : f32 to vector<16x128xf32>
    %1317 = arith.mulf %293, %1316 : vector<16x128xf32>
    %1318 = arith.addf %1314, %1317 : vector<16x128xf32>
    %c1_i32_162 = arith.constant 1 : i32
    %1319 = tpu.dynamic_rotate %1318 by %c1_i32_162 dim 1 : vector<16x128xf32>, i32 -> vector<16x128xf32>
    %cst_163 = arith.constant 0.000000e+00 : f32
    %1320 = vector.broadcast %cst_163 : f32 to vector<16x128xf32>
    %1321 = arith.select %6, %1319, %1320 : vector<16x128xi1>, vector<16x128xf32>
    %1322 = arith.addf %1287, %1321 : vector<16x128xf32>
    %c202 = arith.constant 202 : index
    %1323 = memref.load %arg5[%c202] : memref<320xf32, #tpu.memory_space<smem>>
    %1324 = vector.broadcast %1323 : f32 to vector<16x128xf32>
    %1325 = arith.mulf %146, %1324 : vector<16x128xf32>
    %c207 = arith.constant 207 : index
    %1326 = memref.load %arg5[%c207] : memref<320xf32, #tpu.memory_space<smem>>
    %1327 = vector.broadcast %1326 : f32 to vector<16x128xf32>
    %1328 = arith.mulf %167, %1327 : vector<16x128xf32>
    %1329 = arith.addf %1325, %1328 : vector<16x128xf32>
    %c212 = arith.constant 212 : index
    %1330 = memref.load %arg5[%c212] : memref<320xf32, #tpu.memory_space<smem>>
    %1331 = vector.broadcast %1330 : f32 to vector<16x128xf32>
    %1332 = arith.mulf %188, %1331 : vector<16x128xf32>
    %1333 = arith.addf %1329, %1332 : vector<16x128xf32>
    %c217 = arith.constant 217 : index
    %1334 = memref.load %arg5[%c217] : memref<320xf32, #tpu.memory_space<smem>>
    %1335 = vector.broadcast %1334 : f32 to vector<16x128xf32>
    %1336 = arith.mulf %209, %1335 : vector<16x128xf32>
    %1337 = arith.addf %1333, %1336 : vector<16x128xf32>
    %c222 = arith.constant 222 : index
    %1338 = memref.load %arg5[%c222] : memref<320xf32, #tpu.memory_space<smem>>
    %1339 = vector.broadcast %1338 : f32 to vector<16x128xf32>
    %1340 = arith.mulf %230, %1339 : vector<16x128xf32>
    %1341 = arith.addf %1337, %1340 : vector<16x128xf32>
    %c227 = arith.constant 227 : index
    %1342 = memref.load %arg5[%c227] : memref<320xf32, #tpu.memory_space<smem>>
    %1343 = vector.broadcast %1342 : f32 to vector<16x128xf32>
    %1344 = arith.mulf %251, %1343 : vector<16x128xf32>
    %1345 = arith.addf %1341, %1344 : vector<16x128xf32>
    %c232 = arith.constant 232 : index
    %1346 = memref.load %arg5[%c232] : memref<320xf32, #tpu.memory_space<smem>>
    %1347 = vector.broadcast %1346 : f32 to vector<16x128xf32>
    %1348 = arith.mulf %272, %1347 : vector<16x128xf32>
    %1349 = arith.addf %1345, %1348 : vector<16x128xf32>
    %c237 = arith.constant 237 : index
    %1350 = memref.load %arg5[%c237] : memref<320xf32, #tpu.memory_space<smem>>
    %1351 = vector.broadcast %1350 : f32 to vector<16x128xf32>
    %1352 = arith.mulf %293, %1351 : vector<16x128xf32>
    %1353 = arith.addf %1349, %1352 : vector<16x128xf32>
    %1354 = arith.addf %1322, %1353 : vector<16x128xf32>
    %c203 = arith.constant 203 : index
    %1355 = memref.load %arg5[%c203] : memref<320xf32, #tpu.memory_space<smem>>
    %1356 = vector.broadcast %1355 : f32 to vector<16x128xf32>
    %1357 = arith.mulf %146, %1356 : vector<16x128xf32>
    %c208 = arith.constant 208 : index
    %1358 = memref.load %arg5[%c208] : memref<320xf32, #tpu.memory_space<smem>>
    %1359 = vector.broadcast %1358 : f32 to vector<16x128xf32>
    %1360 = arith.mulf %167, %1359 : vector<16x128xf32>
    %1361 = arith.addf %1357, %1360 : vector<16x128xf32>
    %c213 = arith.constant 213 : index
    %1362 = memref.load %arg5[%c213] : memref<320xf32, #tpu.memory_space<smem>>
    %1363 = vector.broadcast %1362 : f32 to vector<16x128xf32>
    %1364 = arith.mulf %188, %1363 : vector<16x128xf32>
    %1365 = arith.addf %1361, %1364 : vector<16x128xf32>
    %c218 = arith.constant 218 : index
    %1366 = memref.load %arg5[%c218] : memref<320xf32, #tpu.memory_space<smem>>
    %1367 = vector.broadcast %1366 : f32 to vector<16x128xf32>
    %1368 = arith.mulf %209, %1367 : vector<16x128xf32>
    %1369 = arith.addf %1365, %1368 : vector<16x128xf32>
    %c223 = arith.constant 223 : index
    %1370 = memref.load %arg5[%c223] : memref<320xf32, #tpu.memory_space<smem>>
    %1371 = vector.broadcast %1370 : f32 to vector<16x128xf32>
    %1372 = arith.mulf %230, %1371 : vector<16x128xf32>
    %1373 = arith.addf %1369, %1372 : vector<16x128xf32>
    %c228 = arith.constant 228 : index
    %1374 = memref.load %arg5[%c228] : memref<320xf32, #tpu.memory_space<smem>>
    %1375 = vector.broadcast %1374 : f32 to vector<16x128xf32>
    %1376 = arith.mulf %251, %1375 : vector<16x128xf32>
    %1377 = arith.addf %1373, %1376 : vector<16x128xf32>
    %c233 = arith.constant 233 : index
    %1378 = memref.load %arg5[%c233] : memref<320xf32, #tpu.memory_space<smem>>
    %1379 = vector.broadcast %1378 : f32 to vector<16x128xf32>
    %1380 = arith.mulf %272, %1379 : vector<16x128xf32>
    %1381 = arith.addf %1377, %1380 : vector<16x128xf32>
    %c238 = arith.constant 238 : index
    %1382 = memref.load %arg5[%c238] : memref<320xf32, #tpu.memory_space<smem>>
    %1383 = vector.broadcast %1382 : f32 to vector<16x128xf32>
    %1384 = arith.mulf %293, %1383 : vector<16x128xf32>
    %1385 = arith.addf %1381, %1384 : vector<16x128xf32>
    %c127_i32_164 = arith.constant 127 : i32
    %1386 = tpu.dynamic_rotate %1385 by %c127_i32_164 dim 1 : vector<16x128xf32>, i32 -> vector<16x128xf32>
    %cst_165 = arith.constant 0.000000e+00 : f32
    %1387 = vector.broadcast %cst_165 : f32 to vector<16x128xf32>
    %1388 = arith.select %2, %1386, %1387 : vector<16x128xi1>, vector<16x128xf32>
    %1389 = arith.addf %1354, %1388 : vector<16x128xf32>
    %c204 = arith.constant 204 : index
    %1390 = memref.load %arg5[%c204] : memref<320xf32, #tpu.memory_space<smem>>
    %1391 = vector.broadcast %1390 : f32 to vector<16x128xf32>
    %1392 = arith.mulf %146, %1391 : vector<16x128xf32>
    %c209 = arith.constant 209 : index
    %1393 = memref.load %arg5[%c209] : memref<320xf32, #tpu.memory_space<smem>>
    %1394 = vector.broadcast %1393 : f32 to vector<16x128xf32>
    %1395 = arith.mulf %167, %1394 : vector<16x128xf32>
    %1396 = arith.addf %1392, %1395 : vector<16x128xf32>
    %c214 = arith.constant 214 : index
    %1397 = memref.load %arg5[%c214] : memref<320xf32, #tpu.memory_space<smem>>
    %1398 = vector.broadcast %1397 : f32 to vector<16x128xf32>
    %1399 = arith.mulf %188, %1398 : vector<16x128xf32>
    %1400 = arith.addf %1396, %1399 : vector<16x128xf32>
    %c219 = arith.constant 219 : index
    %1401 = memref.load %arg5[%c219] : memref<320xf32, #tpu.memory_space<smem>>
    %1402 = vector.broadcast %1401 : f32 to vector<16x128xf32>
    %1403 = arith.mulf %209, %1402 : vector<16x128xf32>
    %1404 = arith.addf %1400, %1403 : vector<16x128xf32>
    %c224 = arith.constant 224 : index
    %1405 = memref.load %arg5[%c224] : memref<320xf32, #tpu.memory_space<smem>>
    %1406 = vector.broadcast %1405 : f32 to vector<16x128xf32>
    %1407 = arith.mulf %230, %1406 : vector<16x128xf32>
    %1408 = arith.addf %1404, %1407 : vector<16x128xf32>
    %c229 = arith.constant 229 : index
    %1409 = memref.load %arg5[%c229] : memref<320xf32, #tpu.memory_space<smem>>
    %1410 = vector.broadcast %1409 : f32 to vector<16x128xf32>
    %1411 = arith.mulf %251, %1410 : vector<16x128xf32>
    %1412 = arith.addf %1408, %1411 : vector<16x128xf32>
    %c234 = arith.constant 234 : index
    %1413 = memref.load %arg5[%c234] : memref<320xf32, #tpu.memory_space<smem>>
    %1414 = vector.broadcast %1413 : f32 to vector<16x128xf32>
    %1415 = arith.mulf %272, %1414 : vector<16x128xf32>
    %1416 = arith.addf %1412, %1415 : vector<16x128xf32>
    %c239 = arith.constant 239 : index
    %1417 = memref.load %arg5[%c239] : memref<320xf32, #tpu.memory_space<smem>>
    %1418 = vector.broadcast %1417 : f32 to vector<16x128xf32>
    %1419 = arith.mulf %293, %1418 : vector<16x128xf32>
    %1420 = arith.addf %1416, %1419 : vector<16x128xf32>
    %c126_i32_166 = arith.constant 126 : i32
    %1421 = tpu.dynamic_rotate %1420 by %c126_i32_166 dim 1 : vector<16x128xf32>, i32 -> vector<16x128xf32>
    %cst_167 = arith.constant 0.000000e+00 : f32
    %1422 = vector.broadcast %cst_167 : f32 to vector<16x128xf32>
    %1423 = arith.select %4, %1421, %1422 : vector<16x128xi1>, vector<16x128xf32>
    %1424 = arith.addf %1389, %1423 : vector<16x128xf32>
    %1425 = vector.broadcast %63 : f32 to vector<16x128xf32>
    %1426 = arith.addf %1424, %1425 : vector<16x128xf32>
    %cst_168 = arith.constant 0.000000e+00 : f32
    %1427 = vector.broadcast %cst_168 : f32 to vector<16x128xf32>
    %1428 = arith.cmpf oge, %1426, %1427 : vector<16x128xf32>
    %1429 = vector.broadcast %66 : f32 to vector<16x128xf32>
    %1430 = arith.mulf %1429, %1426 : vector<16x128xf32>
    %1431 = arith.select %1428, %1426, %1430 : vector<16x128xi1>, vector<16x128xf32>
    %1432 = vector.broadcast %92 : f32 to vector<16x128xf32>
    %1433 = arith.mulf %1431, %1432 : vector<16x128xf32>
    %1434 = arith.addf %1241, %1433 : vector<16x128xf32>
    %1435 = vector.broadcast %93 : f32 to vector<16x128xf32>
    %1436 = arith.mulf %1431, %1435 : vector<16x128xf32>
    %1437 = arith.addf %1244, %1436 : vector<16x128xf32>
    %1438 = vector.broadcast %94 : f32 to vector<16x128xf32>
    %1439 = arith.mulf %1431, %1438 : vector<16x128xf32>
    %1440 = arith.addf %1247, %1439 : vector<16x128xf32>
    %1441 = vector.broadcast %95 : f32 to vector<16x128xf32>
    %1442 = arith.mulf %1431, %1441 : vector<16x128xf32>
    %1443 = arith.addf %1250, %1442 : vector<16x128xf32>
    %1444 = vector.broadcast %96 : f32 to vector<16x128xf32>
    %1445 = arith.mulf %1431, %1444 : vector<16x128xf32>
    %1446 = arith.addf %1253, %1445 : vector<16x128xf32>
    %c240 = arith.constant 240 : index
    %1447 = memref.load %arg5[%c240] : memref<320xf32, #tpu.memory_space<smem>>
    %1448 = vector.broadcast %1447 : f32 to vector<16x128xf32>
    %1449 = arith.mulf %146, %1448 : vector<16x128xf32>
    %c245 = arith.constant 245 : index
    %1450 = memref.load %arg5[%c245] : memref<320xf32, #tpu.memory_space<smem>>
    %1451 = vector.broadcast %1450 : f32 to vector<16x128xf32>
    %1452 = arith.mulf %167, %1451 : vector<16x128xf32>
    %1453 = arith.addf %1449, %1452 : vector<16x128xf32>
    %c250 = arith.constant 250 : index
    %1454 = memref.load %arg5[%c250] : memref<320xf32, #tpu.memory_space<smem>>
    %1455 = vector.broadcast %1454 : f32 to vector<16x128xf32>
    %1456 = arith.mulf %188, %1455 : vector<16x128xf32>
    %1457 = arith.addf %1453, %1456 : vector<16x128xf32>
    %c255 = arith.constant 255 : index
    %1458 = memref.load %arg5[%c255] : memref<320xf32, #tpu.memory_space<smem>>
    %1459 = vector.broadcast %1458 : f32 to vector<16x128xf32>
    %1460 = arith.mulf %209, %1459 : vector<16x128xf32>
    %1461 = arith.addf %1457, %1460 : vector<16x128xf32>
    %c260 = arith.constant 260 : index
    %1462 = memref.load %arg5[%c260] : memref<320xf32, #tpu.memory_space<smem>>
    %1463 = vector.broadcast %1462 : f32 to vector<16x128xf32>
    %1464 = arith.mulf %230, %1463 : vector<16x128xf32>
    %1465 = arith.addf %1461, %1464 : vector<16x128xf32>
    %c265 = arith.constant 265 : index
    %1466 = memref.load %arg5[%c265] : memref<320xf32, #tpu.memory_space<smem>>
    %1467 = vector.broadcast %1466 : f32 to vector<16x128xf32>
    %1468 = arith.mulf %251, %1467 : vector<16x128xf32>
    %1469 = arith.addf %1465, %1468 : vector<16x128xf32>
    %c270 = arith.constant 270 : index
    %1470 = memref.load %arg5[%c270] : memref<320xf32, #tpu.memory_space<smem>>
    %1471 = vector.broadcast %1470 : f32 to vector<16x128xf32>
    %1472 = arith.mulf %272, %1471 : vector<16x128xf32>
    %1473 = arith.addf %1469, %1472 : vector<16x128xf32>
    %c275 = arith.constant 275 : index
    %1474 = memref.load %arg5[%c275] : memref<320xf32, #tpu.memory_space<smem>>
    %1475 = vector.broadcast %1474 : f32 to vector<16x128xf32>
    %1476 = arith.mulf %293, %1475 : vector<16x128xf32>
    %1477 = arith.addf %1473, %1476 : vector<16x128xf32>
    %c2_i32_169 = arith.constant 2 : i32
    %1478 = tpu.dynamic_rotate %1477 by %c2_i32_169 dim 1 : vector<16x128xf32>, i32 -> vector<16x128xf32>
    %cst_170 = arith.constant 0.000000e+00 : f32
    %1479 = vector.broadcast %cst_170 : f32 to vector<16x128xf32>
    %1480 = arith.select %8, %1478, %1479 : vector<16x128xi1>, vector<16x128xf32>
    %c241 = arith.constant 241 : index
    %1481 = memref.load %arg5[%c241] : memref<320xf32, #tpu.memory_space<smem>>
    %1482 = vector.broadcast %1481 : f32 to vector<16x128xf32>
    %1483 = arith.mulf %146, %1482 : vector<16x128xf32>
    %c246 = arith.constant 246 : index
    %1484 = memref.load %arg5[%c246] : memref<320xf32, #tpu.memory_space<smem>>
    %1485 = vector.broadcast %1484 : f32 to vector<16x128xf32>
    %1486 = arith.mulf %167, %1485 : vector<16x128xf32>
    %1487 = arith.addf %1483, %1486 : vector<16x128xf32>
    %c251 = arith.constant 251 : index
    %1488 = memref.load %arg5[%c251] : memref<320xf32, #tpu.memory_space<smem>>
    %1489 = vector.broadcast %1488 : f32 to vector<16x128xf32>
    %1490 = arith.mulf %188, %1489 : vector<16x128xf32>
    %1491 = arith.addf %1487, %1490 : vector<16x128xf32>
    %c256 = arith.constant 256 : index
    %1492 = memref.load %arg5[%c256] : memref<320xf32, #tpu.memory_space<smem>>
    %1493 = vector.broadcast %1492 : f32 to vector<16x128xf32>
    %1494 = arith.mulf %209, %1493 : vector<16x128xf32>
    %1495 = arith.addf %1491, %1494 : vector<16x128xf32>
    %c261 = arith.constant 261 : index
    %1496 = memref.load %arg5[%c261] : memref<320xf32, #tpu.memory_space<smem>>
    %1497 = vector.broadcast %1496 : f32 to vector<16x128xf32>
    %1498 = arith.mulf %230, %1497 : vector<16x128xf32>
    %1499 = arith.addf %1495, %1498 : vector<16x128xf32>
    %c266 = arith.constant 266 : index
    %1500 = memref.load %arg5[%c266] : memref<320xf32, #tpu.memory_space<smem>>
    %1501 = vector.broadcast %1500 : f32 to vector<16x128xf32>
    %1502 = arith.mulf %251, %1501 : vector<16x128xf32>
    %1503 = arith.addf %1499, %1502 : vector<16x128xf32>
    %c271 = arith.constant 271 : index
    %1504 = memref.load %arg5[%c271] : memref<320xf32, #tpu.memory_space<smem>>
    %1505 = vector.broadcast %1504 : f32 to vector<16x128xf32>
    %1506 = arith.mulf %272, %1505 : vector<16x128xf32>
    %1507 = arith.addf %1503, %1506 : vector<16x128xf32>
    %c276 = arith.constant 276 : index
    %1508 = memref.load %arg5[%c276] : memref<320xf32, #tpu.memory_space<smem>>
    %1509 = vector.broadcast %1508 : f32 to vector<16x128xf32>
    %1510 = arith.mulf %293, %1509 : vector<16x128xf32>
    %1511 = arith.addf %1507, %1510 : vector<16x128xf32>
    %c1_i32_171 = arith.constant 1 : i32
    %1512 = tpu.dynamic_rotate %1511 by %c1_i32_171 dim 1 : vector<16x128xf32>, i32 -> vector<16x128xf32>
    %cst_172 = arith.constant 0.000000e+00 : f32
    %1513 = vector.broadcast %cst_172 : f32 to vector<16x128xf32>
    %1514 = arith.select %6, %1512, %1513 : vector<16x128xi1>, vector<16x128xf32>
    %1515 = arith.addf %1480, %1514 : vector<16x128xf32>
    %c242 = arith.constant 242 : index
    %1516 = memref.load %arg5[%c242] : memref<320xf32, #tpu.memory_space<smem>>
    %1517 = vector.broadcast %1516 : f32 to vector<16x128xf32>
    %1518 = arith.mulf %146, %1517 : vector<16x128xf32>
    %c247 = arith.constant 247 : index
    %1519 = memref.load %arg5[%c247] : memref<320xf32, #tpu.memory_space<smem>>
    %1520 = vector.broadcast %1519 : f32 to vector<16x128xf32>
    %1521 = arith.mulf %167, %1520 : vector<16x128xf32>
    %1522 = arith.addf %1518, %1521 : vector<16x128xf32>
    %c252 = arith.constant 252 : index
    %1523 = memref.load %arg5[%c252] : memref<320xf32, #tpu.memory_space<smem>>
    %1524 = vector.broadcast %1523 : f32 to vector<16x128xf32>
    %1525 = arith.mulf %188, %1524 : vector<16x128xf32>
    %1526 = arith.addf %1522, %1525 : vector<16x128xf32>
    %c257 = arith.constant 257 : index
    %1527 = memref.load %arg5[%c257] : memref<320xf32, #tpu.memory_space<smem>>
    %1528 = vector.broadcast %1527 : f32 to vector<16x128xf32>
    %1529 = arith.mulf %209, %1528 : vector<16x128xf32>
    %1530 = arith.addf %1526, %1529 : vector<16x128xf32>
    %c262 = arith.constant 262 : index
    %1531 = memref.load %arg5[%c262] : memref<320xf32, #tpu.memory_space<smem>>
    %1532 = vector.broadcast %1531 : f32 to vector<16x128xf32>
    %1533 = arith.mulf %230, %1532 : vector<16x128xf32>
    %1534 = arith.addf %1530, %1533 : vector<16x128xf32>
    %c267 = arith.constant 267 : index
    %1535 = memref.load %arg5[%c267] : memref<320xf32, #tpu.memory_space<smem>>
    %1536 = vector.broadcast %1535 : f32 to vector<16x128xf32>
    %1537 = arith.mulf %251, %1536 : vector<16x128xf32>
    %1538 = arith.addf %1534, %1537 : vector<16x128xf32>
    %c272 = arith.constant 272 : index
    %1539 = memref.load %arg5[%c272] : memref<320xf32, #tpu.memory_space<smem>>
    %1540 = vector.broadcast %1539 : f32 to vector<16x128xf32>
    %1541 = arith.mulf %272, %1540 : vector<16x128xf32>
    %1542 = arith.addf %1538, %1541 : vector<16x128xf32>
    %c277 = arith.constant 277 : index
    %1543 = memref.load %arg5[%c277] : memref<320xf32, #tpu.memory_space<smem>>
    %1544 = vector.broadcast %1543 : f32 to vector<16x128xf32>
    %1545 = arith.mulf %293, %1544 : vector<16x128xf32>
    %1546 = arith.addf %1542, %1545 : vector<16x128xf32>
    %1547 = arith.addf %1515, %1546 : vector<16x128xf32>
    %c243 = arith.constant 243 : index
    %1548 = memref.load %arg5[%c243] : memref<320xf32, #tpu.memory_space<smem>>
    %1549 = vector.broadcast %1548 : f32 to vector<16x128xf32>
    %1550 = arith.mulf %146, %1549 : vector<16x128xf32>
    %c248 = arith.constant 248 : index
    %1551 = memref.load %arg5[%c248] : memref<320xf32, #tpu.memory_space<smem>>
    %1552 = vector.broadcast %1551 : f32 to vector<16x128xf32>
    %1553 = arith.mulf %167, %1552 : vector<16x128xf32>
    %1554 = arith.addf %1550, %1553 : vector<16x128xf32>
    %c253 = arith.constant 253 : index
    %1555 = memref.load %arg5[%c253] : memref<320xf32, #tpu.memory_space<smem>>
    %1556 = vector.broadcast %1555 : f32 to vector<16x128xf32>
    %1557 = arith.mulf %188, %1556 : vector<16x128xf32>
    %1558 = arith.addf %1554, %1557 : vector<16x128xf32>
    %c258 = arith.constant 258 : index
    %1559 = memref.load %arg5[%c258] : memref<320xf32, #tpu.memory_space<smem>>
    %1560 = vector.broadcast %1559 : f32 to vector<16x128xf32>
    %1561 = arith.mulf %209, %1560 : vector<16x128xf32>
    %1562 = arith.addf %1558, %1561 : vector<16x128xf32>
    %c263 = arith.constant 263 : index
    %1563 = memref.load %arg5[%c263] : memref<320xf32, #tpu.memory_space<smem>>
    %1564 = vector.broadcast %1563 : f32 to vector<16x128xf32>
    %1565 = arith.mulf %230, %1564 : vector<16x128xf32>
    %1566 = arith.addf %1562, %1565 : vector<16x128xf32>
    %c268 = arith.constant 268 : index
    %1567 = memref.load %arg5[%c268] : memref<320xf32, #tpu.memory_space<smem>>
    %1568 = vector.broadcast %1567 : f32 to vector<16x128xf32>
    %1569 = arith.mulf %251, %1568 : vector<16x128xf32>
    %1570 = arith.addf %1566, %1569 : vector<16x128xf32>
    %c273 = arith.constant 273 : index
    %1571 = memref.load %arg5[%c273] : memref<320xf32, #tpu.memory_space<smem>>
    %1572 = vector.broadcast %1571 : f32 to vector<16x128xf32>
    %1573 = arith.mulf %272, %1572 : vector<16x128xf32>
    %1574 = arith.addf %1570, %1573 : vector<16x128xf32>
    %c278 = arith.constant 278 : index
    %1575 = memref.load %arg5[%c278] : memref<320xf32, #tpu.memory_space<smem>>
    %1576 = vector.broadcast %1575 : f32 to vector<16x128xf32>
    %1577 = arith.mulf %293, %1576 : vector<16x128xf32>
    %1578 = arith.addf %1574, %1577 : vector<16x128xf32>
    %c127_i32_173 = arith.constant 127 : i32
    %1579 = tpu.dynamic_rotate %1578 by %c127_i32_173 dim 1 : vector<16x128xf32>, i32 -> vector<16x128xf32>
    %cst_174 = arith.constant 0.000000e+00 : f32
    %1580 = vector.broadcast %cst_174 : f32 to vector<16x128xf32>
    %1581 = arith.select %2, %1579, %1580 : vector<16x128xi1>, vector<16x128xf32>
    %1582 = arith.addf %1547, %1581 : vector<16x128xf32>
    %c244 = arith.constant 244 : index
    %1583 = memref.load %arg5[%c244] : memref<320xf32, #tpu.memory_space<smem>>
    %1584 = vector.broadcast %1583 : f32 to vector<16x128xf32>
    %1585 = arith.mulf %146, %1584 : vector<16x128xf32>
    %c249 = arith.constant 249 : index
    %1586 = memref.load %arg5[%c249] : memref<320xf32, #tpu.memory_space<smem>>
    %1587 = vector.broadcast %1586 : f32 to vector<16x128xf32>
    %1588 = arith.mulf %167, %1587 : vector<16x128xf32>
    %1589 = arith.addf %1585, %1588 : vector<16x128xf32>
    %c254 = arith.constant 254 : index
    %1590 = memref.load %arg5[%c254] : memref<320xf32, #tpu.memory_space<smem>>
    %1591 = vector.broadcast %1590 : f32 to vector<16x128xf32>
    %1592 = arith.mulf %188, %1591 : vector<16x128xf32>
    %1593 = arith.addf %1589, %1592 : vector<16x128xf32>
    %c259 = arith.constant 259 : index
    %1594 = memref.load %arg5[%c259] : memref<320xf32, #tpu.memory_space<smem>>
    %1595 = vector.broadcast %1594 : f32 to vector<16x128xf32>
    %1596 = arith.mulf %209, %1595 : vector<16x128xf32>
    %1597 = arith.addf %1593, %1596 : vector<16x128xf32>
    %c264 = arith.constant 264 : index
    %1598 = memref.load %arg5[%c264] : memref<320xf32, #tpu.memory_space<smem>>
    %1599 = vector.broadcast %1598 : f32 to vector<16x128xf32>
    %1600 = arith.mulf %230, %1599 : vector<16x128xf32>
    %1601 = arith.addf %1597, %1600 : vector<16x128xf32>
    %c269 = arith.constant 269 : index
    %1602 = memref.load %arg5[%c269] : memref<320xf32, #tpu.memory_space<smem>>
    %1603 = vector.broadcast %1602 : f32 to vector<16x128xf32>
    %1604 = arith.mulf %251, %1603 : vector<16x128xf32>
    %1605 = arith.addf %1601, %1604 : vector<16x128xf32>
    %c274 = arith.constant 274 : index
    %1606 = memref.load %arg5[%c274] : memref<320xf32, #tpu.memory_space<smem>>
    %1607 = vector.broadcast %1606 : f32 to vector<16x128xf32>
    %1608 = arith.mulf %272, %1607 : vector<16x128xf32>
    %1609 = arith.addf %1605, %1608 : vector<16x128xf32>
    %c279 = arith.constant 279 : index
    %1610 = memref.load %arg5[%c279] : memref<320xf32, #tpu.memory_space<smem>>
    %1611 = vector.broadcast %1610 : f32 to vector<16x128xf32>
    %1612 = arith.mulf %293, %1611 : vector<16x128xf32>
    %1613 = arith.addf %1609, %1612 : vector<16x128xf32>
    %c126_i32_175 = arith.constant 126 : i32
    %1614 = tpu.dynamic_rotate %1613 by %c126_i32_175 dim 1 : vector<16x128xf32>, i32 -> vector<16x128xf32>
    %cst_176 = arith.constant 0.000000e+00 : f32
    %1615 = vector.broadcast %cst_176 : f32 to vector<16x128xf32>
    %1616 = arith.select %4, %1614, %1615 : vector<16x128xi1>, vector<16x128xf32>
    %1617 = arith.addf %1582, %1616 : vector<16x128xf32>
    %1618 = vector.broadcast %64 : f32 to vector<16x128xf32>
    %1619 = arith.addf %1617, %1618 : vector<16x128xf32>
    %cst_177 = arith.constant 0.000000e+00 : f32
    %1620 = vector.broadcast %cst_177 : f32 to vector<16x128xf32>
    %1621 = arith.cmpf oge, %1619, %1620 : vector<16x128xf32>
    %1622 = vector.broadcast %66 : f32 to vector<16x128xf32>
    %1623 = arith.mulf %1622, %1619 : vector<16x128xf32>
    %1624 = arith.select %1621, %1619, %1623 : vector<16x128xi1>, vector<16x128xf32>
    %1625 = vector.broadcast %97 : f32 to vector<16x128xf32>
    %1626 = arith.mulf %1624, %1625 : vector<16x128xf32>
    %1627 = arith.addf %1434, %1626 : vector<16x128xf32>
    %1628 = vector.broadcast %98 : f32 to vector<16x128xf32>
    %1629 = arith.mulf %1624, %1628 : vector<16x128xf32>
    %1630 = arith.addf %1437, %1629 : vector<16x128xf32>
    %1631 = vector.broadcast %99 : f32 to vector<16x128xf32>
    %1632 = arith.mulf %1624, %1631 : vector<16x128xf32>
    %1633 = arith.addf %1440, %1632 : vector<16x128xf32>
    %1634 = vector.broadcast %100 : f32 to vector<16x128xf32>
    %1635 = arith.mulf %1624, %1634 : vector<16x128xf32>
    %1636 = arith.addf %1443, %1635 : vector<16x128xf32>
    %1637 = vector.broadcast %101 : f32 to vector<16x128xf32>
    %1638 = arith.mulf %1624, %1637 : vector<16x128xf32>
    %1639 = arith.addf %1446, %1638 : vector<16x128xf32>
    %c280 = arith.constant 280 : index
    %1640 = memref.load %arg5[%c280] : memref<320xf32, #tpu.memory_space<smem>>
    %1641 = vector.broadcast %1640 : f32 to vector<16x128xf32>
    %1642 = arith.mulf %146, %1641 : vector<16x128xf32>
    %c285 = arith.constant 285 : index
    %1643 = memref.load %arg5[%c285] : memref<320xf32, #tpu.memory_space<smem>>
    %1644 = vector.broadcast %1643 : f32 to vector<16x128xf32>
    %1645 = arith.mulf %167, %1644 : vector<16x128xf32>
    %1646 = arith.addf %1642, %1645 : vector<16x128xf32>
    %c290 = arith.constant 290 : index
    %1647 = memref.load %arg5[%c290] : memref<320xf32, #tpu.memory_space<smem>>
    %1648 = vector.broadcast %1647 : f32 to vector<16x128xf32>
    %1649 = arith.mulf %188, %1648 : vector<16x128xf32>
    %1650 = arith.addf %1646, %1649 : vector<16x128xf32>
    %c295 = arith.constant 295 : index
    %1651 = memref.load %arg5[%c295] : memref<320xf32, #tpu.memory_space<smem>>
    %1652 = vector.broadcast %1651 : f32 to vector<16x128xf32>
    %1653 = arith.mulf %209, %1652 : vector<16x128xf32>
    %1654 = arith.addf %1650, %1653 : vector<16x128xf32>
    %c300 = arith.constant 300 : index
    %1655 = memref.load %arg5[%c300] : memref<320xf32, #tpu.memory_space<smem>>
    %1656 = vector.broadcast %1655 : f32 to vector<16x128xf32>
    %1657 = arith.mulf %230, %1656 : vector<16x128xf32>
    %1658 = arith.addf %1654, %1657 : vector<16x128xf32>
    %c305 = arith.constant 305 : index
    %1659 = memref.load %arg5[%c305] : memref<320xf32, #tpu.memory_space<smem>>
    %1660 = vector.broadcast %1659 : f32 to vector<16x128xf32>
    %1661 = arith.mulf %251, %1660 : vector<16x128xf32>
    %1662 = arith.addf %1658, %1661 : vector<16x128xf32>
    %c310 = arith.constant 310 : index
    %1663 = memref.load %arg5[%c310] : memref<320xf32, #tpu.memory_space<smem>>
    %1664 = vector.broadcast %1663 : f32 to vector<16x128xf32>
    %1665 = arith.mulf %272, %1664 : vector<16x128xf32>
    %1666 = arith.addf %1662, %1665 : vector<16x128xf32>
    %c315 = arith.constant 315 : index
    %1667 = memref.load %arg5[%c315] : memref<320xf32, #tpu.memory_space<smem>>
    %1668 = vector.broadcast %1667 : f32 to vector<16x128xf32>
    %1669 = arith.mulf %293, %1668 : vector<16x128xf32>
    %1670 = arith.addf %1666, %1669 : vector<16x128xf32>
    %c2_i32_178 = arith.constant 2 : i32
    %1671 = tpu.dynamic_rotate %1670 by %c2_i32_178 dim 1 : vector<16x128xf32>, i32 -> vector<16x128xf32>
    %cst_179 = arith.constant 0.000000e+00 : f32
    %1672 = vector.broadcast %cst_179 : f32 to vector<16x128xf32>
    %1673 = arith.select %8, %1671, %1672 : vector<16x128xi1>, vector<16x128xf32>
    %c281 = arith.constant 281 : index
    %1674 = memref.load %arg5[%c281] : memref<320xf32, #tpu.memory_space<smem>>
    %1675 = vector.broadcast %1674 : f32 to vector<16x128xf32>
    %1676 = arith.mulf %146, %1675 : vector<16x128xf32>
    %c286 = arith.constant 286 : index
    %1677 = memref.load %arg5[%c286] : memref<320xf32, #tpu.memory_space<smem>>
    %1678 = vector.broadcast %1677 : f32 to vector<16x128xf32>
    %1679 = arith.mulf %167, %1678 : vector<16x128xf32>
    %1680 = arith.addf %1676, %1679 : vector<16x128xf32>
    %c291 = arith.constant 291 : index
    %1681 = memref.load %arg5[%c291] : memref<320xf32, #tpu.memory_space<smem>>
    %1682 = vector.broadcast %1681 : f32 to vector<16x128xf32>
    %1683 = arith.mulf %188, %1682 : vector<16x128xf32>
    %1684 = arith.addf %1680, %1683 : vector<16x128xf32>
    %c296 = arith.constant 296 : index
    %1685 = memref.load %arg5[%c296] : memref<320xf32, #tpu.memory_space<smem>>
    %1686 = vector.broadcast %1685 : f32 to vector<16x128xf32>
    %1687 = arith.mulf %209, %1686 : vector<16x128xf32>
    %1688 = arith.addf %1684, %1687 : vector<16x128xf32>
    %c301 = arith.constant 301 : index
    %1689 = memref.load %arg5[%c301] : memref<320xf32, #tpu.memory_space<smem>>
    %1690 = vector.broadcast %1689 : f32 to vector<16x128xf32>
    %1691 = arith.mulf %230, %1690 : vector<16x128xf32>
    %1692 = arith.addf %1688, %1691 : vector<16x128xf32>
    %c306 = arith.constant 306 : index
    %1693 = memref.load %arg5[%c306] : memref<320xf32, #tpu.memory_space<smem>>
    %1694 = vector.broadcast %1693 : f32 to vector<16x128xf32>
    %1695 = arith.mulf %251, %1694 : vector<16x128xf32>
    %1696 = arith.addf %1692, %1695 : vector<16x128xf32>
    %c311 = arith.constant 311 : index
    %1697 = memref.load %arg5[%c311] : memref<320xf32, #tpu.memory_space<smem>>
    %1698 = vector.broadcast %1697 : f32 to vector<16x128xf32>
    %1699 = arith.mulf %272, %1698 : vector<16x128xf32>
    %1700 = arith.addf %1696, %1699 : vector<16x128xf32>
    %c316 = arith.constant 316 : index
    %1701 = memref.load %arg5[%c316] : memref<320xf32, #tpu.memory_space<smem>>
    %1702 = vector.broadcast %1701 : f32 to vector<16x128xf32>
    %1703 = arith.mulf %293, %1702 : vector<16x128xf32>
    %1704 = arith.addf %1700, %1703 : vector<16x128xf32>
    %c1_i32_180 = arith.constant 1 : i32
    %1705 = tpu.dynamic_rotate %1704 by %c1_i32_180 dim 1 : vector<16x128xf32>, i32 -> vector<16x128xf32>
    %cst_181 = arith.constant 0.000000e+00 : f32
    %1706 = vector.broadcast %cst_181 : f32 to vector<16x128xf32>
    %1707 = arith.select %6, %1705, %1706 : vector<16x128xi1>, vector<16x128xf32>
    %1708 = arith.addf %1673, %1707 : vector<16x128xf32>
    %c282 = arith.constant 282 : index
    %1709 = memref.load %arg5[%c282] : memref<320xf32, #tpu.memory_space<smem>>
    %1710 = vector.broadcast %1709 : f32 to vector<16x128xf32>
    %1711 = arith.mulf %146, %1710 : vector<16x128xf32>
    %c287 = arith.constant 287 : index
    %1712 = memref.load %arg5[%c287] : memref<320xf32, #tpu.memory_space<smem>>
    %1713 = vector.broadcast %1712 : f32 to vector<16x128xf32>
    %1714 = arith.mulf %167, %1713 : vector<16x128xf32>
    %1715 = arith.addf %1711, %1714 : vector<16x128xf32>
    %c292 = arith.constant 292 : index
    %1716 = memref.load %arg5[%c292] : memref<320xf32, #tpu.memory_space<smem>>
    %1717 = vector.broadcast %1716 : f32 to vector<16x128xf32>
    %1718 = arith.mulf %188, %1717 : vector<16x128xf32>
    %1719 = arith.addf %1715, %1718 : vector<16x128xf32>
    %c297 = arith.constant 297 : index
    %1720 = memref.load %arg5[%c297] : memref<320xf32, #tpu.memory_space<smem>>
    %1721 = vector.broadcast %1720 : f32 to vector<16x128xf32>
    %1722 = arith.mulf %209, %1721 : vector<16x128xf32>
    %1723 = arith.addf %1719, %1722 : vector<16x128xf32>
    %c302 = arith.constant 302 : index
    %1724 = memref.load %arg5[%c302] : memref<320xf32, #tpu.memory_space<smem>>
    %1725 = vector.broadcast %1724 : f32 to vector<16x128xf32>
    %1726 = arith.mulf %230, %1725 : vector<16x128xf32>
    %1727 = arith.addf %1723, %1726 : vector<16x128xf32>
    %c307 = arith.constant 307 : index
    %1728 = memref.load %arg5[%c307] : memref<320xf32, #tpu.memory_space<smem>>
    %1729 = vector.broadcast %1728 : f32 to vector<16x128xf32>
    %1730 = arith.mulf %251, %1729 : vector<16x128xf32>
    %1731 = arith.addf %1727, %1730 : vector<16x128xf32>
    %c312 = arith.constant 312 : index
    %1732 = memref.load %arg5[%c312] : memref<320xf32, #tpu.memory_space<smem>>
    %1733 = vector.broadcast %1732 : f32 to vector<16x128xf32>
    %1734 = arith.mulf %272, %1733 : vector<16x128xf32>
    %1735 = arith.addf %1731, %1734 : vector<16x128xf32>
    %c317 = arith.constant 317 : index
    %1736 = memref.load %arg5[%c317] : memref<320xf32, #tpu.memory_space<smem>>
    %1737 = vector.broadcast %1736 : f32 to vector<16x128xf32>
    %1738 = arith.mulf %293, %1737 : vector<16x128xf32>
    %1739 = arith.addf %1735, %1738 : vector<16x128xf32>
    %1740 = arith.addf %1708, %1739 : vector<16x128xf32>
    %c283 = arith.constant 283 : index
    %1741 = memref.load %arg5[%c283] : memref<320xf32, #tpu.memory_space<smem>>
    %1742 = vector.broadcast %1741 : f32 to vector<16x128xf32>
    %1743 = arith.mulf %146, %1742 : vector<16x128xf32>
    %c288 = arith.constant 288 : index
    %1744 = memref.load %arg5[%c288] : memref<320xf32, #tpu.memory_space<smem>>
    %1745 = vector.broadcast %1744 : f32 to vector<16x128xf32>
    %1746 = arith.mulf %167, %1745 : vector<16x128xf32>
    %1747 = arith.addf %1743, %1746 : vector<16x128xf32>
    %c293 = arith.constant 293 : index
    %1748 = memref.load %arg5[%c293] : memref<320xf32, #tpu.memory_space<smem>>
    %1749 = vector.broadcast %1748 : f32 to vector<16x128xf32>
    %1750 = arith.mulf %188, %1749 : vector<16x128xf32>
    %1751 = arith.addf %1747, %1750 : vector<16x128xf32>
    %c298 = arith.constant 298 : index
    %1752 = memref.load %arg5[%c298] : memref<320xf32, #tpu.memory_space<smem>>
    %1753 = vector.broadcast %1752 : f32 to vector<16x128xf32>
    %1754 = arith.mulf %209, %1753 : vector<16x128xf32>
    %1755 = arith.addf %1751, %1754 : vector<16x128xf32>
    %c303 = arith.constant 303 : index
    %1756 = memref.load %arg5[%c303] : memref<320xf32, #tpu.memory_space<smem>>
    %1757 = vector.broadcast %1756 : f32 to vector<16x128xf32>
    %1758 = arith.mulf %230, %1757 : vector<16x128xf32>
    %1759 = arith.addf %1755, %1758 : vector<16x128xf32>
    %c308 = arith.constant 308 : index
    %1760 = memref.load %arg5[%c308] : memref<320xf32, #tpu.memory_space<smem>>
    %1761 = vector.broadcast %1760 : f32 to vector<16x128xf32>
    %1762 = arith.mulf %251, %1761 : vector<16x128xf32>
    %1763 = arith.addf %1759, %1762 : vector<16x128xf32>
    %c313 = arith.constant 313 : index
    %1764 = memref.load %arg5[%c313] : memref<320xf32, #tpu.memory_space<smem>>
    %1765 = vector.broadcast %1764 : f32 to vector<16x128xf32>
    %1766 = arith.mulf %272, %1765 : vector<16x128xf32>
    %1767 = arith.addf %1763, %1766 : vector<16x128xf32>
    %c318 = arith.constant 318 : index
    %1768 = memref.load %arg5[%c318] : memref<320xf32, #tpu.memory_space<smem>>
    %1769 = vector.broadcast %1768 : f32 to vector<16x128xf32>
    %1770 = arith.mulf %293, %1769 : vector<16x128xf32>
    %1771 = arith.addf %1767, %1770 : vector<16x128xf32>
    %c127_i32_182 = arith.constant 127 : i32
    %1772 = tpu.dynamic_rotate %1771 by %c127_i32_182 dim 1 : vector<16x128xf32>, i32 -> vector<16x128xf32>
    %cst_183 = arith.constant 0.000000e+00 : f32
    %1773 = vector.broadcast %cst_183 : f32 to vector<16x128xf32>
    %1774 = arith.select %2, %1772, %1773 : vector<16x128xi1>, vector<16x128xf32>
    %1775 = arith.addf %1740, %1774 : vector<16x128xf32>
    %c284 = arith.constant 284 : index
    %1776 = memref.load %arg5[%c284] : memref<320xf32, #tpu.memory_space<smem>>
    %1777 = vector.broadcast %1776 : f32 to vector<16x128xf32>
    %1778 = arith.mulf %146, %1777 : vector<16x128xf32>
    %c289 = arith.constant 289 : index
    %1779 = memref.load %arg5[%c289] : memref<320xf32, #tpu.memory_space<smem>>
    %1780 = vector.broadcast %1779 : f32 to vector<16x128xf32>
    %1781 = arith.mulf %167, %1780 : vector<16x128xf32>
    %1782 = arith.addf %1778, %1781 : vector<16x128xf32>
    %c294 = arith.constant 294 : index
    %1783 = memref.load %arg5[%c294] : memref<320xf32, #tpu.memory_space<smem>>
    %1784 = vector.broadcast %1783 : f32 to vector<16x128xf32>
    %1785 = arith.mulf %188, %1784 : vector<16x128xf32>
    %1786 = arith.addf %1782, %1785 : vector<16x128xf32>
    %c299 = arith.constant 299 : index
    %1787 = memref.load %arg5[%c299] : memref<320xf32, #tpu.memory_space<smem>>
    %1788 = vector.broadcast %1787 : f32 to vector<16x128xf32>
    %1789 = arith.mulf %209, %1788 : vector<16x128xf32>
    %1790 = arith.addf %1786, %1789 : vector<16x128xf32>
    %c304 = arith.constant 304 : index
    %1791 = memref.load %arg5[%c304] : memref<320xf32, #tpu.memory_space<smem>>
    %1792 = vector.broadcast %1791 : f32 to vector<16x128xf32>
    %1793 = arith.mulf %230, %1792 : vector<16x128xf32>
    %1794 = arith.addf %1790, %1793 : vector<16x128xf32>
    %c309 = arith.constant 309 : index
    %1795 = memref.load %arg5[%c309] : memref<320xf32, #tpu.memory_space<smem>>
    %1796 = vector.broadcast %1795 : f32 to vector<16x128xf32>
    %1797 = arith.mulf %251, %1796 : vector<16x128xf32>
    %1798 = arith.addf %1794, %1797 : vector<16x128xf32>
    %c314 = arith.constant 314 : index
    %1799 = memref.load %arg5[%c314] : memref<320xf32, #tpu.memory_space<smem>>
    %1800 = vector.broadcast %1799 : f32 to vector<16x128xf32>
    %1801 = arith.mulf %272, %1800 : vector<16x128xf32>
    %1802 = arith.addf %1798, %1801 : vector<16x128xf32>
    %c319 = arith.constant 319 : index
    %1803 = memref.load %arg5[%c319] : memref<320xf32, #tpu.memory_space<smem>>
    %1804 = vector.broadcast %1803 : f32 to vector<16x128xf32>
    %1805 = arith.mulf %293, %1804 : vector<16x128xf32>
    %1806 = arith.addf %1802, %1805 : vector<16x128xf32>
    %c126_i32_184 = arith.constant 126 : i32
    %1807 = tpu.dynamic_rotate %1806 by %c126_i32_184 dim 1 : vector<16x128xf32>, i32 -> vector<16x128xf32>
    %cst_185 = arith.constant 0.000000e+00 : f32
    %1808 = vector.broadcast %cst_185 : f32 to vector<16x128xf32>
    %1809 = arith.select %4, %1807, %1808 : vector<16x128xi1>, vector<16x128xf32>
    %1810 = arith.addf %1775, %1809 : vector<16x128xf32>
    %1811 = vector.broadcast %65 : f32 to vector<16x128xf32>
    %1812 = arith.addf %1810, %1811 : vector<16x128xf32>
    %cst_186 = arith.constant 0.000000e+00 : f32
    %1813 = vector.broadcast %cst_186 : f32 to vector<16x128xf32>
    %1814 = arith.cmpf oge, %1812, %1813 : vector<16x128xf32>
    %1815 = vector.broadcast %66 : f32 to vector<16x128xf32>
    %1816 = arith.mulf %1815, %1812 : vector<16x128xf32>
    %1817 = arith.select %1814, %1812, %1816 : vector<16x128xi1>, vector<16x128xf32>
    %1818 = vector.broadcast %102 : f32 to vector<16x128xf32>
    %1819 = arith.mulf %1817, %1818 : vector<16x128xf32>
    %1820 = arith.addf %1627, %1819 : vector<16x128xf32>
    %1821 = vector.broadcast %103 : f32 to vector<16x128xf32>
    %1822 = arith.mulf %1817, %1821 : vector<16x128xf32>
    %1823 = arith.addf %1630, %1822 : vector<16x128xf32>
    %1824 = vector.broadcast %104 : f32 to vector<16x128xf32>
    %1825 = arith.mulf %1817, %1824 : vector<16x128xf32>
    %1826 = arith.addf %1633, %1825 : vector<16x128xf32>
    %1827 = vector.broadcast %105 : f32 to vector<16x128xf32>
    %1828 = arith.mulf %1817, %1827 : vector<16x128xf32>
    %1829 = arith.addf %1636, %1828 : vector<16x128xf32>
    %1830 = vector.broadcast %106 : f32 to vector<16x128xf32>
    %1831 = arith.mulf %1817, %1830 : vector<16x128xf32>
    %1832 = arith.addf %1639, %1831 : vector<16x128xf32>
    %c2_i32_187 = arith.constant 2 : i32
    %1833 = tpu.dynamic_rotate %1820 by %c2_i32_187 dim 1 : vector<16x128xf32>, i32 -> vector<16x128xf32>
    %cst_188 = arith.constant 0.000000e+00 : f32
    %1834 = vector.broadcast %cst_188 : f32 to vector<16x128xf32>
    %1835 = arith.select %8, %1833, %1834 : vector<16x128xi1>, vector<16x128xf32>
    %c1_i32_189 = arith.constant 1 : i32
    %1836 = tpu.dynamic_rotate %1823 by %c1_i32_189 dim 1 : vector<16x128xf32>, i32 -> vector<16x128xf32>
    %cst_190 = arith.constant 0.000000e+00 : f32
    %1837 = vector.broadcast %cst_190 : f32 to vector<16x128xf32>
    %1838 = arith.select %6, %1836, %1837 : vector<16x128xi1>, vector<16x128xf32>
    %1839 = arith.addf %1835, %1838 : vector<16x128xf32>
    %1840 = arith.addf %1839, %1826 : vector<16x128xf32>
    %c127_i32_191 = arith.constant 127 : i32
    %1841 = tpu.dynamic_rotate %1829 by %c127_i32_191 dim 1 : vector<16x128xf32>, i32 -> vector<16x128xf32>
    %cst_192 = arith.constant 0.000000e+00 : f32
    %1842 = vector.broadcast %cst_192 : f32 to vector<16x128xf32>
    %1843 = arith.select %2, %1841, %1842 : vector<16x128xi1>, vector<16x128xf32>
    %1844 = arith.addf %1840, %1843 : vector<16x128xf32>
    %c126_i32_193 = arith.constant 126 : i32
    %1845 = tpu.dynamic_rotate %1832 by %c126_i32_193 dim 1 : vector<16x128xf32>, i32 -> vector<16x128xf32>
    %cst_194 = arith.constant 0.000000e+00 : f32
    %1846 = vector.broadcast %cst_194 : f32 to vector<16x128xf32>
    %1847 = arith.select %4, %1845, %1846 : vector<16x128xi1>, vector<16x128xf32>
    %1848 = arith.addf %1844, %1847 : vector<16x128xf32>
    %1849 = vector.broadcast %107 : f32 to vector<16x128xf32>
    %1850 = arith.addf %1848, %1849 : vector<16x128xf32>
    %1851 = arith.index_cast %111 : i32 to index
    %c0_195 = arith.constant 0 : index
    %1852 = vector.load %arg10[%1851, %c0_195] : memref<16x128xf32, #tpu.memory_space<vmem>>, vector<16x128xf32>
    tpu.vector_store %arg10[%1851, %c0_195], %1850 {strides = array<i32>} : memref<16x128xf32, #tpu.memory_space<vmem>>, vector<16x128xf32>,
    %c1_i32_196 = arith.constant 1 : i32
    return
  }
  func.func @transform_0(%arg0: i32) -> (i32, i32) {
    %c0_i32 = arith.constant 0 : i32
    %c0_i32_0 = arith.constant 0 : i32
    return %arg0, %c0_i32 : i32, i32
  }
  func.func @transform_1(%arg0: i32) -> i32 {
    %c0_i32 = arith.constant 0 : i32
    %c0_i32_0 = arith.constant 0 : i32
    return %c0_i32 : i32
  }
  func.func @transform_2(%arg0: i32) -> i32 {
    %c0_i32 = arith.constant 0 : i32
    %c0_i32_0 = arith.constant 0 : i32
    return %c0_i32 : i32
  }
  func.func @transform_3(%arg0: i32) -> i32 {
    %c0_i32 = arith.constant 0 : i32
    %c0_i32_0 = arith.constant 0 : i32
    return %c0_i32 : i32
  }
  func.func @transform_4(%arg0: i32) -> i32 {
    %c0_i32 = arith.constant 0 : i32
    %c0_i32_0 = arith.constant 0 : i32
    return %c0_i32 : i32
  }
  func.func @transform_5(%arg0: i32) -> i32 {
    %c0_i32 = arith.constant 0 : i32
    %c0_i32_0 = arith.constant 0 : i32
    return %c0_i32 : i32
  }
  func.func @transform_6(%arg0: i32) -> i32 {
    %c0_i32 = arith.constant 0 : i32
    %c0_i32_0 = arith.constant 0 : i32
    return %c0_i32 : i32
  }
  func.func @transform_7(%arg0: i32) -> i32 {
    %c0_i32 = arith.constant 0 : i32
    %c0_i32_0 = arith.constant 0 : i32
    return %c0_i32 : i32
  }
  func.func @transform_8(%arg0: i32) -> i32 {
    %c0_i32 = arith.constant 0 : i32
    %c0_i32_0 = arith.constant 0 : i32
    return %c0_i32 : i32
  }
  func.func @transform_9(%arg0: i32) -> (i32, i32) {
    %c0_i32 = arith.constant 0 : i32
    %c0_i32_0 = arith.constant 0 : i32
    return %arg0, %c0_i32 : i32, i32
  }
}

</mosaic_0001>

<llo_original>
// kernel: tpu_custom_call.1
$region0: #{tpu_custom_call.1}
  #allocation0 [shape = 'u32[]', space=smem, size = 0x4, offset = 0x4, fixed_abs, tag = 'smem constant byte address 0x4 - core index']
  #allocation1 [shape = 'u32[144,128]{1,0:T(1,128)}', space=vmem, size = 0x12000, scoped, tag = 'internal scratch']
  #allocation2 [shape = 'f32[1]{0:T(128)S(6)}', space=smem, size = 0x200, scoped, tag = 'scoped memory for tpu_custom_call.1']
  #allocation3 [shape = 'f32[1]{0:T(128)S(6)}', space=smem, size = 0x200, scoped, tag = 'scoped memory for tpu_custom_call.1']
  #allocation4 [shape = 'f32[1]{0:T(128)S(6)}', space=smem, size = 0x200, scoped, tag = 'scoped memory for tpu_custom_call.1']
  %s0 = inlined_call_operand.hbm [shape: f32[20,128], index: 0, kind: input, shape index: {}]
  %s1 = inlined_call_operand.vmem [shape: f32[40], index: 1, kind: input, shape index: {}]
  %s2 = inlined_call_operand.vmem [shape: f32[8], index: 2, kind: input, shape index: {}]
  %s3 = inlined_call_operand.<no memory space> [shape: f32[1], index: 3, kind: input, shape index: {}]
  %s4 = inlined_call_operand.vmem [shape: f32[320], index: 4, kind: input, shape index: {}]
  %s5 = inlined_call_operand.vmem [shape: f32[8], index: 5, kind: input, shape index: {}]
  %s6 = inlined_call_operand.<no memory space> [shape: f32[1], index: 6, kind: input, shape index: {}]
  %s7 = inlined_call_operand.vmem [shape: f32[40], index: 7, kind: input, shape index: {}]
  %s8 = inlined_call_operand.<no memory space> [shape: f32[1], index: 8, kind: input, shape index: {}]
  %s9 = inlined_call_operand.hbm [shape: f32[20,128], index: 9, kind: output, shape index: {}]
  %s10 = sld [smem:[#allocation0]]
  $region93: #{tpu_custom_call.1} parent=0
    _
  %s12 = ssub.s32 1, %s10
  %s13 = scalar_select 0, %s12, %s10
  %14 = sst [smem:[#allocation2]] %s3
  %15 = sst [smem:[#allocation3]] %s6
  %16 = sst [smem:[#allocation4]] %s8
  $region1: #{tpu_custom_call.1} parent=0
    #allocation5 [shape = 'u8[16384]{0}', space=vmem, size = 0x4000, scoped, tag = 'input window, operand 0']
    #allocation6 [shape = 's32[2]{0}', space=sflag, size = 0x8, scoped, tag = 'scoped memory for tpu_custom_call.1']
    #allocation7 [shape = 's32[2]{0}', space=sflag, size = 0x8, scoped, tag = 'scoped memory for tpu_custom_call.1']
    #allocation8 [shape = 's32[2]{0}', space=sflag, size = 0x8, scoped, tag = 'scoped memory for tpu_custom_call.1']
    #allocation9 [shape = 'u8[512]{0}', space=smem, size = 0x200, scoped, tag = 'input window, operand 1, single buffered']
    #allocation10 [shape = 'u8[512]{0}', space=smem, size = 0x200, scoped, tag = 'input window, operand 2, single buffered']
    #allocation11 [shape = 's32[1]{0}', space=sflag, size = 0x4, scoped, tag = 'scoped memory for tpu_custom_call.1']
    #allocation12 [shape = 'u8[1536]{0}', space=smem, size = 0x600, scoped, tag = 'input window, operand 4, single buffered']
    #allocation13 [shape = 'u8[512]{0}', space=smem, size = 0x200, scoped, tag = 'input window, operand 5, single buffered']
    #allocation14 [shape = 's32[1]{0}', space=sflag, size = 0x4, scoped, tag = 'scoped memory for tpu_custom_call.1']
    #allocation15 [shape = 'u8[512]{0}', space=smem, size = 0x200, scoped, tag = 'input window, operand 7, single buffered']
    #allocation16 [shape = 'u8[16384]{0}', space=vmem, size = 0x4000, scoped, tag = 'output window, operand 0']
    %17 = vsyncpa [#allocation6], 0
    %s18 = scalar_lea.sflag [#allocation6], 1
    %19 = vsyncpa %s18, 0
    %20 = vsyncpa [#allocation8], 0
    %21 = vsyncpa [#allocation11], 0
    %22 = vsyncpa [#allocation14], 0
    %23 = vsyncpa [#allocation7], 0
    %s24 = scalar_lea.sflag [#allocation7], 1
    %25 = vsyncpa %s24, 0
    loop: start=0, step=1, limit=4
    $region2: #{tpu_custom_call.1} parent=1 // loop_pre_header
      _
    $region3: #{tpu_custom_call.1} parent=1 // loop_header
      %s27 = sphi 0, %s31
      %p28 = scmp.ge.s32.totalorder %s27, 4
      %s37 = sphi 0, %s39
      %s40 = sphi 0, %s37
      %s41 = sphi 0, %s40
      %s57 = sphi 0, %s41
      %s61 = sphi 0, %s61
      %s63 = sphi 0, %s61
      %s64 = sphi 0, %s63
      %s78 = sphi 0, %s64
      %s82 = sphi 0, %s82
      %s84 = sphi 0, %s82
      %s85 = sphi 0, %s84
      %s99 = sphi 0, %s85
      %s103 = sphi 0, %s103
      %s105 = sphi 0, %s103
      %s106 = sphi 0, %s105
      %s120 = sphi 0, %s106
      %s124 = sphi 0, %s124
      %s126 = sphi 0, %s124
      %s127 = sphi 0, %s126
      %s141 = sphi 0, %s127
      %s145 = sphi 0, %s145
      %s147 = sphi 0, %s145
      %s148 = sphi 0, %s147
      %s162 = sphi 0, %s148
      %s166 = sphi 0, %s166
      %s168 = sphi 0, %s166
      %s169 = sphi 0, %s168
      %s183 = sphi 0, %s169
      %s187 = sphi 0, %s187
      %s189 = sphi 0, %s187
      %s190 = sphi 0, %s189
      %s204 = sphi 0, %s190
      %s208 = sphi 0, %s208
      %s210 = sphi 0, %s208
      %s211 = sphi 0, %s210
      %s225 = sphi 0, %s211
      %s231 = sphi 0, %s233
      %s234 = sphi 0, %s231
      %s235 = sphi 0, %s234
      %s251 = sphi 0, %s235
    $region4: #{tpu_custom_call.1} parent=1 // loop_header_branch
      %30 = sbr.rel (%p28) target = $region8
    $region5: #{tpu_custom_call.1} parent=1 // loop_body
      %s32 = ssub.s32 %s27, 1
      %s33 = ssub.s32 %s27, 2
      %s34 = sadd.s32 %s27, 1
      %s35 = ssub.s32 %s27, %s34
      %p36 = scmp.eq.s32.totalorder %s35, 0
      %s38 = sadd.s32 %s37, 1
      %s39 = scalar_select %p36, %s37, %s38
      %p42 = pneg %p36
      %p43 = scmp.eq.s32.totalorder %s27, 1
      %p44 = por %p42, %p43
      %p45 = scmp.ne.s32.totalorder %s37, %s40
      %p46 = scmp.eq.s32.totalorder %s27, 0
      %p47 = por %p45, %p46
      %p48 = scmp.ne.s32.totalorder %s37, %s40
      %p49 = scmp.eq.s32.totalorder %s32, 1
      %p50 = por %p48, %p49
      %p51 = scmp.ne.s32.totalorder %s40, %s41
      %p52 = scmp.eq.s32.totalorder %s32, 0
      %p53 = por %p51, %p52
      %p54 = scmp.ne.s32.totalorder %s40, %s41
      %p55 = scmp.eq.s32.totalorder %s33, 1
      %p56 = por %p54, %p55
      %p58 = scmp.ne.s32.totalorder %s41, %s57
      %p59 = scmp.eq.s32.totalorder %s33, 0
      %p60 = por %p58, %p59
      %s62 = sadd.s32 %s61, 1
      %p65 = scmp.eq.s32.totalorder %s27, 1
      %p66 = scmp.ne.s32.totalorder %s61, %s63
      %p67 = scmp.eq.s32.totalorder %s27, 0
      %p68 = por %p66, %p67
      %p69 = scmp.ne.s32.totalorder %s61, %s63
      %p70 = scmp.eq.s32.totalorder %s32, 1
      %p71 = por %p69, %p70
      %p72 = scmp.ne.s32.totalorder %s63, %s64
      %p73 = scmp.eq.s32.totalorder %s32, 0
      %p74 = por %p72, %p73
      %p75 = scmp.ne.s32.totalorder %s63, %s64
      %p76 = scmp.eq.s32.totalorder %s33, 1
      %p77 = por %p75, %p76
      %p79 = scmp.ne.s32.totalorder %s64, %s78
      %p80 = scmp.eq.s32.totalorder %s33, 0
      %p81 = por %p79, %p80
      %s83 = sadd.s32 %s82, 1
      %p86 = scmp.eq.s32.totalorder %s27, 1
      %p87 = scmp.ne.s32.totalorder %s82, %s84
      %p88 = scmp.eq.s32.totalorder %s27, 0
      %p89 = por %p87, %p88
      %p90 = scmp.ne.s32.totalorder %s82, %s84
      %p91 = scmp.eq.s32.totalorder %s32, 1
      %p92 = por %p90, %p91
      %p93 = scmp.ne.s32.totalorder %s84, %s85
      %p94 = scmp.eq.s32.totalorder %s32, 0
      %p95 = por %p93, %p94
      %p96 = scmp.ne.s32.totalorder %s84, %s85
      %p97 = scmp.eq.s32.totalorder %s33, 1
      %p98 = por %p96, %p97
      %p100 = scmp.ne.s32.totalorder %s85, %s99
      %p101 = scmp.eq.s32.totalorder %s33, 0
      %p102 = por %p100, %p101
      %s104 = sadd.s32 %s103, 1
      %p107 = scmp.eq.s32.totalorder %s27, 1
      %p108 = scmp.ne.s32.totalorder %s103, %s105
      %p109 = scmp.eq.s32.totalorder %s27, 0
      %p110 = por %p108, %p109
      %p111 = scmp.ne.s32.totalorder %s103, %s105
      %p112 = scmp.eq.s32.totalorder %s32, 1
      %p113 = por %p111, %p112
      %p114 = scmp.ne.s32.totalorder %s105, %s106
      %p115 = scmp.eq.s32.totalorder %s32, 0
      %p116 = por %p114, %p115
      %p117 = scmp.ne.s32.totalorder %s105, %s106
      %p118 = scmp.eq.s32.totalorder %s33, 1
      %p119 = por %p117, %p118
      %p121 = scmp.ne.s32.totalorder %s106, %s120
      %p122 = scmp.eq.s32.totalorder %s33, 0
      %p123 = por %p121, %p122
      %s125 = sadd.s32 %s124, 1
      %p128 = scmp.eq.s32.totalorder %s27, 1
      %p129 = scmp.ne.s32.totalorder %s124, %s126
      %p130 = scmp.eq.s32.totalorder %s27, 0
      %p131 = por %p129, %p130
      %p132 = scmp.ne.s32.totalorder %s124, %s126
      %p133 = scmp.eq.s32.totalorder %s32, 1
      %p134 = por %p132, %p133
      %p135 = scmp.ne.s32.totalorder %s126, %s127
      %p136 = scmp.eq.s32.totalorder %s32, 0
      %p137 = por %p135, %p136
      %p138 = scmp.ne.s32.totalorder %s126, %s127
      %p139 = scmp.eq.s32.totalorder %s33, 1
      %p140 = por %p138, %p139
      %p142 = scmp.ne.s32.totalorder %s127, %s141
      %p143 = scmp.eq.s32.totalorder %s33, 0
      %p144 = por %p142, %p143
      %s146 = sadd.s32 %s145, 1
      %p149 = scmp.eq.s32.totalorder %s27, 1
      %p150 = scmp.ne.s32.totalorder %s145, %s147
      %p151 = scmp.eq.s32.totalorder %s27, 0
      %p152 = por %p150, %p151
      %p153 = scmp.ne.s32.totalorder %s145, %s147
      %p154 = scmp.eq.s32.totalorder %s32, 1
      %p155 = por %p153, %p154
      %p156 = scmp.ne.s32.totalorder %s147, %s148
      %p157 = scmp.eq.s32.totalorder %s32, 0
      %p158 = por %p156, %p157
      %p159 = scmp.ne.s32.totalorder %s147, %s148
      %p160 = scmp.eq.s32.totalorder %s33, 1
      %p161 = por %p159, %p160
      %p163 = scmp.ne.s32.totalorder %s148, %s162
      %p164 = scmp.eq.s32.totalorder %s33, 0
      %p165 = por %p163, %p164
      %s167 = sadd.s32 %s166, 1
      %p170 = scmp.eq.s32.totalorder %s27, 1
      %p171 = scmp.ne.s32.totalorder %s166, %s168
      %p172 = scmp.eq.s32.totalorder %s27, 0
      %p173 = por %p171, %p172
      %p174 = scmp.ne.s32.totalorder %s166, %s168
      %p175 = scmp.eq.s32.totalorder %s32, 1
      %p176 = por %p174, %p175
      %p177 = scmp.ne.s32.totalorder %s168, %s169
      %p178 = scmp.eq.s32.totalorder %s32, 0
      %p179 = por %p177, %p178
      %p180 = scmp.ne.s32.totalorder %s168, %s169
      %p181 = scmp.eq.s32.totalorder %s33, 1
      %p182 = por %p180, %p181
      %p184 = scmp.ne.s32.totalorder %s169, %s183
      %p185 = scmp.eq.s32.totalorder %s33, 0
      %p186 = por %p184, %p185
      %s188 = sadd.s32 %s187, 1
      %p191 = scmp.eq.s32.totalorder %s27, 1
      %p192 = scmp.ne.s32.totalorder %s187, %s189
      %p193 = scmp.eq.s32.totalorder %s27, 0
      %p194 = por %p192, %p193
      %p195 = scmp.ne.s32.totalorder %s187, %s189
      %p196 = scmp.eq.s32.totalorder %s32, 1
      %p197 = por %p195, %p196
      %p198 = scmp.ne.s32.totalorder %s189, %s190
      %p199 = scmp.eq.s32.totalorder %s32, 0
      %p200 = por %p198, %p199
      %p201 = scmp.ne.s32.totalorder %s189, %s190
      %p202 = scmp.eq.s32.totalorder %s33, 1
      %p203 = por %p201, %p202
      %p205 = scmp.ne.s32.totalorder %s190, %s204
      %p206 = scmp.eq.s32.totalorder %s33, 0
      %p207 = por %p205, %p206
      %s209 = sadd.s32 %s208, 1
      %p212 = scmp.eq.s32.totalorder %s27, 1
      %p213 = scmp.ne.s32.totalorder %s208, %s210
      %p214 = scmp.eq.s32.totalorder %s27, 0
      %p215 = por %p213, %p214
      %p216 = scmp.ne.s32.totalorder %s208, %s210
      %p217 = scmp.eq.s32.totalorder %s32, 1
      %p218 = por %p216, %p217
      %p219 = scmp.ne.s32.totalorder %s210, %s211
      %p220 = scmp.eq.s32.totalorder %s32, 0
      %p221 = por %p219, %p220
      %p222 = scmp.ne.s32.totalorder %s210, %s211
      %p223 = scmp.eq.s32.totalorder %s33, 1
      %p224 = por %p222, %p223
      %p226 = scmp.ne.s32.totalorder %s211, %s225
      %p227 = scmp.eq.s32.totalorder %s33, 0
      %p228 = por %p226, %p227
      %s229 = ssub.s32 %s27, %s34
      %p230 = scmp.eq.s32.totalorder %s229, 0
      %s232 = sadd.s32 %s231, 1
      %s233 = scalar_select %p230, %s231, %s232
      %p236 = pneg %p230
      %p237 = scmp.eq.s32.totalorder %s27, 1
      %p238 = por %p236, %p237
      %p239 = scmp.ne.s32.totalorder %s231, %s234
      %p240 = scmp.eq.s32.totalorder %s27, 0
      %p241 = por %p239, %p240
      %p242 = scmp.ne.s32.totalorder %s231, %s234
      %p243 = scmp.eq.s32.totalorder %s32, 1
      %p244 = por %p242, %p243
      %p245 = scmp.ne.s32.totalorder %s234, %s235
      %p246 = scmp.eq.s32.totalorder %s32, 0
      %p247 = por %p245, %p246
      %p248 = scmp.ne.s32.totalorder %s234, %s235
      %p249 = scmp.eq.s32.totalorder %s33, 1
      %p250 = por %p248, %p249
      %p252 = scmp.ne.s32.totalorder %s235, %s251
      %p253 = scmp.eq.s32.totalorder %s33, 0
      %p254 = por %p252, %p253
      %p255 = scmp.le.s32.totalorder 1, %s27
      %p256 = scmp.lt.s32.totalorder %s27, 3
      %p257 = pnand %p255, %p256
      %p258 = pneg %p257
      // Predicated region
      $region9: #{tpu_custom_call.1} parent=5 // pred_check
        _
      $region10: #{tpu_custom_call.1} parent=5 // pred_check_branch
        %260 = sbr.rel (%p257) target = $region12
      $region11: #{tpu_custom_call.1} parent=5 // pred_region
        %s261 = ssub.s32 %s27, 1
        // Predicated region
        $region13: #{tpu_custom_call.1} parent=11 // pred_check
          %p262 = pneg %p74
        $region14: #{tpu_custom_call.1} parent=11 // pred_check_branch
          %264 = sbr.rel (%p262) target = $region16
        $region15: #{tpu_custom_call.1} parent=11 // pred_region
          %s266 = ssub.s32 16, 16
          %267 = vsyncadd [#allocation8], %s266
          %s269 = sshll.u32 %s1, 4
          %s270 = int_to_ptr.vmem [resolvable:$true] %s269
          %272 = dma.vmem_to_smem %s270, 16, [#allocation9], [#allocation8]
        $region16: #{tpu_custom_call.1} parent=11 // pred_fallthru
          _
        // Predicated region
        $region17: #{tpu_custom_call.1} parent=11 // pred_check
          %p273 = pneg %p95
        $region18: #{tpu_custom_call.1} parent=11 // pred_check_branch
          %275 = sbr.rel (%p273) target = $region20
        $region19: #{tpu_custom_call.1} parent=11 // pred_region
          %s277 = ssub.s32 16, 16
          %278 = vsyncadd [#allocation11], %s277
          %s280 = sshll.u32 %s2, 4
          %s281 = int_to_ptr.vmem [resolvable:$true] %s280
          %283 = dma.vmem_to_smem %s281, 16, [#allocation10], [#allocation11]
        $region20: #{tpu_custom_call.1} parent=11 // pred_fallthru
          _
        // Predicated region
        $region21: #{tpu_custom_call.1} parent=11 // pred_check
          %p284 = pneg %p116
        $region22: #{tpu_custom_call.1} parent=11 // pred_check_branch
          %286 = sbr.rel (%p284) target = $region24
        $region23: #{tpu_custom_call.1} parent=11 // pred_region
          _
        $region24: #{tpu_custom_call.1} parent=11 // pred_fallthru
          _
        // Predicated region
        $region25: #{tpu_custom_call.1} parent=11 // pred_check
          %p287 = pneg %p137
        $region26: #{tpu_custom_call.1} parent=11 // pred_check_branch
          %289 = sbr.rel (%p287) target = $region28
        $region27: #{tpu_custom_call.1} parent=11 // pred_region
          %s291 = ssub.s32 48, 48
          %292 = vsyncadd [#allocation11], %s291
          %s294 = sshll.u32 %s4, 4
          %s295 = int_to_ptr.vmem [resolvable:$true] %s294
          %297 = dma.vmem_to_smem %s295, 48, [#allocation12], [#allocation11]
        $region28: #{tpu_custom_call.1} parent=11 // pred_fallthru
          _
        // Predicated region
        $region29: #{tpu_custom_call.1} parent=11 // pred_check
          %p298 = pneg %p158
        $region30: #{tpu_custom_call.1} parent=11 // pred_check_branch
          %300 = sbr.rel (%p298) target = $region32
        $region31: #{tpu_custom_call.1} parent=11 // pred_region
          %s302 = ssub.s32 16, 16
          %303 = vsyncadd [#allocation14], %s302
          %s305 = sshll.u32 %s5, 4
          %s306 = int_to_ptr.vmem [resolvable:$true] %s305
          %308 = dma.vmem_to_smem %s306, 16, [#allocation13], [#allocation14]
        $region32: #{tpu_custom_call.1} parent=11 // pred_fallthru
          _
        // Predicated region
        $region33: #{tpu_custom_call.1} parent=11 // pred_check
          %p309 = pneg %p179
        $region34: #{tpu_custom_call.1} parent=11 // pred_check_branch
          %311 = sbr.rel (%p309) target = $region36
        $region35: #{tpu_custom_call.1} parent=11 // pred_region
          _
        $region36: #{tpu_custom_call.1} parent=11 // pred_fallthru
          _
        // Predicated region
        $region37: #{tpu_custom_call.1} parent=11 // pred_check
          %p312 = pneg %p200
        $region38: #{tpu_custom_call.1} parent=11 // pred_check_branch
          %314 = sbr.rel (%p312) target = $region40
        $region39: #{tpu_custom_call.1} parent=11 // pred_region
          %s316 = ssub.s32 16, 16
          %317 = vsyncadd [#allocation14], %s316
          %s319 = sshll.u32 %s7, 4
          %s320 = int_to_ptr.vmem [resolvable:$true] %s319
          %322 = dma.vmem_to_smem %s320, 16, [#allocation15], [#allocation14]
        $region40: #{tpu_custom_call.1} parent=11 // pred_fallthru
          _
        // Predicated region
        $region41: #{tpu_custom_call.1} parent=11 // pred_check
          %p323 = pneg %p221
        $region42: #{tpu_custom_call.1} parent=11 // pred_check_branch
          %325 = sbr.rel (%p323) target = $region44
        $region43: #{tpu_custom_call.1} parent=11 // pred_region
          _
        $region44: #{tpu_custom_call.1} parent=11 // pred_fallthru
          _
      $region12: #{tpu_custom_call.1} parent=5 // pred_fallthru
        _
      %p326 = scmp.lt.s32.totalorder %s27, 2
      // Predicated region
      $region45: #{tpu_custom_call.1} parent=5 // pred_check
        %p327 = pneg %p326
      $region46: #{tpu_custom_call.1} parent=5 // pred_check_branch
        %329 = sbr.rel (%p327) target = $region48
      $region47: #{tpu_custom_call.1} parent=5 // pred_region
        // Predicated region
        $region49: #{tpu_custom_call.1} parent=47 // pred_check
          %p330 = pneg %p47
        $region50: #{tpu_custom_call.1} parent=47 // pred_check_branch
          %332 = sbr.rel (%p330) target = $region52
        $region51: #{tpu_custom_call.1} parent=47 // pred_region
          %s333 = sand.u32 %s37, 1
          %s334 = scalar_lea.sflag [#allocation6], %s333
          %s335 = sand.u32 %s37, 1
          %s336 = smul.addr %s335, 16
          %s337 = scalar_lea.vmem [#allocation5], %s336
          %s338 = smul.u32 2, %s27
          %s339 = ssub.s32 3, %s338
          %p340 = scmp.lt.s32.totalorder %s339, 2
          %s341 = scalar_select %p340, %s339, 2
          %s342 = smul.u32 128, %s341
          %s344 = ssub.s32 256, %s342
          %345 = vsyncadd %s334, %s344
          %p346 = scmp.ne.s32.totalorder 0, %s342
          %s347 = smul.addr %s338, 128
          %s348 = scalar_lea.hbm %s0, %s347
          %s349 = smul.u32 8, %s341
          %s350 = sshll.u32 %s337, 4
          %s351 = int_to_ptr.vmem [resolvable:$true] %s350
          %s352 = sshll.u32 %s349, 4
          %356 = dma.hbm_to_vmem [thread:$0]  (%p346), %s348, %s352, %s351, %s334, 128, 128, 8
        $region52: #{tpu_custom_call.1} parent=47 // pred_fallthru
          _
      $region48: #{tpu_custom_call.1} parent=5 // pred_fallthru
        _
      %p357 = scmp.le.s32.totalorder 1, %s27
      %p358 = scmp.lt.s32.totalorder %s27, 3
      %p359 = pnand %p357, %p358
      %p360 = pneg %p359
      // Predicated region
      $region53: #{tpu_custom_call.1} parent=5 // pred_check
        _
      $region54: #{tpu_custom_call.1} parent=5 // pred_check_branch
        %362 = sbr.rel (%p359) target = $region56
      $region55: #{tpu_custom_call.1} parent=5 // pred_region
        %s363 = ssub.s32 %s27, 1
        %s364 = sand.u32 %s40, 1
        %s365 = scalar_lea.sflag [#allocation6], %s364
        %s366 = sand.u32 %s40, 1
        %s367 = smul.addr %s366, 16
        %s368 = scalar_lea.vmem [#allocation5], %s367
        // Predicated region
        $region57: #{tpu_custom_call.1} parent=55 // pred_check
          %p369 = pneg %p53
        $region58: #{tpu_custom_call.1} parent=55 // pred_check_branch
          %371 = sbr.rel (%p369) target = $region60
        $region59: #{tpu_custom_call.1} parent=55 // pred_region
          %372 = dma.done %s365, 256
        $region60: #{tpu_custom_call.1} parent=55 // pred_fallthru
          _
        // Predicated region
        $region61: #{tpu_custom_call.1} parent=55 // pred_check
          %p373 = pneg %p74
        $region62: #{tpu_custom_call.1} parent=55 // pred_check_branch
          %375 = sbr.rel (%p373) target = $region64
        $region63: #{tpu_custom_call.1} parent=55 // pred_region
          %376 = dma.done [#allocation8], 16
        $region64: #{tpu_custom_call.1} parent=55 // pred_fallthru
          _
        // Predicated region
        $region65: #{tpu_custom_call.1} parent=55 // pred_check
          %p377 = pneg %p95
        $region66: #{tpu_custom_call.1} parent=55 // pred_check_branch
          %379 = sbr.rel (%p377) target = $region68
        $region67: #{tpu_custom_call.1} parent=55 // pred_region
          %380 = dma.done [#allocation11], 16
        $region68: #{tpu_custom_call.1} parent=55 // pred_fallthru
          _
        // Predicated region
        $region69: #{tpu_custom_call.1} parent=55 // pred_check
          %p381 = pneg %p137
        $region70: #{tpu_custom_call.1} parent=55 // pred_check_branch
          %383 = sbr.rel (%p381) target = $region72
        $region71: #{tpu_custom_call.1} parent=55 // pred_region
          %384 = dma.done [#allocation11], 48
        $region72: #{tpu_custom_call.1} parent=55 // pred_fallthru
          _
        // Predicated region
        $region73: #{tpu_custom_call.1} parent=55 // pred_check
          %p385 = pneg %p158
        $region74: #{tpu_custom_call.1} parent=55 // pred_check_branch
          %387 = sbr.rel (%p385) target = $region76
        $region75: #{tpu_custom_call.1} parent=55 // pred_region
          %388 = dma.done [#allocation14], 16
        $region76: #{tpu_custom_call.1} parent=55 // pred_fallthru
          _
        // Predicated region
        $region77: #{tpu_custom_call.1} parent=55 // pred_check
          %p389 = pneg %p200
        $region78: #{tpu_custom_call.1} parent=55 // pred_check_branch
          %391 = sbr.rel (%p389) target = $region80
        $region79: #{tpu_custom_call.1} parent=55 // pred_region
          %392 = dma.done [#allocation14], 16
        $region80: #{tpu_custom_call.1} parent=55 // pred_fallthru
          _
        %393 = sfence
        %s394 = sand.u32 %s40, 1
        %s395 = scalar_lea.sflag [#allocation6], %s394
        %s396 = sand.u32 %s40, 1
        %s397 = smul.addr %s396, 16
        %s398 = scalar_lea.vmem [#allocation5], %s397
        %p399 = pneg %p53
        %p400 = pneg %p50
        %p401 = pneg %p74
        %p402 = pneg %p71
        %p403 = pneg %p95
        %p404 = pneg %p92
        %p405 = pneg %p116
        %p406 = pneg %p113
        %p407 = pneg %p137
        %p408 = pneg %p134
        %p409 = pneg %p158
        %p410 = pneg %p155
        %p411 = pneg %p179
        %p412 = pneg %p176
        %p413 = pneg %p200
        %p414 = pneg %p197
        %p415 = pneg %p221
        %p416 = pneg %p218
        %p417 = pneg %p247
        %p418 = pneg %p244
        %s419 = sand.u32 %s234, 1
        %s420 = scalar_lea.sflag [#allocation7], %s419
        %s421 = sand.u32 %s234, 1
        %s422 = smul.addr %s421, 16
        %s423 = scalar_lea.vmem [#allocation16], %s422
        %s424 = smul.u32 2, %s32
        %s425 = ssub.s32 3, %s424
        %p426 = scmp.lt.s32.totalorder %s425, 2
        %s427 = scalar_select %p426, %s425, 2
        %s428 = smul.u32 128, %s427
        %s429 = smul.u32 2, %s32
        %s430 = ssub.s32 3, %s429
        %p431 = scmp.lt.s32.totalorder %s430, 2
        %s432 = scalar_select %p431, %s430, 2
        %s433 = smul.u32 128, %s432
        %v434 = vlaneseq
        %v435 = vand.u32 %v434, 127
        %vm436 = vcmp.lt.s32.totalorder %v435, 99
        %vm437 = vcmp.lt.s32.totalorder %v435, 98
        %vm438 = vcmp.ge.s32.totalorder %v435, 1
        %vm439 = vcmp.ge.s32.totalorder %v435, 2
        %s440 = sld [smem:[#allocation9]]
        %s441 = sld [smem:[#allocation9 + $0x1]]
        %s442 = sld [smem:[#allocation9 + $0x2]]
        %s443 = sld [smem:[#allocation9 + $0x3]]
        %s444 = sld [smem:[#allocation9 + $0x4]]
        %s445 = sld [smem:[#allocation9 + $0x5]]
        %s446 = sld [smem:[#allocation9 + $0x6]]
        %s447 = sld [smem:[#allocation9 + $0x7]]
        %s448 = sld [smem:[#allocation9 + $0x8]]
        %s449 = sld [smem:[#allocation9 + $0x9]]
        %s450 = sld [smem:[#allocation9 + $0xa]]
        %s451 = sld [smem:[#allocation9 + $0xb]]
        %s452 = sld [smem:[#allocation9 + $0xc]]
        %s453 = sld [smem:[#allocation9 + $0xd]]
        %s454 = sld [smem:[#allocation9 + $0xe]]
        %s455 = sld [smem:[#allocation9 + $0xf]]
        %s456 = sld [smem:[#allocation9 + $0x10]]
        %s457 = sld [smem:[#allocation9 + $0x11]]
        %s458 = sld [smem:[#allocation9 + $0x12]]
        %s459 = sld [smem:[#allocation9 + $0x13]]
        %s460 = sld [smem:[#allocation9 + $0x14]]
        %s461 = sld [smem:[#allocation9 + $0x15]]
        %s462 = sld [smem:[#allocation9 + $0x16]]
        %s463 = sld [smem:[#allocation9 + $0x17]]
        %s464 = sld [smem:[#allocation9 + $0x18]]
        %s465 = sld [smem:[#allocation9 + $0x19]]
        %s466 = sld [smem:[#allocation9 + $0x1a]]
        %s467 = sld [smem:[#allocation9 + $0x1b]]
        %s468 = sld [smem:[#allocation9 + $0x1c]]
        %s469 = sld [smem:[#allocation9 + $0x1d]]
        %s470 = sld [smem:[#allocation9 + $0x1e]]
        %s471 = sld [smem:[#allocation9 + $0x1f]]
        %s472 = sld [smem:[#allocation9 + $0x20]]
        %s473 = sld [smem:[#allocation9 + $0x21]]
        %s474 = sld [smem:[#allocation9 + $0x22]]
        %s475 = sld [smem:[#allocation9 + $0x23]]
        %s476 = sld [smem:[#allocation9 + $0x24]]
        %s477 = sld [smem:[#allocation9 + $0x25]]
        %s478 = sld [smem:[#allocation9 + $0x26]]
        %s479 = sld [smem:[#allocation9 + $0x27]]
        %s480 = sld [smem:[#allocation10]]
        %s481 = sld [smem:[#allocation10 + $0x1]]
        %s482 = sld [smem:[#allocation10 + $0x2]]
        %s483 = sld [smem:[#allocation10 + $0x3]]
        %s484 = sld [smem:[#allocation10 + $0x4]]
        %s485 = sld [smem:[#allocation10 + $0x5]]
        %s486 = sld [smem:[#allocation10 + $0x6]]
        %s487 = sld [smem:[#allocation10 + $0x7]]
        %s488 = sld [smem:[#allocation2]]
        %s489 = sld [smem:[#allocation13]]
        %s490 = sld [smem:[#allocation13 + $0x1]]
        %s491 = sld [smem:[#allocation13 + $0x2]]
        %s492 = sld [smem:[#allocation13 + $0x3]]
        %s493 = sld [smem:[#allocation13 + $0x4]]
        %s494 = sld [smem:[#allocation13 + $0x5]]
        %s495 = sld [smem:[#allocation13 + $0x6]]
        %s496 = sld [smem:[#allocation13 + $0x7]]
        %s497 = sld [smem:[#allocation3]]
        %s498 = sld [smem:[#allocation15]]
        %s499 = sld [smem:[#allocation15 + $0x1]]
        %s500 = sld [smem:[#allocation15 + $0x2]]
        %s501 = sld [smem:[#allocation15 + $0x3]]
        %s502 = sld [smem:[#allocation15 + $0x4]]
        %s503 = sld [smem:[#allocation15 + $0x5]]
        %s504 = sld [smem:[#allocation15 + $0x6]]
        %s505 = sld [smem:[#allocation15 + $0x7]]
        %s506 = sld [smem:[#allocation15 + $0x8]]
        %s507 = sld [smem:[#allocation15 + $0x9]]
        %s508 = sld [smem:[#allocation15 + $0xa]]
        %s509 = sld [smem:[#allocation15 + $0xb]]
        %s510 = sld [smem:[#allocation15 + $0xc]]
        %s511 = sld [smem:[#allocation15 + $0xd]]
        %s512 = sld [smem:[#allocation15 + $0xe]]
        %s513 = sld [smem:[#allocation15 + $0xf]]
        %s514 = sld [smem:[#allocation15 + $0x10]]
        %s515 = sld [smem:[#allocation15 + $0x11]]
        %s516 = sld [smem:[#allocation15 + $0x12]]
        %s517 = sld [smem:[#allocation15 + $0x13]]
        %s518 = sld [smem:[#allocation15 + $0x14]]
        %s519 = sld [smem:[#allocation15 + $0x15]]
        %s520 = sld [smem:[#allocation15 + $0x16]]
        %s521 = sld [smem:[#allocation15 + $0x17]]
        %s522 = sld [smem:[#allocation15 + $0x18]]
        %s523 = sld [smem:[#allocation15 + $0x19]]
        %s524 = sld [smem:[#allocation15 + $0x1a]]
        %s525 = sld [smem:[#allocation15 + $0x1b]]
        %s526 = sld [smem:[#allocation15 + $0x1c]]
        %s527 = sld [smem:[#allocation15 + $0x1d]]
        %s528 = sld [smem:[#allocation15 + $0x1e]]
        %s529 = sld [smem:[#allocation15 + $0x1f]]
        %s530 = sld [smem:[#allocation15 + $0x20]]
        %s531 = sld [smem:[#allocation15 + $0x21]]
        %s532 = sld [smem:[#allocation15 + $0x22]]
        %s533 = sld [smem:[#allocation15 + $0x23]]
        %s534 = sld [smem:[#allocation15 + $0x24]]
        %s535 = sld [smem:[#allocation15 + $0x25]]
        %s536 = sld [smem:[#allocation15 + $0x26]]
        %s537 = sld [smem:[#allocation15 + $0x27]]
        %s538 = sld [smem:[#allocation4]]
        %v539 = vld [vmem:[%s368] sm:$0xff]
        %v540 = vld [vmem:[%s368 + $0x8] sm:$0xff]
        %541 = vrot.lane.b32.xlu0 %v539, 2
        %v542 = vpop.permute.xlu0 %541
        %543 = vrot.lane.b32.xlu0 %v540, 2
        %v544 = vpop.permute.xlu0 %543
        %v545 = vsel %vm439, %v542, 0.0
        %v546 = vsel %vm439, %v544, 0.0
        %547 = vrot.lane.b32.xlu0 %v539, 1
        %v548 = vpop.permute.xlu0 %547
        %549 = vrot.lane.b32.xlu0 %v540, 1
        %v550 = vpop.permute.xlu0 %549
        %v551 = vsel %vm438, %v548, 0.0
        %v552 = vsel %vm438, %v550, 0.0
        %553 = vrot.lane.b32.xlu0 %v539, 127
        %v554 = vpop.permute.xlu0 %553
        %555 = vrot.lane.b32.xlu0 %v540, 127
        %v556 = vpop.permute.xlu0 %555
        %v557 = vsel %vm436, %v554, 0.0
        %v558 = vsel %vm436, %v556, 0.0
        %559 = vrot.lane.b32.xlu0 %v539, 126
        %v560 = vpop.permute.xlu0 %559
        %561 = vrot.lane.b32.xlu0 %v540, 126
        %v562 = vpop.permute.xlu0 %561
        %v563 = vsel %vm437, %v560, 0.0
        %v564 = vsel %vm437, %v562, 0.0
        %v565 = vstv %s440
        %v566 = vmul.f32 %v545, %v565
        %v567 = vmul.f32 %v546, %v565
        %v568 = vstv %s441
        %v569 = vmul.f32 %v551, %v568
        %v570 = vmul.f32 %v552, %v568
        %v571 = vadd.f32 %v566, %v569
        %v572 = vadd.f32 %v567, %v570
        %v573 = vstv %s442
        %v574 = vmul.f32 %v539, %v573
        %v575 = vmul.f32 %v540, %v573
        %v576 = vadd.f32 %v571, %v574
        %v577 = vadd.f32 %v572, %v575
        %v578 = vstv %s443
        %v579 = vmul.f32 %v557, %v578
        %v580 = vmul.f32 %v558, %v578
        %v581 = vadd.f32 %v576, %v579
        %v582 = vadd.f32 %v577, %v580
        %v583 = vstv %s444
        %v584 = vmul.f32 %v563, %v583
        %v585 = vmul.f32 %v564, %v583
        %v586 = vadd.f32 %v581, %v584
        %v587 = vadd.f32 %v582, %v585
        %v588 = vstv %s480
        %v589 = vadd.f32 %v586, %v588
        %v590 = vadd.f32 %v587, %v588
        %vm591 = vcmp.ge.f32.partialorder %v589, 0.0
        %vm592 = vcmp.ge.f32.partialorder %v590, 0.0
        %v593 = vstv %s488
        %v594 = vmul.f32 %v593, %v589
        %v595 = vmul.f32 %v593, %v590
        %v596 = vsel %vm591, %v589, %v594
        %v597 = vsel %vm592, %v590, %v595
        %v598 = vstv %s445
        %v599 = vmul.f32 %v545, %v598
        %v600 = vmul.f32 %v546, %v598
        %v601 = vstv %s446
        %v602 = vmul.f32 %v551, %v601
        %v603 = vmul.f32 %v552, %v601
        %v604 = vadd.f32 %v599, %v602
        %v605 = vadd.f32 %v600, %v603
        %v606 = vstv %s447
        %v607 = vmul.f32 %v539, %v606
        %v608 = vmul.f32 %v540, %v606
        %v609 = vadd.f32 %v604, %v607
        %v610 = vadd.f32 %v605, %v608
        %v611 = vstv %s448
        %v612 = vmul.f32 %v557, %v611
        %v613 = vmul.f32 %v558, %v611
        %v614 = vadd.f32 %v609, %v612
        %v615 = vadd.f32 %v610, %v613
        %v616 = vstv %s449
        %v617 = vmul.f32 %v563, %v616
        %v618 = vmul.f32 %v564, %v616
        %v619 = vadd.f32 %v614, %v617
        %v620 = vadd.f32 %v615, %v618
        %v621 = vstv %s481
        %v622 = vadd.f32 %v619, %v621
        %v623 = vadd.f32 %v620, %v621
        %vm624 = vcmp.ge.f32.partialorder %v622, 0.0
        %vm625 = vcmp.ge.f32.partialorder %v623, 0.0
        %v626 = vmul.f32 %v593, %v622
        %v627 = vmul.f32 %v593, %v623
        %v628 = vsel %vm624, %v622, %v626
        %v629 = vsel %vm625, %v623, %v627
        %v630 = vstv %s450
        %v631 = vmul.f32 %v545, %v630
        %v632 = vmul.f32 %v546, %v630
        %v633 = vstv %s451
        %v634 = vmul.f32 %v551, %v633
        %v635 = vmul.f32 %v552, %v633
        %v636 = vadd.f32 %v631, %v634
        %v637 = vadd.f32 %v632, %v635
        %v638 = vstv %s452
        %v639 = vmul.f32 %v539, %v638
        %v640 = vmul.f32 %v540, %v638
        %v641 = vadd.f32 %v636, %v639
        %v642 = vadd.f32 %v637, %v640
        %v643 = vstv %s453
        %v644 = vmul.f32 %v557, %v643
        %v645 = vmul.f32 %v558, %v643
        %v646 = vadd.f32 %v641, %v644
        %v647 = vadd.f32 %v642, %v645
        %v648 = vstv %s454
        %v649 = vmul.f32 %v563, %v648
        %v650 = vmul.f32 %v564, %v648
        %v651 = vadd.f32 %v646, %v649
        %v652 = vadd.f32 %v647, %v650
        %v653 = vstv %s482
        %v654 = vadd.f32 %v651, %v653
        %v655 = vadd.f32 %v652, %v653
        %vm656 = vcmp.ge.f32.partialorder %v654, 0.0
        %vm657 = vcmp.ge.f32.partialorder %v655, 0.0
        %v658 = vmul.f32 %v593, %v654
        %v659 = vmul.f32 %v593, %v655
        %v660 = vsel %vm656, %v654, %v658
        %v661 = vsel %vm657, %v655, %v659
        %v662 = vstv %s455
        %v663 = vmul.f32 %v545, %v662
        %v664 = vmul.f32 %v546, %v662
        %v665 = vstv %s456
        %v666 = vmul.f32 %v551, %v665
        %v667 = vmul.f32 %v552, %v665
        %v668 = vadd.f32 %v663, %v666
        %v669 = vadd.f32 %v664, %v667
        %v670 = vstv %s457
        %v671 = vmul.f32 %v539, %v670
        %v672 = vmul.f32 %v540, %v670
        %v673 = vadd.f32 %v668, %v671
        %v674 = vadd.f32 %v669, %v672
        %v675 = vstv %s458
        %v676 = vmul.f32 %v557, %v675
        %v677 = vmul.f32 %v558, %v675
        %v678 = vadd.f32 %v673, %v676
        %v679 = vadd.f32 %v674, %v677
        %v680 = vstv %s459
        %v681 = vmul.f32 %v563, %v680
        %v682 = vmul.f32 %v564, %v680
        %v683 = vadd.f32 %v678, %v681
        %v684 = vadd.f32 %v679, %v682
        %v685 = vstv %s483
        %v686 = vadd.f32 %v683, %v685
        %v687 = vadd.f32 %v684, %v685
        %vm688 = vcmp.ge.f32.partialorder %v686, 0.0
        %vm689 = vcmp.ge.f32.partialorder %v687, 0.0
        %v690 = vmul.f32 %v593, %v686
        %v691 = vmul.f32 %v593, %v687
        %v692 = vsel %vm688, %v686, %v690
        %v693 = vsel %vm689, %v687, %v691
        %v694 = vstv %s460
        %v695 = vmul.f32 %v545, %v694
        %v696 = vmul.f32 %v546, %v694
        %v697 = vstv %s461
        %v698 = vmul.f32 %v551, %v697
        %v699 = vmul.f32 %v552, %v697
        %v700 = vadd.f32 %v695, %v698
        %v701 = vadd.f32 %v696, %v699
        %v702 = vstv %s462
        %v703 = vmul.f32 %v539, %v702
        %v704 = vmul.f32 %v540, %v702
        %v705 = vadd.f32 %v700, %v703
        %v706 = vadd.f32 %v701, %v704
        %v707 = vstv %s463
        %v708 = vmul.f32 %v557, %v707
        %v709 = vmul.f32 %v558, %v707
        %v710 = vadd.f32 %v705, %v708
        %v711 = vadd.f32 %v706, %v709
        %v712 = vstv %s464
        %v713 = vmul.f32 %v563, %v712
        %v714 = vmul.f32 %v564, %v712
        %v715 = vadd.f32 %v710, %v713
        %v716 = vadd.f32 %v711, %v714
        %v717 = vstv %s484
        %v718 = vadd.f32 %v715, %v717
        %v719 = vadd.f32 %v716, %v717
        %vm720 = vcmp.ge.f32.partialorder %v718, 0.0
        %vm721 = vcmp.ge.f32.partialorder %v719, 0.0
        %v722 = vmul.f32 %v593, %v718
        %v723 = vmul.f32 %v593, %v719
        %v724 = vsel %vm720, %v718, %v722
        %v725 = vsel %vm721, %v719, %v723
        %v726 = vstv %s465
        %v727 = vmul.f32 %v545, %v726
        %v728 = vmul.f32 %v546, %v726
        %v729 = vstv %s466
        %v730 = vmul.f32 %v551, %v729
        %v731 = vmul.f32 %v552, %v729
        %v732 = vadd.f32 %v727, %v730
        %v733 = vadd.f32 %v728, %v731
        %v734 = vstv %s467
        %v735 = vmul.f32 %v539, %v734
        %v736 = vmul.f32 %v540, %v734
        %v737 = vadd.f32 %v732, %v735
        %v738 = vadd.f32 %v733, %v736
        %v739 = vstv %s468
        %v740 = vmul.f32 %v557, %v739
        %v741 = vmul.f32 %v558, %v739
        %v742 = vadd.f32 %v737, %v740
        %v743 = vadd.f32 %v738, %v741
        %v744 = vstv %s469
        %v745 = vmul.f32 %v563, %v744
        %v746 = vmul.f32 %v564, %v744
        %v747 = vadd.f32 %v742, %v745
        %v748 = vadd.f32 %v743, %v746
        %v749 = vstv %s485
        %v750 = vadd.f32 %v747, %v749
        %v751 = vadd.f32 %v748, %v749
        %vm752 = vcmp.ge.f32.partialorder %v750, 0.0
        %vm753 = vcmp.ge.f32.partialorder %v751, 0.0
        %v754 = vmul.f32 %v593, %v750
        %v755 = vmul.f32 %v593, %v751
        %v756 = vsel %vm752, %v750, %v754
        %v757 = vsel %vm753, %v751, %v755
        %v758 = vstv %s470
        %v759 = vmul.f32 %v545, %v758
        %v760 = vmul.f32 %v546, %v758
        %v761 = vstv %s471
        %v762 = vmul.f32 %v551, %v761
        %v763 = vmul.f32 %v552, %v761
        %v764 = vadd.f32 %v759, %v762
        %v765 = vadd.f32 %v760, %v763
        %v766 = vstv %s472
        %v767 = vmul.f32 %v539, %v766
        %v768 = vmul.f32 %v540, %v766
        %v769 = vadd.f32 %v764, %v767
        %v770 = vadd.f32 %v765, %v768
        %v771 = vstv %s473
        %v772 = vmul.f32 %v557, %v771
        %v773 = vmul.f32 %v558, %v771
        %v774 = vadd.f32 %v769, %v772
        %v775 = vadd.f32 %v770, %v773
        %v776 = vstv %s474
        %v777 = vmul.f32 %v563, %v776
        %v778 = vmul.f32 %v564, %v776
        %v779 = vadd.f32 %v774, %v777
        %v780 = vadd.f32 %v775, %v778
        %v781 = vstv %s486
        %v782 = vadd.f32 %v779, %v781
        %v783 = vadd.f32 %v780, %v781
        %vm784 = vcmp.ge.f32.partialorder %v782, 0.0
        %vm785 = vcmp.ge.f32.partialorder %v783, 0.0
        %v786 = vmul.f32 %v593, %v782
        %v787 = vmul.f32 %v593, %v783
        %v788 = vsel %vm784, %v782, %v786
        %v789 = vsel %vm785, %v783, %v787
        %v790 = vstv %s475
        %v791 = vmul.f32 %v545, %v790
        %v792 = vmul.f32 %v546, %v790
        %v793 = vstv %s476
        %v794 = vmul.f32 %v551, %v793
        %v795 = vmul.f32 %v552, %v793
        %v796 = vadd.f32 %v791, %v794
        %v797 = vadd.f32 %v792, %v795
        %v798 = vstv %s477
        %v799 = vmul.f32 %v539, %v798
        %v800 = vmul.f32 %v540, %v798
        %v801 = vadd.f32 %v796, %v799
        %v802 = vadd.f32 %v797, %v800
        %v803 = vstv %s478
        %v804 = vmul.f32 %v557, %v803
        %v805 = vmul.f32 %v558, %v803
        %v806 = vadd.f32 %v801, %v804
        %v807 = vadd.f32 %v802, %v805
        %v808 = vstv %s479
        %v809 = vmul.f32 %v563, %v808
        %v810 = vmul.f32 %v564, %v808
        %v811 = vadd.f32 %v806, %v809
        %v812 = vadd.f32 %v807, %v810
        %v813 = vstv %s487
        %v814 = vadd.f32 %v811, %v813
        %v815 = vadd.f32 %v812, %v813
        %vm816 = vcmp.ge.f32.partialorder %v814, 0.0
        %vm817 = vcmp.ge.f32.partialorder %v815, 0.0
        %v818 = vmul.f32 %v593, %v814
        %v819 = vmul.f32 %v593, %v815
        %v820 = vsel %vm816, %v814, %v818
        %v821 = vsel %vm817, %v815, %v819
        %s822 = sld [smem:[#allocation12]]
        %v823 = vstv %s822
        %v824 = vmul.f32 %v596, %v823
        %v825 = vmul.f32 %v597, %v823
        %s826 = sld [smem:[#allocation12 + $0x5]]
        %v827 = vstv %s826
        %v828 = vmul.f32 %v628, %v827
        %v829 = vmul.f32 %v629, %v827
        %v830 = vadd.f32 %v824, %v828
        %v831 = vadd.f32 %v825, %v829
        %s832 = sld [smem:[#allocation12 + $0xa]]
        %v833 = vstv %s832
        %v834 = vmul.f32 %v660, %v833
        %v835 = vmul.f32 %v661, %v833
        %v836 = vadd.f32 %v830, %v834
        %v837 = vadd.f32 %v831, %v835
        %s838 = sld [smem:[#allocation12 + $0xf]]
        %v839 = vstv %s838
        %v840 = vmul.f32 %v692, %v839
        %v841 = vmul.f32 %v693, %v839
        %v842 = vadd.f32 %v836, %v840
        %v843 = vadd.f32 %v837, %v841
        %s844 = sld [smem:[#allocation12 + $0x14]]
        %v845 = vstv %s844
        %v846 = vmul.f32 %v724, %v845
        %v847 = vmul.f32 %v725, %v845
        %v848 = vadd.f32 %v842, %v846
        %v849 = vadd.f32 %v843, %v847
        %s850 = sld [smem:[#allocation12 + $0x19]]
        %v851 = vstv %s850
        %v852 = vmul.f32 %v756, %v851
        %v853 = vmul.f32 %v757, %v851
        %v854 = vadd.f32 %v848, %v852
        %v855 = vadd.f32 %v849, %v853
        %s856 = sld [smem:[#allocation12 + $0x1e]]
        %v857 = vstv %s856
        %v858 = vmul.f32 %v788, %v857
        %v859 = vmul.f32 %v789, %v857
        %v860 = vadd.f32 %v854, %v858
        %v861 = vadd.f32 %v855, %v859
        %s862 = sld [smem:[#allocation12 + $0x23]]
        %v863 = vstv %s862
        %v864 = vmul.f32 %v820, %v863
        %v865 = vmul.f32 %v821, %v863
        %v866 = vadd.f32 %v860, %v864
        %v867 = vadd.f32 %v861, %v865
        %868 = vrot.lane.b32.xlu0 %v866, 2
        %v869 = vpop.permute.xlu0 %868
        %870 = vrot.lane.b32.xlu0 %v867, 2
        %v871 = vpop.permute.xlu0 %870
        %v872 = vsel %vm439, %v869, 0.0
        %v873 = vsel %vm439, %v871, 0.0
        %s874 = sld [smem:[#allocation12 + $0x1]]
        %v875 = vstv %s874
        %v876 = vmul.f32 %v596, %v875
        %v877 = vmul.f32 %v597, %v875
        %s878 = sld [smem:[#allocation12 + $0x6]]
        %v879 = vstv %s878
        %v880 = vmul.f32 %v628, %v879
        %v881 = vmul.f32 %v629, %v879
        %v882 = vadd.f32 %v876, %v880
        %v883 = vadd.f32 %v877, %v881
        %s884 = sld [smem:[#allocation12 + $0xb]]
        %v885 = vstv %s884
        %v886 = vmul.f32 %v660, %v885
        %v887 = vmul.f32 %v661, %v885
        %v888 = vadd.f32 %v882, %v886
        %v889 = vadd.f32 %v883, %v887
        %s890 = sld [smem:[#allocation12 + $0x10]]
        %v891 = vstv %s890
        %v892 = vmul.f32 %v692, %v891
        %v893 = vmul.f32 %v693, %v891
        %v894 = vadd.f32 %v888, %v892
        %v895 = vadd.f32 %v889, %v893
        %s896 = sld [smem:[#allocation12 + $0x15]]
        %v897 = vstv %s896
        %v898 = vmul.f32 %v724, %v897
        %v899 = vmul.f32 %v725, %v897
        %v900 = vadd.f32 %v894, %v898
        %v901 = vadd.f32 %v895, %v899
        %s902 = sld [smem:[#allocation12 + $0x1a]]
        %v903 = vstv %s902
        %v904 = vmul.f32 %v756, %v903
        %v905 = vmul.f32 %v757, %v903
        %v906 = vadd.f32 %v900, %v904
        %v907 = vadd.f32 %v901, %v905
        %s908 = sld [smem:[#allocation12 + $0x1f]]
        %v909 = vstv %s908
        %v910 = vmul.f32 %v788, %v909
        %v911 = vmul.f32 %v789, %v909
        %v912 = vadd.f32 %v906, %v910
        %v913 = vadd.f32 %v907, %v911
        %s914 = sld [smem:[#allocation12 + $0x24]]
        %v915 = vstv %s914
        %v916 = vmul.f32 %v820, %v915
        %v917 = vmul.f32 %v821, %v915
        %v918 = vadd.f32 %v912, %v916
        %v919 = vadd.f32 %v913, %v917
        %920 = vrot.lane.b32.xlu0 %v918, 1
        %v921 = vpop.permute.xlu0 %920
        %922 = vrot.lane.b32.xlu0 %v919, 1
        %v923 = vpop.permute.xlu0 %922
        %v924 = vsel %vm438, %v921, 0.0
        %v925 = vsel %vm438, %v923, 0.0
        %v926 = vadd.f32 %v872, %v924
        %v927 = vadd.f32 %v873, %v925
        %s928 = sld [smem:[#allocation12 + $0x2]]
        %v929 = vstv %s928
        %v930 = vmul.f32 %v596, %v929
        %v931 = vmul.f32 %v597, %v929
        %s932 = sld [smem:[#allocation12 + $0x7]]
        %v933 = vstv %s932
        %v934 = vmul.f32 %v628, %v933
        %v935 = vmul.f32 %v629, %v933
        %v936 = vadd.f32 %v930, %v934
        %v937 = vadd.f32 %v931, %v935
        %s938 = sld [smem:[#allocation12 + $0xc]]
        %v939 = vstv %s938
        %v940 = vmul.f32 %v660, %v939
        %v941 = vmul.f32 %v661, %v939
        %v942 = vadd.f32 %v936, %v940
        %v943 = vadd.f32 %v937, %v941
        %s944 = sld [smem:[#allocation12 + $0x11]]
        %v945 = vstv %s944
        %v946 = vmul.f32 %v692, %v945
        %v947 = vmul.f32 %v693, %v945
        %v948 = vadd.f32 %v942, %v946
        %v949 = vadd.f32 %v943, %v947
        %s950 = sld [smem:[#allocation12 + $0x16]]
        %v951 = vstv %s950
        %v952 = vmul.f32 %v724, %v951
        %v953 = vmul.f32 %v725, %v951
        %v954 = vadd.f32 %v948, %v952
        %v955 = vadd.f32 %v949, %v953
        %s956 = sld [smem:[#allocation12 + $0x1b]]
        %v957 = vstv %s956
        %v958 = vmul.f32 %v756, %v957
        %v959 = vmul.f32 %v757, %v957
        %v960 = vadd.f32 %v954, %v958
        %v961 = vadd.f32 %v955, %v959
        %s962 = sld [smem:[#allocation12 + $0x20]]
        %v963 = vstv %s962
        %v964 = vmul.f32 %v788, %v963
        %v965 = vmul.f32 %v789, %v963
        %v966 = vadd.f32 %v960, %v964
        %v967 = vadd.f32 %v961, %v965
        %s968 = sld [smem:[#allocation12 + $0x25]]
        %v969 = vstv %s968
        %v970 = vmul.f32 %v820, %v969
        %v971 = vmul.f32 %v821, %v969
        %v972 = vadd.f32 %v966, %v970
        %v973 = vadd.f32 %v967, %v971
        %v974 = vadd.f32 %v926, %v972
        %v975 = vadd.f32 %v927, %v973
        %s976 = sld [smem:[#allocation12 + $0x3]]
        %v977 = vstv %s976
        %v978 = vmul.f32 %v596, %v977
        %v979 = vmul.f32 %v597, %v977
        %s980 = sld [smem:[#allocation12 + $0x8]]
        %v981 = vstv %s980
        %v982 = vmul.f32 %v628, %v981
        %v983 = vmul.f32 %v629, %v981
        %v984 = vadd.f32 %v978, %v982
        %v985 = vadd.f32 %v979, %v983
        %s986 = sld [smem:[#allocation12 + $0xd]]
        %v987 = vstv %s986
        %v988 = vmul.f32 %v660, %v987
        %v989 = vmul.f32 %v661, %v987
        %v990 = vadd.f32 %v984, %v988
        %v991 = vadd.f32 %v985, %v989
        %s992 = sld [smem:[#allocation12 + $0x12]]
        %v993 = vstv %s992
        %v994 = vmul.f32 %v692, %v993
        %v995 = vmul.f32 %v693, %v993
        %v996 = vadd.f32 %v990, %v994
        %v997 = vadd.f32 %v991, %v995
        %s998 = sld [smem:[#allocation12 + $0x17]]
        %v999 = vstv %s998
        %v1000 = vmul.f32 %v724, %v999
        %v1001 = vmul.f32 %v725, %v999
        %v1002 = vadd.f32 %v996, %v1000
        %v1003 = vadd.f32 %v997, %v1001
        %s1004 = sld [smem:[#allocation12 + $0x1c]]
        %v1005 = vstv %s1004
        %v1006 = vmul.f32 %v756, %v1005
        %v1007 = vmul.f32 %v757, %v1005
        %v1008 = vadd.f32 %v1002, %v1006
        %v1009 = vadd.f32 %v1003, %v1007
        %s1010 = sld [smem:[#allocation12 + $0x21]]
        %v1011 = vstv %s1010
        %v1012 = vmul.f32 %v788, %v1011
        %v1013 = vmul.f32 %v789, %v1011
        %v1014 = vadd.f32 %v1008, %v1012
        %v1015 = vadd.f32 %v1009, %v1013
        %s1016 = sld [smem:[#allocation12 + $0x26]]
        %v1017 = vstv %s1016
        %v1018 = vmul.f32 %v820, %v1017
        %v1019 = vmul.f32 %v821, %v1017
        %v1020 = vadd.f32 %v1014, %v1018
        %v1021 = vadd.f32 %v1015, %v1019
        %1022 = vrot.lane.b32.xlu0 %v1020, 127
        %v1023 = vpop.permute.xlu0 %1022
        %1024 = vrot.lane.b32.xlu0 %v1021, 127
        %v1025 = vpop.permute.xlu0 %1024
        %v1026 = vsel %vm436, %v1023, 0.0
        %v1027 = vsel %vm436, %v1025, 0.0
        %v1028 = vadd.f32 %v974, %v1026
        %v1029 = vadd.f32 %v975, %v1027
        %s1030 = sld [smem:[#allocation12 + $0x4]]
        %v1031 = vstv %s1030
        %v1032 = vmul.f32 %v596, %v1031
        %v1033 = vmul.f32 %v597, %v1031
        %s1034 = sld [smem:[#allocation12 + $0x9]]
        %v1035 = vstv %s1034
        %v1036 = vmul.f32 %v628, %v1035
        %v1037 = vmul.f32 %v629, %v1035
        %v1038 = vadd.f32 %v1032, %v1036
        %v1039 = vadd.f32 %v1033, %v1037
        %s1040 = sld [smem:[#allocation12 + $0xe]]
        %v1041 = vstv %s1040
        %v1042 = vmul.f32 %v660, %v1041
        %v1043 = vmul.f32 %v661, %v1041
        %v1044 = vadd.f32 %v1038, %v1042
        %v1045 = vadd.f32 %v1039, %v1043
        %s1046 = sld [smem:[#allocation12 + $0x13]]
        %v1047 = vstv %s1046
        %v1048 = vmul.f32 %v692, %v1047
        %v1049 = vmul.f32 %v693, %v1047
        %v1050 = vadd.f32 %v1044, %v1048
        %v1051 = vadd.f32 %v1045, %v1049
        %s1052 = sld [smem:[#allocation12 + $0x18]]
        %v1053 = vstv %s1052
        %v1054 = vmul.f32 %v724, %v1053
        %v1055 = vmul.f32 %v725, %v1053
        %v1056 = vadd.f32 %v1050, %v1054
        %v1057 = vadd.f32 %v1051, %v1055
        %s1058 = sld [smem:[#allocation12 + $0x1d]]
        %v1059 = vstv %s1058
        %v1060 = vmul.f32 %v756, %v1059
        %v1061 = vmul.f32 %v757, %v1059
        %v1062 = vadd.f32 %v1056, %v1060
        %v1063 = vadd.f32 %v1057, %v1061
        %s1064 = sld [smem:[#allocation12 + $0x22]]
        %v1065 = vstv %s1064
        %v1066 = vmul.f32 %v788, %v1065
        %v1067 = vmul.f32 %v789, %v1065
        %v1068 = vadd.f32 %v1062, %v1066
        %v1069 = vadd.f32 %v1063, %v1067
        %s1070 = sld [smem:[#allocation12 + $0x27]]
        %v1071 = vstv %s1070
        %v1072 = vmul.f32 %v820, %v1071
        %v1073 = vmul.f32 %v821, %v1071
        %v1074 = vadd.f32 %v1068, %v1072
        %v1075 = vadd.f32 %v1069, %v1073
        %1076 = vrot.lane.b32.xlu0 %v1074, 126
        %v1077 = vpop.permute.xlu0 %1076
        %1078 = vrot.lane.b32.xlu0 %v1075, 126
        %v1079 = vpop.permute.xlu0 %1078
        %v1080 = vsel %vm437, %v1077, 0.0
        %v1081 = vsel %vm437, %v1079, 0.0
        %v1082 = vadd.f32 %v1028, %v1080
        %v1083 = vadd.f32 %v1029, %v1081
        %v1084 = vstv %s489
        %v1085 = vadd.f32 %v1082, %v1084
        %v1086 = vadd.f32 %v1083, %v1084
        %vm1087 = vcmp.ge.f32.partialorder %v1085, 0.0
        %vm1088 = vcmp.ge.f32.partialorder %v1086, 0.0
        %v1089 = vstv %s497
        %v1090 = vmul.f32 %v1089, %v1085
        %v1091 = vmul.f32 %v1089, %v1086
        %v1092 = vsel %vm1087, %v1085, %v1090
        %v1093 = vsel %vm1088, %v1086, %v1091
        %v1094 = vstv %s498
        %v1095 = vmul.f32 %v1092, %v1094
        %v1096 = vmul.f32 %v1093, %v1094
        %v1097 = vstv %s499
        %v1098 = vmul.f32 %v1092, %v1097
        %v1099 = vmul.f32 %v1093, %v1097
        %v1100 = vstv %s500
        %v1101 = vmul.f32 %v1092, %v1100
        %v1102 = vmul.f32 %v1093, %v1100
        %v1103 = vstv %s501
        %v1104 = vmul.f32 %v1092, %v1103
        %v1105 = vmul.f32 %v1093, %v1103
        %v1106 = vstv %s502
        %v1107 = vmul.f32 %v1092, %v1106
        %v1108 = vmul.f32 %v1093, %v1106
        %s1109 = sld [smem:[#allocation12 + $0x28]]
        %v1110 = vstv %s1109
        %v1111 = vmul.f32 %v596, %v1110
        %v1112 = vmul.f32 %v597, %v1110
        %s1113 = sld [smem:[#allocation12 + $0x2d]]
        %v1114 = vstv %s1113
        %v1115 = vmul.f32 %v628, %v1114
        %v1116 = vmul.f32 %v629, %v1114
        %v1117 = vadd.f32 %v1111, %v1115
        %v1118 = vadd.f32 %v1112, %v1116
        %s1119 = sld [smem:[#allocation12 + $0x32]]
        %v1120 = vstv %s1119
        %v1121 = vmul.f32 %v660, %v1120
        %v1122 = vmul.f32 %v661, %v1120
        %v1123 = vadd.f32 %v1117, %v1121
        %v1124 = vadd.f32 %v1118, %v1122
        %s1125 = sld [smem:[#allocation12 + $0x37]]
        %v1126 = vstv %s1125
        %v1127 = vmul.f32 %v692, %v1126
        %v1128 = vmul.f32 %v693, %v1126
        %v1129 = vadd.f32 %v1123, %v1127
        %v1130 = vadd.f32 %v1124, %v1128
        %s1131 = sld [smem:[#allocation12 + $0x3c]]
        %v1132 = vstv %s1131
        %v1133 = vmul.f32 %v724, %v1132
        %v1134 = vmul.f32 %v725, %v1132
        %v1135 = vadd.f32 %v1129, %v1133
        %v1136 = vadd.f32 %v1130, %v1134
        %s1137 = sld [smem:[#allocation12 + $0x41]]
        %v1138 = vstv %s1137
        %v1139 = vmul.f32 %v756, %v1138
        %v1140 = vmul.f32 %v757, %v1138
        %v1141 = vadd.f32 %v1135, %v1139
        %v1142 = vadd.f32 %v1136, %v1140
        %s1143 = sld [smem:[#allocation12 + $0x46]]
        %v1144 = vstv %s1143
        %v1145 = vmul.f32 %v788, %v1144
        %v1146 = vmul.f32 %v789, %v1144
        %v1147 = vadd.f32 %v1141, %v1145
        %v1148 = vadd.f32 %v1142, %v1146
        %s1149 = sld [smem:[#allocation12 + $0x4b]]
        %v1150 = vstv %s1149
        %v1151 = vmul.f32 %v820, %v1150
        %v1152 = vmul.f32 %v821, %v1150
        %v1153 = vadd.f32 %v1147, %v1151
        %v1154 = vadd.f32 %v1148, %v1152
        %1155 = vrot.lane.b32.xlu0 %v1153, 2
        %v1156 = vpop.permute.xlu0 %1155
        %1157 = vrot.lane.b32.xlu0 %v1154, 2
        %v1158 = vpop.permute.xlu0 %1157
        %v1159 = vsel %vm439, %v1156, 0.0
        %v1160 = vsel %vm439, %v1158, 0.0
        %s1161 = sld [smem:[#allocation12 + $0x29]]
        %v1162 = vstv %s1161
        %v1163 = vmul.f32 %v596, %v1162
        %v1164 = vmul.f32 %v597, %v1162
        %s1165 = sld [smem:[#allocation12 + $0x2e]]
        %v1166 = vstv %s1165
        %v1167 = vmul.f32 %v628, %v1166
        %v1168 = vmul.f32 %v629, %v1166
        %v1169 = vadd.f32 %v1163, %v1167
        %v1170 = vadd.f32 %v1164, %v1168
        %s1171 = sld [smem:[#allocation12 + $0x33]]
        %v1172 = vstv %s1171
        %v1173 = vmul.f32 %v660, %v1172
        %v1174 = vmul.f32 %v661, %v1172
        %v1175 = vadd.f32 %v1169, %v1173
        %v1176 = vadd.f32 %v1170, %v1174
        %s1177 = sld [smem:[#allocation12 + $0x38]]
        %v1178 = vstv %s1177
        %v1179 = vmul.f32 %v692, %v1178
        %v1180 = vmul.f32 %v693, %v1178
        %v1181 = vadd.f32 %v1175, %v1179
        %v1182 = vadd.f32 %v1176, %v1180
        %s1183 = sld [smem:[#allocation12 + $0x3d]]
        %v1184 = vstv %s1183
        %v1185 = vmul.f32 %v724, %v1184
        %v1186 = vmul.f32 %v725, %v1184
        %v1187 = vadd.f32 %v1181, %v1185
        %v1188 = vadd.f32 %v1182, %v1186
        %s1189 = sld [smem:[#allocation12 + $0x42]]
        %v1190 = vstv %s1189
        %v1191 = vmul.f32 %v756, %v1190
        %v1192 = vmul.f32 %v757, %v1190
        %v1193 = vadd.f32 %v1187, %v1191
        %v1194 = vadd.f32 %v1188, %v1192
        %s1195 = sld [smem:[#allocation12 + $0x47]]
        %v1196 = vstv %s1195
        %v1197 = vmul.f32 %v788, %v1196
        %v1198 = vmul.f32 %v789, %v1196
        %v1199 = vadd.f32 %v1193, %v1197
        %v1200 = vadd.f32 %v1194, %v1198
        %s1201 = sld [smem:[#allocation12 + $0x4c]]
        %v1202 = vstv %s1201
        %v1203 = vmul.f32 %v820, %v1202
        %v1204 = vmul.f32 %v821, %v1202
        %v1205 = vadd.f32 %v1199, %v1203
        %v1206 = vadd.f32 %v1200, %v1204
        %1207 = vrot.lane.b32.xlu0 %v1205, 1
        %v1208 = vpop.permute.xlu0 %1207
        %1209 = vrot.lane.b32.xlu0 %v1206, 1
        %v1210 = vpop.permute.xlu0 %1209
        %v1211 = vsel %vm438, %v1208, 0.0
        %v1212 = vsel %vm438, %v1210, 0.0
        %v1213 = vadd.f32 %v1159, %v1211
        %v1214 = vadd.f32 %v1160, %v1212
        %s1215 = sld [smem:[#allocation12 + $0x2a]]
        %v1216 = vstv %s1215
        %v1217 = vmul.f32 %v596, %v1216
        %v1218 = vmul.f32 %v597, %v1216
        %s1219 = sld [smem:[#allocation12 + $0x2f]]
        %v1220 = vstv %s1219
        %v1221 = vmul.f32 %v628, %v1220
        %v1222 = vmul.f32 %v629, %v1220
        %v1223 = vadd.f32 %v1217, %v1221
        %v1224 = vadd.f32 %v1218, %v1222
        %s1225 = sld [smem:[#allocation12 + $0x34]]
        %v1226 = vstv %s1225
        %v1227 = vmul.f32 %v660, %v1226
        %v1228 = vmul.f32 %v661, %v1226
        %v1229 = vadd.f32 %v1223, %v1227
        %v1230 = vadd.f32 %v1224, %v1228
        %s1231 = sld [smem:[#allocation12 + $0x39]]
        %v1232 = vstv %s1231
        %v1233 = vmul.f32 %v692, %v1232
        %v1234 = vmul.f32 %v693, %v1232
        %v1235 = vadd.f32 %v1229, %v1233
        %v1236 = vadd.f32 %v1230, %v1234
        %s1237 = sld [smem:[#allocation12 + $0x3e]]
        %v1238 = vstv %s1237
        %v1239 = vmul.f32 %v724, %v1238
        %v1240 = vmul.f32 %v725, %v1238
        %v1241 = vadd.f32 %v1235, %v1239
        %v1242 = vadd.f32 %v1236, %v1240
        %s1243 = sld [smem:[#allocation12 + $0x43]]
        %v1244 = vstv %s1243
        %v1245 = vmul.f32 %v756, %v1244
        %v1246 = vmul.f32 %v757, %v1244
        %v1247 = vadd.f32 %v1241, %v1245
        %v1248 = vadd.f32 %v1242, %v1246
        %s1249 = sld [smem:[#allocation12 + $0x48]]
        %v1250 = vstv %s1249
        %v1251 = vmul.f32 %v788, %v1250
        %v1252 = vmul.f32 %v789, %v1250
        %v1253 = vadd.f32 %v1247, %v1251
        %v1254 = vadd.f32 %v1248, %v1252
        %s1255 = sld [smem:[#allocation12 + $0x4d]]
        %v1256 = vstv %s1255
        %v1257 = vmul.f32 %v820, %v1256
        %v1258 = vmul.f32 %v821, %v1256
        %v1259 = vadd.f32 %v1253, %v1257
        %v1260 = vadd.f32 %v1254, %v1258
        %v1261 = vadd.f32 %v1213, %v1259
        %v1262 = vadd.f32 %v1214, %v1260
        %s1263 = sld [smem:[#allocation12 + $0x2b]]
        %v1264 = vstv %s1263
        %v1265 = vmul.f32 %v596, %v1264
        %v1266 = vmul.f32 %v597, %v1264
        %s1267 = sld [smem:[#allocation12 + $0x30]]
        %v1268 = vstv %s1267
        %v1269 = vmul.f32 %v628, %v1268
        %v1270 = vmul.f32 %v629, %v1268
        %v1271 = vadd.f32 %v1265, %v1269
        %v1272 = vadd.f32 %v1266, %v1270
        %s1273 = sld [smem:[#allocation12 + $0x35]]
        %v1274 = vstv %s1273
        %v1275 = vmul.f32 %v660, %v1274
        %v1276 = vmul.f32 %v661, %v1274
        %v1277 = vadd.f32 %v1271, %v1275
        %v1278 = vadd.f32 %v1272, %v1276
        %s1279 = sld [smem:[#allocation12 + $0x3a]]
        %v1280 = vstv %s1279
        %v1281 = vmul.f32 %v692, %v1280
        %v1282 = vmul.f32 %v693, %v1280
        %v1283 = vadd.f32 %v1277, %v1281
        %v1284 = vadd.f32 %v1278, %v1282
        %s1285 = sld [smem:[#allocation12 + $0x3f]]
        %v1286 = vstv %s1285
        %v1287 = vmul.f32 %v724, %v1286
        %v1288 = vmul.f32 %v725, %v1286
        %v1289 = vadd.f32 %v1283, %v1287
        %v1290 = vadd.f32 %v1284, %v1288
        %s1291 = sld [smem:[#allocation12 + $0x44]]
        %v1292 = vstv %s1291
        %v1293 = vmul.f32 %v756, %v1292
        %v1294 = vmul.f32 %v757, %v1292
        %v1295 = vadd.f32 %v1289, %v1293
        %v1296 = vadd.f32 %v1290, %v1294
        %s1297 = sld [smem:[#allocation12 + $0x49]]
        %v1298 = vstv %s1297
        %v1299 = vmul.f32 %v788, %v1298
        %v1300 = vmul.f32 %v789, %v1298
        %v1301 = vadd.f32 %v1295, %v1299
        %v1302 = vadd.f32 %v1296, %v1300
        %s1303 = sld [smem:[#allocation12 + $0x4e]]
        %v1304 = vstv %s1303
        %v1305 = vmul.f32 %v820, %v1304
        %v1306 = vmul.f32 %v821, %v1304
        %v1307 = vadd.f32 %v1301, %v1305
        %v1308 = vadd.f32 %v1302, %v1306
        %1309 = vrot.lane.b32.xlu0 %v1307, 127
        %v1310 = vpop.permute.xlu0 %1309
        %1311 = vrot.lane.b32.xlu0 %v1308, 127
        %v1312 = vpop.permute.xlu0 %1311
        %v1313 = vsel %vm436, %v1310, 0.0
        %v1314 = vsel %vm436, %v1312, 0.0
        %v1315 = vadd.f32 %v1261, %v1313
        %v1316 = vadd.f32 %v1262, %v1314
        %s1317 = sld [smem:[#allocation12 + $0x2c]]
        %v1318 = vstv %s1317
        %v1319 = vmul.f32 %v596, %v1318
        %v1320 = vmul.f32 %v597, %v1318
        %s1321 = sld [smem:[#allocation12 + $0x31]]
        %v1322 = vstv %s1321
        %v1323 = vmul.f32 %v628, %v1322
        %v1324 = vmul.f32 %v629, %v1322
        %v1325 = vadd.f32 %v1319, %v1323
        %v1326 = vadd.f32 %v1320, %v1324
        %s1327 = sld [smem:[#allocation12 + $0x36]]
        %v1328 = vstv %s1327
        %v1329 = vmul.f32 %v660, %v1328
        %v1330 = vmul.f32 %v661, %v1328
        %v1331 = vadd.f32 %v1325, %v1329
        %v1332 = vadd.f32 %v1326, %v1330
        %s1333 = sld [smem:[#allocation12 + $0x3b]]
        %v1334 = vstv %s1333
        %v1335 = vmul.f32 %v692, %v1334
        %v1336 = vmul.f32 %v693, %v1334
        %v1337 = vadd.f32 %v1331, %v1335
        %v1338 = vadd.f32 %v1332, %v1336
        %s1339 = sld [smem:[#allocation12 + $0x40]]
        %v1340 = vstv %s1339
        %v1341 = vmul.f32 %v724, %v1340
        %v1342 = vmul.f32 %v725, %v1340
        %v1343 = vadd.f32 %v1337, %v1341
        %v1344 = vadd.f32 %v1338, %v1342
        %s1345 = sld [smem:[#allocation12 + $0x45]]
        %v1346 = vstv %s1345
        %v1347 = vmul.f32 %v756, %v1346
        %v1348 = vmul.f32 %v757, %v1346
        %v1349 = vadd.f32 %v1343, %v1347
        %v1350 = vadd.f32 %v1344, %v1348
        %s1351 = sld [smem:[#allocation12 + $0x4a]]
        %v1352 = vstv %s1351
        %v1353 = vmul.f32 %v788, %v1352
        %v1354 = vmul.f32 %v789, %v1352
        %v1355 = vadd.f32 %v1349, %v1353
        %v1356 = vadd.f32 %v1350, %v1354
        %s1357 = sld [smem:[#allocation12 + $0x4f]]
        %v1358 = vstv %s1357
        %v1359 = vmul.f32 %v820, %v1358
        %v1360 = vmul.f32 %v821, %v1358
        %v1361 = vadd.f32 %v1355, %v1359
        %v1362 = vadd.f32 %v1356, %v1360
        %1363 = vrot.lane.b32.xlu0 %v1361, 126
        %v1364 = vpop.permute.xlu0 %1363
        %1365 = vrot.lane.b32.xlu0 %v1362, 126
        %v1366 = vpop.permute.xlu0 %1365
        %v1367 = vsel %vm437, %v1364, 0.0
        %v1368 = vsel %vm437, %v1366, 0.0
        %v1369 = vadd.f32 %v1315, %v1367
        %v1370 = vadd.f32 %v1316, %v1368
        %v1371 = vstv %s490
        %v1372 = vadd.f32 %v1369, %v1371
        %v1373 = vadd.f32 %v1370, %v1371
        %vm1374 = vcmp.ge.f32.partialorder %v1372, 0.0
        %vm1375 = vcmp.ge.f32.partialorder %v1373, 0.0
        %v1376 = vmul.f32 %v1089, %v1372
        %v1377 = vmul.f32 %v1089, %v1373
        %v1378 = vsel %vm1374, %v1372, %v1376
        %v1379 = vsel %vm1375, %v1373, %v1377
        %v1380 = vstv %s503
        %v1381 = vmul.f32 %v1378, %v1380
        %v1382 = vmul.f32 %v1379, %v1380
        %v1383 = vadd.f32 %v1095, %v1381
        %v1384 = vadd.f32 %v1096, %v1382
        %v1385 = vstv %s504
        %v1386 = vmul.f32 %v1378, %v1385
        %v1387 = vmul.f32 %v1379, %v1385
        %v1388 = vadd.f32 %v1098, %v1386
        %v1389 = vadd.f32 %v1099, %v1387
        %v1390 = vstv %s505
        %v1391 = vmul.f32 %v1378, %v1390
        %v1392 = vmul.f32 %v1379, %v1390
        %v1393 = vadd.f32 %v1101, %v1391
        %v1394 = vadd.f32 %v1102, %v1392
        %v1395 = vstv %s506
        %v1396 = vmul.f32 %v1378, %v1395
        %v1397 = vmul.f32 %v1379, %v1395
        %v1398 = vadd.f32 %v1104, %v1396
        %v1399 = vadd.f32 %v1105, %v1397
        %v1400 = vstv %s507
        %v1401 = vmul.f32 %v1378, %v1400
        %v1402 = vmul.f32 %v1379, %v1400
        %v1403 = vadd.f32 %v1107, %v1401
        %v1404 = vadd.f32 %v1108, %v1402
        %s1405 = sld [smem:[#allocation12 + $0x50]]
        %v1406 = vstv %s1405
        %v1407 = vmul.f32 %v596, %v1406
        %v1408 = vmul.f32 %v597, %v1406
        %s1409 = sld [smem:[#allocation12 + $0x55]]
        %v1410 = vstv %s1409
        %v1411 = vmul.f32 %v628, %v1410
        %v1412 = vmul.f32 %v629, %v1410
        %v1413 = vadd.f32 %v1407, %v1411
        %v1414 = vadd.f32 %v1408, %v1412
        %s1415 = sld [smem:[#allocation12 + $0x5a]]
        %v1416 = vstv %s1415
        %v1417 = vmul.f32 %v660, %v1416
        %v1418 = vmul.f32 %v661, %v1416
        %v1419 = vadd.f32 %v1413, %v1417
        %v1420 = vadd.f32 %v1414, %v1418
        %s1421 = sld [smem:[#allocation12 + $0x5f]]
        %v1422 = vstv %s1421
        %v1423 = vmul.f32 %v692, %v1422
        %v1424 = vmul.f32 %v693, %v1422
        %v1425 = vadd.f32 %v1419, %v1423
        %v1426 = vadd.f32 %v1420, %v1424
        %s1427 = sld [smem:[#allocation12 + $0x64]]
        %v1428 = vstv %s1427
        %v1429 = vmul.f32 %v724, %v1428
        %v1430 = vmul.f32 %v725, %v1428
        %v1431 = vadd.f32 %v1425, %v1429
        %v1432 = vadd.f32 %v1426, %v1430
        %s1433 = sld [smem:[#allocation12 + $0x69]]
        %v1434 = vstv %s1433
        %v1435 = vmul.f32 %v756, %v1434
        %v1436 = vmul.f32 %v757, %v1434
        %v1437 = vadd.f32 %v1431, %v1435
        %v1438 = vadd.f32 %v1432, %v1436
        %s1439 = sld [smem:[#allocation12 + $0x6e]]
        %v1440 = vstv %s1439
        %v1441 = vmul.f32 %v788, %v1440
        %v1442 = vmul.f32 %v789, %v1440
        %v1443 = vadd.f32 %v1437, %v1441
        %v1444 = vadd.f32 %v1438, %v1442
        %s1445 = sld [smem:[#allocation12 + $0x73]]
        %v1446 = vstv %s1445
        %v1447 = vmul.f32 %v820, %v1446
        %v1448 = vmul.f32 %v821, %v1446
        %v1449 = vadd.f32 %v1443, %v1447
        %v1450 = vadd.f32 %v1444, %v1448
        %1451 = vrot.lane.b32.xlu0 %v1449, 2
        %v1452 = vpop.permute.xlu0 %1451
        %1453 = vrot.lane.b32.xlu0 %v1450, 2
        %v1454 = vpop.permute.xlu0 %1453
        %v1455 = vsel %vm439, %v1452, 0.0
        %v1456 = vsel %vm439, %v1454, 0.0
        %s1457 = sld [smem:[#allocation12 + $0x51]]
        %v1458 = vstv %s1457
        %v1459 = vmul.f32 %v596, %v1458
        %v1460 = vmul.f32 %v597, %v1458
        %s1461 = sld [smem:[#allocation12 + $0x56]]
        %v1462 = vstv %s1461
        %v1463 = vmul.f32 %v628, %v1462
        %v1464 = vmul.f32 %v629, %v1462
        %v1465 = vadd.f32 %v1459, %v1463
        %v1466 = vadd.f32 %v1460, %v1464
        %s1467 = sld [smem:[#allocation12 + $0x5b]]
        %v1468 = vstv %s1467
        %v1469 = vmul.f32 %v660, %v1468
        %v1470 = vmul.f32 %v661, %v1468
        %v1471 = vadd.f32 %v1465, %v1469
        %v1472 = vadd.f32 %v1466, %v1470
        %s1473 = sld [smem:[#allocation12 + $0x60]]
        %v1474 = vstv %s1473
        %v1475 = vmul.f32 %v692, %v1474
        %v1476 = vmul.f32 %v693, %v1474
        %v1477 = vadd.f32 %v1471, %v1475
        %v1478 = vadd.f32 %v1472, %v1476
        %s1479 = sld [smem:[#allocation12 + $0x65]]
        %v1480 = vstv %s1479
        %v1481 = vmul.f32 %v724, %v1480
        %v1482 = vmul.f32 %v725, %v1480
        %v1483 = vadd.f32 %v1477, %v1481
        %v1484 = vadd.f32 %v1478, %v1482
        %s1485 = sld [smem:[#allocation12 + $0x6a]]
        %v1486 = vstv %s1485
        %v1487 = vmul.f32 %v756, %v1486
        %v1488 = vmul.f32 %v757, %v1486
        %v1489 = vadd.f32 %v1483, %v1487
        %v1490 = vadd.f32 %v1484, %v1488
        %s1491 = sld [smem:[#allocation12 + $0x6f]]
        %v1492 = vstv %s1491
        %v1493 = vmul.f32 %v788, %v1492
        %v1494 = vmul.f32 %v789, %v1492
        %v1495 = vadd.f32 %v1489, %v1493
        %v1496 = vadd.f32 %v1490, %v1494
        %s1497 = sld [smem:[#allocation12 + $0x74]]
        %v1498 = vstv %s1497
        %v1499 = vmul.f32 %v820, %v1498
        %v1500 = vmul.f32 %v821, %v1498
        %v1501 = vadd.f32 %v1495, %v1499
        %v1502 = vadd.f32 %v1496, %v1500
        %1503 = vrot.lane.b32.xlu0 %v1501, 1
        %v1504 = vpop.permute.xlu0 %1503
        %1505 = vrot.lane.b32.xlu0 %v1502, 1
        %v1506 = vpop.permute.xlu0 %1505
        %v1507 = vsel %vm438, %v1504, 0.0
        %v1508 = vsel %vm438, %v1506, 0.0
        %v1509 = vadd.f32 %v1455, %v1507
        %v1510 = vadd.f32 %v1456, %v1508
        %s1511 = sld [smem:[#allocation12 + $0x52]]
        %v1512 = vstv %s1511
        %v1513 = vmul.f32 %v596, %v1512
        %v1514 = vmul.f32 %v597, %v1512
        %s1515 = sld [smem:[#allocation12 + $0x57]]
        %v1516 = vstv %s1515
        %v1517 = vmul.f32 %v628, %v1516
        %v1518 = vmul.f32 %v629, %v1516
        %v1519 = vadd.f32 %v1513, %v1517
        %v1520 = vadd.f32 %v1514, %v1518
        %s1521 = sld [smem:[#allocation12 + $0x5c]]
        %v1522 = vstv %s1521
        %v1523 = vmul.f32 %v660, %v1522
        %v1524 = vmul.f32 %v661, %v1522
        %v1525 = vadd.f32 %v1519, %v1523
        %v1526 = vadd.f32 %v1520, %v1524
        %s1527 = sld [smem:[#allocation12 + $0x61]]
        %v1528 = vstv %s1527
        %v1529 = vmul.f32 %v692, %v1528
        %v1530 = vmul.f32 %v693, %v1528
        %v1531 = vadd.f32 %v1525, %v1529
        %v1532 = vadd.f32 %v1526, %v1530
        %s1533 = sld [smem:[#allocation12 + $0x66]]
        %v1534 = vstv %s1533
        %v1535 = vmul.f32 %v724, %v1534
        %v1536 = vmul.f32 %v725, %v1534
        %v1537 = vadd.f32 %v1531, %v1535
        %v1538 = vadd.f32 %v1532, %v1536
        %s1539 = sld [smem:[#allocation12 + $0x6b]]
        %v1540 = vstv %s1539
        %v1541 = vmul.f32 %v756, %v1540
        %v1542 = vmul.f32 %v757, %v1540
        %v1543 = vadd.f32 %v1537, %v1541
        %v1544 = vadd.f32 %v1538, %v1542
        %s1545 = sld [smem:[#allocation12 + $0x70]]
        %v1546 = vstv %s1545
        %v1547 = vmul.f32 %v788, %v1546
        %v1548 = vmul.f32 %v789, %v1546
        %v1549 = vadd.f32 %v1543, %v1547
        %v1550 = vadd.f32 %v1544, %v1548
        %s1551 = sld [smem:[#allocation12 + $0x75]]
        %v1552 = vstv %s1551
        %v1553 = vmul.f32 %v820, %v1552
        %v1554 = vmul.f32 %v821, %v1552
        %v1555 = vadd.f32 %v1549, %v1553
        %v1556 = vadd.f32 %v1550, %v1554
        %v1557 = vadd.f32 %v1509, %v1555
        %v1558 = vadd.f32 %v1510, %v1556
        %s1559 = sld [smem:[#allocation12 + $0x53]]
        %v1560 = vstv %s1559
        %v1561 = vmul.f32 %v596, %v1560
        %v1562 = vmul.f32 %v597, %v1560
        %s1563 = sld [smem:[#allocation12 + $0x58]]
        %v1564 = vstv %s1563
        %v1565 = vmul.f32 %v628, %v1564
        %v1566 = vmul.f32 %v629, %v1564
        %v1567 = vadd.f32 %v1561, %v1565
        %v1568 = vadd.f32 %v1562, %v1566
        %s1569 = sld [smem:[#allocation12 + $0x5d]]
        %v1570 = vstv %s1569
        %v1571 = vmul.f32 %v660, %v1570
        %v1572 = vmul.f32 %v661, %v1570
        %v1573 = vadd.f32 %v1567, %v1571
        %v1574 = vadd.f32 %v1568, %v1572
        %s1575 = sld [smem:[#allocation12 + $0x62]]
        %v1576 = vstv %s1575
        %v1577 = vmul.f32 %v692, %v1576
        %v1578 = vmul.f32 %v693, %v1576
        %v1579 = vadd.f32 %v1573, %v1577
        %v1580 = vadd.f32 %v1574, %v1578
        %s1581 = sld [smem:[#allocation12 + $0x67]]
        %v1582 = vstv %s1581
        %v1583 = vmul.f32 %v724, %v1582
        %v1584 = vmul.f32 %v725, %v1582
        %v1585 = vadd.f32 %v1579, %v1583
        %v1586 = vadd.f32 %v1580, %v1584
        %s1587 = sld [smem:[#allocation12 + $0x6c]]
        %v1588 = vstv %s1587
        %v1589 = vmul.f32 %v756, %v1588
        %v1590 = vmul.f32 %v757, %v1588
        %v1591 = vadd.f32 %v1585, %v1589
        %v1592 = vadd.f32 %v1586, %v1590
        %s1593 = sld [smem:[#allocation12 + $0x71]]
        %v1594 = vstv %s1593
        %v1595 = vmul.f32 %v788, %v1594
        %v1596 = vmul.f32 %v789, %v1594
        %v1597 = vadd.f32 %v1591, %v1595
        %v1598 = vadd.f32 %v1592, %v1596
        %s1599 = sld [smem:[#allocation12 + $0x76]]
        %v1600 = vstv %s1599
        %v1601 = vmul.f32 %v820, %v1600
        %v1602 = vmul.f32 %v821, %v1600
        %v1603 = vadd.f32 %v1597, %v1601
        %v1604 = vadd.f32 %v1598, %v1602
        %1605 = vrot.lane.b32.xlu0 %v1603, 127
        %v1606 = vpop.permute.xlu0 %1605
        %1607 = vrot.lane.b32.xlu0 %v1604, 127
        %v1608 = vpop.permute.xlu0 %1607
        %v1609 = vsel %vm436, %v1606, 0.0
        %v1610 = vsel %vm436, %v1608, 0.0
        %v1611 = vadd.f32 %v1557, %v1609
        %v1612 = vadd.f32 %v1558, %v1610
        %s1613 = sld [smem:[#allocation12 + $0x54]]
        %v1614 = vstv %s1613
        %v1615 = vmul.f32 %v596, %v1614
        %v1616 = vmul.f32 %v597, %v1614
        %s1617 = sld [smem:[#allocation12 + $0x59]]
        %v1618 = vstv %s1617
        %v1619 = vmul.f32 %v628, %v1618
        %v1620 = vmul.f32 %v629, %v1618
        %v1621 = vadd.f32 %v1615, %v1619
        %v1622 = vadd.f32 %v1616, %v1620
        %s1623 = sld [smem:[#allocation12 + $0x5e]]
        %v1624 = vstv %s1623
        %v1625 = vmul.f32 %v660, %v1624
        %v1626 = vmul.f32 %v661, %v1624
        %v1627 = vadd.f32 %v1621, %v1625
        %v1628 = vadd.f32 %v1622, %v1626
        %s1629 = sld [smem:[#allocation12 + $0x63]]
        %v1630 = vstv %s1629
        %v1631 = vmul.f32 %v692, %v1630
        %v1632 = vmul.f32 %v693, %v1630
        %v1633 = vadd.f32 %v1627, %v1631
        %v1634 = vadd.f32 %v1628, %v1632
        %s1635 = sld [smem:[#allocation12 + $0x68]]
        %v1636 = vstv %s1635
        %v1637 = vmul.f32 %v724, %v1636
        %v1638 = vmul.f32 %v725, %v1636
        %v1639 = vadd.f32 %v1633, %v1637
        %v1640 = vadd.f32 %v1634, %v1638
        %s1641 = sld [smem:[#allocation12 + $0x6d]]
        %v1642 = vstv %s1641
        %v1643 = vmul.f32 %v756, %v1642
        %v1644 = vmul.f32 %v757, %v1642
        %v1645 = vadd.f32 %v1639, %v1643
        %v1646 = vadd.f32 %v1640, %v1644
        %s1647 = sld [smem:[#allocation12 + $0x72]]
        %v1648 = vstv %s1647
        %v1649 = vmul.f32 %v788, %v1648
        %v1650 = vmul.f32 %v789, %v1648
        %v1651 = vadd.f32 %v1645, %v1649
        %v1652 = vadd.f32 %v1646, %v1650
        %s1653 = sld [smem:[#allocation12 + $0x77]]
        %v1654 = vstv %s1653
        %v1655 = vmul.f32 %v820, %v1654
        %v1656 = vmul.f32 %v821, %v1654
        %v1657 = vadd.f32 %v1651, %v1655
        %v1658 = vadd.f32 %v1652, %v1656
        %1659 = vrot.lane.b32.xlu0 %v1657, 126
        %v1660 = vpop.permute.xlu0 %1659
        %1661 = vrot.lane.b32.xlu0 %v1658, 126
        %v1662 = vpop.permute.xlu0 %1661
        %v1663 = vsel %vm437, %v1660, 0.0
        %v1664 = vsel %vm437, %v1662, 0.0
        %v1665 = vadd.f32 %v1611, %v1663
        %v1666 = vadd.f32 %v1612, %v1664
        %v1667 = vstv %s491
        %v1668 = vadd.f32 %v1665, %v1667
        %v1669 = vadd.f32 %v1666, %v1667
        %vm1670 = vcmp.ge.f32.partialorder %v1668, 0.0
        %vm1671 = vcmp.ge.f32.partialorder %v1669, 0.0
        %v1672 = vmul.f32 %v1089, %v1668
        %v1673 = vmul.f32 %v1089, %v1669
        %v1674 = vsel %vm1670, %v1668, %v1672
        %v1675 = vsel %vm1671, %v1669, %v1673
        %v1676 = vstv %s508
        %v1677 = vmul.f32 %v1674, %v1676
        %v1678 = vmul.f32 %v1675, %v1676
        %v1679 = vadd.f32 %v1383, %v1677
        %v1680 = vadd.f32 %v1384, %v1678
        %v1681 = vstv %s509
        %v1682 = vmul.f32 %v1674, %v1681
        %v1683 = vmul.f32 %v1675, %v1681
        %v1684 = vadd.f32 %v1388, %v1682
        %v1685 = vadd.f32 %v1389, %v1683
        %v1686 = vstv %s510
        %v1687 = vmul.f32 %v1674, %v1686
        %v1688 = vmul.f32 %v1675, %v1686
        %v1689 = vadd.f32 %v1393, %v1687
        %v1690 = vadd.f32 %v1394, %v1688
        %v1691 = vstv %s511
        %v1692 = vmul.f32 %v1674, %v1691
        %v1693 = vmul.f32 %v1675, %v1691
        %v1694 = vadd.f32 %v1398, %v1692
        %v1695 = vadd.f32 %v1399, %v1693
        %v1696 = vstv %s512
        %v1697 = vmul.f32 %v1674, %v1696
        %v1698 = vmul.f32 %v1675, %v1696
        %v1699 = vadd.f32 %v1403, %v1697
        %v1700 = vadd.f32 %v1404, %v1698
        %s1701 = sld [smem:[#allocation12 + $0x78]]
        %v1702 = vstv %s1701
        %v1703 = vmul.f32 %v596, %v1702
        %v1704 = vmul.f32 %v597, %v1702
        %s1705 = sld [smem:[#allocation12 + $0x7d]]
        %v1706 = vstv %s1705
        %v1707 = vmul.f32 %v628, %v1706
        %v1708 = vmul.f32 %v629, %v1706
        %v1709 = vadd.f32 %v1703, %v1707
        %v1710 = vadd.f32 %v1704, %v1708
        %s1711 = sld [smem:[#allocation12 + $0x82]]
        %v1712 = vstv %s1711
        %v1713 = vmul.f32 %v660, %v1712
        %v1714 = vmul.f32 %v661, %v1712
        %v1715 = vadd.f32 %v1709, %v1713
        %v1716 = vadd.f32 %v1710, %v1714
        %s1717 = sld [smem:[#allocation12 + $0x87]]
        %v1718 = vstv %s1717
        %v1719 = vmul.f32 %v692, %v1718
        %v1720 = vmul.f32 %v693, %v1718
        %v1721 = vadd.f32 %v1715, %v1719
        %v1722 = vadd.f32 %v1716, %v1720
        %s1723 = sld [smem:[#allocation12 + $0x8c]]
        %v1724 = vstv %s1723
        %v1725 = vmul.f32 %v724, %v1724
        %v1726 = vmul.f32 %v725, %v1724
        %v1727 = vadd.f32 %v1721, %v1725
        %v1728 = vadd.f32 %v1722, %v1726
        %s1729 = sld [smem:[#allocation12 + $0x91]]
        %v1730 = vstv %s1729
        %v1731 = vmul.f32 %v756, %v1730
        %v1732 = vmul.f32 %v757, %v1730
        %v1733 = vadd.f32 %v1727, %v1731
        %v1734 = vadd.f32 %v1728, %v1732
        %s1735 = sld [smem:[#allocation12 + $0x96]]
        %v1736 = vstv %s1735
        %v1737 = vmul.f32 %v788, %v1736
        %v1738 = vmul.f32 %v789, %v1736
        %v1739 = vadd.f32 %v1733, %v1737
        %v1740 = vadd.f32 %v1734, %v1738
        %s1741 = sld [smem:[#allocation12 + $0x9b]]
        %v1742 = vstv %s1741
        %v1743 = vmul.f32 %v820, %v1742
        %v1744 = vmul.f32 %v821, %v1742
        %v1745 = vadd.f32 %v1739, %v1743
        %v1746 = vadd.f32 %v1740, %v1744
        %1747 = vrot.lane.b32.xlu0 %v1745, 2
        %v1748 = vpop.permute.xlu0 %1747
        %1749 = vrot.lane.b32.xlu0 %v1746, 2
        %v1750 = vpop.permute.xlu0 %1749
        %v1751 = vsel %vm439, %v1748, 0.0
        %v1752 = vsel %vm439, %v1750, 0.0
        %s1753 = sld [smem:[#allocation12 + $0x79]]
        %v1754 = vstv %s1753
        %v1755 = vmul.f32 %v596, %v1754
        %v1756 = vmul.f32 %v597, %v1754
        %s1757 = sld [smem:[#allocation12 + $0x7e]]
        %v1758 = vstv %s1757
        %v1759 = vmul.f32 %v628, %v1758
        %v1760 = vmul.f32 %v629, %v1758
        %v1761 = vadd.f32 %v1755, %v1759
        %v1762 = vadd.f32 %v1756, %v1760
        %s1763 = sld [smem:[#allocation12 + $0x83]]
        %v1764 = vstv %s1763
        %v1765 = vmul.f32 %v660, %v1764
        %v1766 = vmul.f32 %v661, %v1764
        %v1767 = vadd.f32 %v1761, %v1765
        %v1768 = vadd.f32 %v1762, %v1766
        %s1769 = sld [smem:[#allocation12 + $0x88]]
        %v1770 = vstv %s1769
        %v1771 = vmul.f32 %v692, %v1770
        %v1772 = vmul.f32 %v693, %v1770
        %v1773 = vadd.f32 %v1767, %v1771
        %v1774 = vadd.f32 %v1768, %v1772
        %s1775 = sld [smem:[#allocation12 + $0x8d]]
        %v1776 = vstv %s1775
        %v1777 = vmul.f32 %v724, %v1776
        %v1778 = vmul.f32 %v725, %v1776
        %v1779 = vadd.f32 %v1773, %v1777
        %v1780 = vadd.f32 %v1774, %v1778
        %s1781 = sld [smem:[#allocation12 + $0x92]]
        %v1782 = vstv %s1781
        %v1783 = vmul.f32 %v756, %v1782
        %v1784 = vmul.f32 %v757, %v1782
        %v1785 = vadd.f32 %v1779, %v1783
        %v1786 = vadd.f32 %v1780, %v1784
        %s1787 = sld [smem:[#allocation12 + $0x97]]
        %v1788 = vstv %s1787
        %v1789 = vmul.f32 %v788, %v1788
        %v1790 = vmul.f32 %v789, %v1788
        %v1791 = vadd.f32 %v1785, %v1789
        %v1792 = vadd.f32 %v1786, %v1790
        %s1793 = sld [smem:[#allocation12 + $0x9c]]
        %v1794 = vstv %s1793
        %v1795 = vmul.f32 %v820, %v1794
        %v1796 = vmul.f32 %v821, %v1794
        %v1797 = vadd.f32 %v1791, %v1795
        %v1798 = vadd.f32 %v1792, %v1796
        %1799 = vrot.lane.b32.xlu0 %v1797, 1
        %v1800 = vpop.permute.xlu0 %1799
        %1801 = vrot.lane.b32.xlu0 %v1798, 1
        %v1802 = vpop.permute.xlu0 %1801
        %v1803 = vsel %vm438, %v1800, 0.0
        %v1804 = vsel %vm438, %v1802, 0.0
        %v1805 = vadd.f32 %v1751, %v1803
        %v1806 = vadd.f32 %v1752, %v1804
        %s1807 = sld [smem:[#allocation12 + $0x7a]]
        %v1808 = vstv %s1807
        %v1809 = vmul.f32 %v596, %v1808
        %v1810 = vmul.f32 %v597, %v1808
        %s1811 = sld [smem:[#allocation12 + $0x7f]]
        %v1812 = vstv %s1811
        %v1813 = vmul.f32 %v628, %v1812
        %v1814 = vmul.f32 %v629, %v1812
        %v1815 = vadd.f32 %v1809, %v1813
        %v1816 = vadd.f32 %v1810, %v1814
        %s1817 = sld [smem:[#allocation12 + $0x84]]
        %v1818 = vstv %s1817
        %v1819 = vmul.f32 %v660, %v1818
        %v1820 = vmul.f32 %v661, %v1818
        %v1821 = vadd.f32 %v1815, %v1819
        %v1822 = vadd.f32 %v1816, %v1820
        %s1823 = sld [smem:[#allocation12 + $0x89]]
        %v1824 = vstv %s1823
        %v1825 = vmul.f32 %v692, %v1824
        %v1826 = vmul.f32 %v693, %v1824
        %v1827 = vadd.f32 %v1821, %v1825
        %v1828 = vadd.f32 %v1822, %v1826
        %s1829 = sld [smem:[#allocation12 + $0x8e]]
        %v1830 = vstv %s1829
        %v1831 = vmul.f32 %v724, %v1830
        %v1832 = vmul.f32 %v725, %v1830
        %v1833 = vadd.f32 %v1827, %v1831
        %v1834 = vadd.f32 %v1828, %v1832
        %s1835 = sld [smem:[#allocation12 + $0x93]]
        %v1836 = vstv %s1835
        %v1837 = vmul.f32 %v756, %v1836
        %v1838 = vmul.f32 %v757, %v1836
        %v1839 = vadd.f32 %v1833, %v1837
        %v1840 = vadd.f32 %v1834, %v1838
        %s1841 = sld [smem:[#allocation12 + $0x98]]
        %v1842 = vstv %s1841
        %v1843 = vmul.f32 %v788, %v1842
        %v1844 = vmul.f32 %v789, %v1842
        %v1845 = vadd.f32 %v1839, %v1843
        %v1846 = vadd.f32 %v1840, %v1844
        %s1847 = sld [smem:[#allocation12 + $0x9d]]
        %v1848 = vstv %s1847
        %v1849 = vmul.f32 %v820, %v1848
        %v1850 = vmul.f32 %v821, %v1848
        %v1851 = vadd.f32 %v1845, %v1849
        %v1852 = vadd.f32 %v1846, %v1850
        %v1853 = vadd.f32 %v1805, %v1851
        %v1854 = vadd.f32 %v1806, %v1852
        %s1855 = sld [smem:[#allocation12 + $0x7b]]
        %v1856 = vstv %s1855
        %v1857 = vmul.f32 %v596, %v1856
        %v1858 = vmul.f32 %v597, %v1856
        %s1859 = sld [smem:[#allocation12 + $0x80]]
        %v1860 = vstv %s1859
        %v1861 = vmul.f32 %v628, %v1860
        %v1862 = vmul.f32 %v629, %v1860
        %v1863 = vadd.f32 %v1857, %v1861
        %v1864 = vadd.f32 %v1858, %v1862
        %s1865 = sld [smem:[#allocation12 + $0x85]]
        %v1866 = vstv %s1865
        %v1867 = vmul.f32 %v660, %v1866
        %v1868 = vmul.f32 %v661, %v1866
        %v1869 = vadd.f32 %v1863, %v1867
        %v1870 = vadd.f32 %v1864, %v1868
        %s1871 = sld [smem:[#allocation12 + $0x8a]]
        %v1872 = vstv %s1871
        %v1873 = vmul.f32 %v692, %v1872
        %v1874 = vmul.f32 %v693, %v1872
        %v1875 = vadd.f32 %v1869, %v1873
        %v1876 = vadd.f32 %v1870, %v1874
        %s1877 = sld [smem:[#allocation12 + $0x8f]]
        %v1878 = vstv %s1877
        %v1879 = vmul.f32 %v724, %v1878
        %v1880 = vmul.f32 %v725, %v1878
        %v1881 = vadd.f32 %v1875, %v1879
        %v1882 = vadd.f32 %v1876, %v1880
        %s1883 = sld [smem:[#allocation12 + $0x94]]
        %v1884 = vstv %s1883
        %v1885 = vmul.f32 %v756, %v1884
        %v1886 = vmul.f32 %v757, %v1884
        %v1887 = vadd.f32 %v1881, %v1885
        %v1888 = vadd.f32 %v1882, %v1886
        %s1889 = sld [smem:[#allocation12 + $0x99]]
        %v1890 = vstv %s1889
        %v1891 = vmul.f32 %v788, %v1890
        %v1892 = vmul.f32 %v789, %v1890
        %v1893 = vadd.f32 %v1887, %v1891
        %v1894 = vadd.f32 %v1888, %v1892
        %s1895 = sld [smem:[#allocation12 + $0x9e]]
        %v1896 = vstv %s1895
        %v1897 = vmul.f32 %v820, %v1896
        %v1898 = vmul.f32 %v821, %v1896
        %v1899 = vadd.f32 %v1893, %v1897
        %v1900 = vadd.f32 %v1894, %v1898
        %1901 = vrot.lane.b32.xlu0 %v1899, 127
        %v1902 = vpop.permute.xlu0 %1901
        %1903 = vrot.lane.b32.xlu0 %v1900, 127
        %v1904 = vpop.permute.xlu0 %1903
        %v1905 = vsel %vm436, %v1902, 0.0
        %v1906 = vsel %vm436, %v1904, 0.0
        %v1907 = vadd.f32 %v1853, %v1905
        %v1908 = vadd.f32 %v1854, %v1906
        %s1909 = sld [smem:[#allocation12 + $0x7c]]
        %v1910 = vstv %s1909
        %v1911 = vmul.f32 %v596, %v1910
        %v1912 = vmul.f32 %v597, %v1910
        %s1913 = sld [smem:[#allocation12 + $0x81]]
        %v1914 = vstv %s1913
        %v1915 = vmul.f32 %v628, %v1914
        %v1916 = vmul.f32 %v629, %v1914
        %v1917 = vadd.f32 %v1911, %v1915
        %v1918 = vadd.f32 %v1912, %v1916
        %s1919 = sld [smem:[#allocation12 + $0x86]]
        %v1920 = vstv %s1919
        %v1921 = vmul.f32 %v660, %v1920
        %v1922 = vmul.f32 %v661, %v1920
        %v1923 = vadd.f32 %v1917, %v1921
        %v1924 = vadd.f32 %v1918, %v1922
        %s1925 = sld [smem:[#allocation12 + $0x8b]]
        %v1926 = vstv %s1925
        %v1927 = vmul.f32 %v692, %v1926
        %v1928 = vmul.f32 %v693, %v1926
        %v1929 = vadd.f32 %v1923, %v1927
        %v1930 = vadd.f32 %v1924, %v1928
        %s1931 = sld [smem:[#allocation12 + $0x90]]
        %v1932 = vstv %s1931
        %v1933 = vmul.f32 %v724, %v1932
        %v1934 = vmul.f32 %v725, %v1932
        %v1935 = vadd.f32 %v1929, %v1933
        %v1936 = vadd.f32 %v1930, %v1934
        %s1937 = sld [smem:[#allocation12 + $0x95]]
        %v1938 = vstv %s1937
        %v1939 = vmul.f32 %v756, %v1938
        %v1940 = vmul.f32 %v757, %v1938
        %v1941 = vadd.f32 %v1935, %v1939
        %v1942 = vadd.f32 %v1936, %v1940
        %s1943 = sld [smem:[#allocation12 + $0x9a]]
        %v1944 = vstv %s1943
        %v1945 = vmul.f32 %v788, %v1944
        %v1946 = vmul.f32 %v789, %v1944
        %v1947 = vadd.f32 %v1941, %v1945
        %v1948 = vadd.f32 %v1942, %v1946
        %s1949 = sld [smem:[#allocation12 + $0x9f]]
        %v1950 = vstv %s1949
        %v1951 = vmul.f32 %v820, %v1950
        %v1952 = vmul.f32 %v821, %v1950
        %v1953 = vadd.f32 %v1947, %v1951
        %v1954 = vadd.f32 %v1948, %v1952
        %1955 = vrot.lane.b32.xlu0 %v1953, 126
        %v1956 = vpop.permute.xlu0 %1955
        %1957 = vrot.lane.b32.xlu0 %v1954, 126
        %v1958 = vpop.permute.xlu0 %1957
        %v1959 = vsel %vm437, %v1956, 0.0
        %v1960 = vsel %vm437, %v1958, 0.0
        %v1961 = vadd.f32 %v1907, %v1959
        %v1962 = vadd.f32 %v1908, %v1960
        %v1963 = vstv %s492
        %v1964 = vadd.f32 %v1961, %v1963
        %v1965 = vadd.f32 %v1962, %v1963
        %vm1966 = vcmp.ge.f32.partialorder %v1964, 0.0
        %vm1967 = vcmp.ge.f32.partialorder %v1965, 0.0
        %v1968 = vmul.f32 %v1089, %v1964
        %v1969 = vmul.f32 %v1089, %v1965
        %v1970 = vsel %vm1966, %v1964, %v1968
        %v1971 = vsel %vm1967, %v1965, %v1969
        %v1972 = vstv %s513
        %v1973 = vmul.f32 %v1970, %v1972
        %v1974 = vmul.f32 %v1971, %v1972
        %v1975 = vadd.f32 %v1679, %v1973
        %v1976 = vadd.f32 %v1680, %v1974
        %v1977 = vstv %s514
        %v1978 = vmul.f32 %v1970, %v1977
        %v1979 = vmul.f32 %v1971, %v1977
        %v1980 = vadd.f32 %v1684, %v1978
        %v1981 = vadd.f32 %v1685, %v1979
        %v1982 = vstv %s515
        %v1983 = vmul.f32 %v1970, %v1982
        %v1984 = vmul.f32 %v1971, %v1982
        %v1985 = vadd.f32 %v1689, %v1983
        %v1986 = vadd.f32 %v1690, %v1984
        %v1987 = vstv %s516
        %v1988 = vmul.f32 %v1970, %v1987
        %v1989 = vmul.f32 %v1971, %v1987
        %v1990 = vadd.f32 %v1694, %v1988
        %v1991 = vadd.f32 %v1695, %v1989
        %v1992 = vstv %s517
        %v1993 = vmul.f32 %v1970, %v1992
        %v1994 = vmul.f32 %v1971, %v1992
        %v1995 = vadd.f32 %v1699, %v1993
        %v1996 = vadd.f32 %v1700, %v1994
        %s1997 = sld [smem:[#allocation12 + $0xa0]]
        %v1998 = vstv %s1997
        %v1999 = vmul.f32 %v596, %v1998
        %v2000 = vmul.f32 %v597, %v1998
        %s2001 = sld [smem:[#allocation12 + $0xa5]]
        %v2002 = vstv %s2001
        %v2003 = vmul.f32 %v628, %v2002
        %v2004 = vmul.f32 %v629, %v2002
        %v2005 = vadd.f32 %v1999, %v2003
        %v2006 = vadd.f32 %v2000, %v2004
        %s2007 = sld [smem:[#allocation12 + $0xaa]]
        %v2008 = vstv %s2007
        %v2009 = vmul.f32 %v660, %v2008
        %v2010 = vmul.f32 %v661, %v2008
        %v2011 = vadd.f32 %v2005, %v2009
        %v2012 = vadd.f32 %v2006, %v2010
        %s2013 = sld [smem:[#allocation12 + $0xaf]]
        %v2014 = vstv %s2013
        %v2015 = vmul.f32 %v692, %v2014
        %v2016 = vmul.f32 %v693, %v2014
        %v2017 = vadd.f32 %v2011, %v2015
        %v2018 = vadd.f32 %v2012, %v2016
        %s2019 = sld [smem:[#allocation12 + $0xb4]]
        %v2020 = vstv %s2019
        %v2021 = vmul.f32 %v724, %v2020
        %v2022 = vmul.f32 %v725, %v2020
        %v2023 = vadd.f32 %v2017, %v2021
        %v2024 = vadd.f32 %v2018, %v2022
        %s2025 = sld [smem:[#allocation12 + $0xb9]]
        %v2026 = vstv %s2025
        %v2027 = vmul.f32 %v756, %v2026
        %v2028 = vmul.f32 %v757, %v2026
        %v2029 = vadd.f32 %v2023, %v2027
        %v2030 = vadd.f32 %v2024, %v2028
        %s2031 = sld [smem:[#allocation12 + $0xbe]]
        %v2032 = vstv %s2031
        %v2033 = vmul.f32 %v788, %v2032
        %v2034 = vmul.f32 %v789, %v2032
        %v2035 = vadd.f32 %v2029, %v2033
        %v2036 = vadd.f32 %v2030, %v2034
        %s2037 = sld [smem:[#allocation12 + $0xc3]]
        %v2038 = vstv %s2037
        %v2039 = vmul.f32 %v820, %v2038
        %v2040 = vmul.f32 %v821, %v2038
        %v2041 = vadd.f32 %v2035, %v2039
        %v2042 = vadd.f32 %v2036, %v2040
        %2043 = vrot.lane.b32.xlu0 %v2041, 2
        %v2044 = vpop.permute.xlu0 %2043
        %2045 = vrot.lane.b32.xlu0 %v2042, 2
        %v2046 = vpop.permute.xlu0 %2045
        %v2047 = vsel %vm439, %v2044, 0.0
        %v2048 = vsel %vm439, %v2046, 0.0
        %s2049 = sld [smem:[#allocation12 + $0xa1]]
        %v2050 = vstv %s2049
        %v2051 = vmul.f32 %v596, %v2050
        %v2052 = vmul.f32 %v597, %v2050
        %s2053 = sld [smem:[#allocation12 + $0xa6]]
        %v2054 = vstv %s2053
        %v2055 = vmul.f32 %v628, %v2054
        %v2056 = vmul.f32 %v629, %v2054
        %v2057 = vadd.f32 %v2051, %v2055
        %v2058 = vadd.f32 %v2052, %v2056
        %s2059 = sld [smem:[#allocation12 + $0xab]]
        %v2060 = vstv %s2059
        %v2061 = vmul.f32 %v660, %v2060
        %v2062 = vmul.f32 %v661, %v2060
        %v2063 = vadd.f32 %v2057, %v2061
        %v2064 = vadd.f32 %v2058, %v2062
        %s2065 = sld [smem:[#allocation12 + $0xb0]]
        %v2066 = vstv %s2065
        %v2067 = vmul.f32 %v692, %v2066
        %v2068 = vmul.f32 %v693, %v2066
        %v2069 = vadd.f32 %v2063, %v2067
        %v2070 = vadd.f32 %v2064, %v2068
        %s2071 = sld [smem:[#allocation12 + $0xb5]]
        %v2072 = vstv %s2071
        %v2073 = vmul.f32 %v724, %v2072
        %v2074 = vmul.f32 %v725, %v2072
        %v2075 = vadd.f32 %v2069, %v2073
        %v2076 = vadd.f32 %v2070, %v2074
        %s2077 = sld [smem:[#allocation12 + $0xba]]
        %v2078 = vstv %s2077
        %v2079 = vmul.f32 %v756, %v2078
        %v2080 = vmul.f32 %v757, %v2078
        %v2081 = vadd.f32 %v2075, %v2079
        %v2082 = vadd.f32 %v2076, %v2080
        %s2083 = sld [smem:[#allocation12 + $0xbf]]
        %v2084 = vstv %s2083
        %v2085 = vmul.f32 %v788, %v2084
        %v2086 = vmul.f32 %v789, %v2084
        %v2087 = vadd.f32 %v2081, %v2085
        %v2088 = vadd.f32 %v2082, %v2086
        %s2089 = sld [smem:[#allocation12 + $0xc4]]
        %v2090 = vstv %s2089
        %v2091 = vmul.f32 %v820, %v2090
        %v2092 = vmul.f32 %v821, %v2090
        %v2093 = vadd.f32 %v2087, %v2091
        %v2094 = vadd.f32 %v2088, %v2092
        %2095 = vrot.lane.b32.xlu0 %v2093, 1
        %v2096 = vpop.permute.xlu0 %2095
        %2097 = vrot.lane.b32.xlu0 %v2094, 1
        %v2098 = vpop.permute.xlu0 %2097
        %v2099 = vsel %vm438, %v2096, 0.0
        %v2100 = vsel %vm438, %v2098, 0.0
        %v2101 = vadd.f32 %v2047, %v2099
        %v2102 = vadd.f32 %v2048, %v2100
        %s2103 = sld [smem:[#allocation12 + $0xa2]]
        %v2104 = vstv %s2103
        %v2105 = vmul.f32 %v596, %v2104
        %v2106 = vmul.f32 %v597, %v2104
        %s2107 = sld [smem:[#allocation12 + $0xa7]]
        %v2108 = vstv %s2107
        %v2109 = vmul.f32 %v628, %v2108
        %v2110 = vmul.f32 %v629, %v2108
        %v2111 = vadd.f32 %v2105, %v2109
        %v2112 = vadd.f32 %v2106, %v2110
        %s2113 = sld [smem:[#allocation12 + $0xac]]
        %v2114 = vstv %s2113
        %v2115 = vmul.f32 %v660, %v2114
        %v2116 = vmul.f32 %v661, %v2114
        %v2117 = vadd.f32 %v2111, %v2115
        %v2118 = vadd.f32 %v2112, %v2116
        %s2119 = sld [smem:[#allocation12 + $0xb1]]
        %v2120 = vstv %s2119
        %v2121 = vmul.f32 %v692, %v2120
        %v2122 = vmul.f32 %v693, %v2120
        %v2123 = vadd.f32 %v2117, %v2121
        %v2124 = vadd.f32 %v2118, %v2122
        %s2125 = sld [smem:[#allocation12 + $0xb6]]
        %v2126 = vstv %s2125
        %v2127 = vmul.f32 %v724, %v2126
        %v2128 = vmul.f32 %v725, %v2126
        %v2129 = vadd.f32 %v2123, %v2127
        %v2130 = vadd.f32 %v2124, %v2128
        %s2131 = sld [smem:[#allocation12 + $0xbb]]
        %v2132 = vstv %s2131
        %v2133 = vmul.f32 %v756, %v2132
        %v2134 = vmul.f32 %v757, %v2132
        %v2135 = vadd.f32 %v2129, %v2133
        %v2136 = vadd.f32 %v2130, %v2134
        %s2137 = sld [smem:[#allocation12 + $0xc0]]
        %v2138 = vstv %s2137
        %v2139 = vmul.f32 %v788, %v2138
        %v2140 = vmul.f32 %v789, %v2138
        %v2141 = vadd.f32 %v2135, %v2139
        %v2142 = vadd.f32 %v2136, %v2140
        %s2143 = sld [smem:[#allocation12 + $0xc5]]
        %v2144 = vstv %s2143
        %v2145 = vmul.f32 %v820, %v2144
        %v2146 = vmul.f32 %v821, %v2144
        %v2147 = vadd.f32 %v2141, %v2145
        %v2148 = vadd.f32 %v2142, %v2146
        %v2149 = vadd.f32 %v2101, %v2147
        %v2150 = vadd.f32 %v2102, %v2148
        %s2151 = sld [smem:[#allocation12 + $0xa3]]
        %v2152 = vstv %s2151
        %v2153 = vmul.f32 %v596, %v2152
        %v2154 = vmul.f32 %v597, %v2152
        %s2155 = sld [smem:[#allocation12 + $0xa8]]
        %v2156 = vstv %s2155
        %v2157 = vmul.f32 %v628, %v2156
        %v2158 = vmul.f32 %v629, %v2156
        %v2159 = vadd.f32 %v2153, %v2157
        %v2160 = vadd.f32 %v2154, %v2158
        %s2161 = sld [smem:[#allocation12 + $0xad]]
        %v2162 = vstv %s2161
        %v2163 = vmul.f32 %v660, %v2162
        %v2164 = vmul.f32 %v661, %v2162
        %v2165 = vadd.f32 %v2159, %v2163
        %v2166 = vadd.f32 %v2160, %v2164
        %s2167 = sld [smem:[#allocation12 + $0xb2]]
        %v2168 = vstv %s2167
        %v2169 = vmul.f32 %v692, %v2168
        %v2170 = vmul.f32 %v693, %v2168
        %v2171 = vadd.f32 %v2165, %v2169
        %v2172 = vadd.f32 %v2166, %v2170
        %s2173 = sld [smem:[#allocation12 + $0xb7]]
        %v2174 = vstv %s2173
        %v2175 = vmul.f32 %v724, %v2174
        %v2176 = vmul.f32 %v725, %v2174
        %v2177 = vadd.f32 %v2171, %v2175
        %v2178 = vadd.f32 %v2172, %v2176
        %s2179 = sld [smem:[#allocation12 + $0xbc]]
        %v2180 = vstv %s2179
        %v2181 = vmul.f32 %v756, %v2180
        %v2182 = vmul.f32 %v757, %v2180
        %v2183 = vadd.f32 %v2177, %v2181
        %v2184 = vadd.f32 %v2178, %v2182
        %s2185 = sld [smem:[#allocation12 + $0xc1]]
        %v2186 = vstv %s2185
        %v2187 = vmul.f32 %v788, %v2186
        %v2188 = vmul.f32 %v789, %v2186
        %v2189 = vadd.f32 %v2183, %v2187
        %v2190 = vadd.f32 %v2184, %v2188
        %s2191 = sld [smem:[#allocation12 + $0xc6]]
        %v2192 = vstv %s2191
        %v2193 = vmul.f32 %v820, %v2192
        %v2194 = vmul.f32 %v821, %v2192
        %v2195 = vadd.f32 %v2189, %v2193
        %v2196 = vadd.f32 %v2190, %v2194
        %2197 = vrot.lane.b32.xlu0 %v2195, 127
        %v2198 = vpop.permute.xlu0 %2197
        %2199 = vrot.lane.b32.xlu0 %v2196, 127
        %v2200 = vpop.permute.xlu0 %2199
        %v2201 = vsel %vm436, %v2198, 0.0
        %v2202 = vsel %vm436, %v2200, 0.0
        %v2203 = vadd.f32 %v2149, %v2201
        %v2204 = vadd.f32 %v2150, %v2202
        %s2205 = sld [smem:[#allocation12 + $0xa4]]
        %v2206 = vstv %s2205
        %v2207 = vmul.f32 %v596, %v2206
        %v2208 = vmul.f32 %v597, %v2206
        %s2209 = sld [smem:[#allocation12 + $0xa9]]
        %v2210 = vstv %s2209
        %v2211 = vmul.f32 %v628, %v2210
        %v2212 = vmul.f32 %v629, %v2210
        %v2213 = vadd.f32 %v2207, %v2211
        %v2214 = vadd.f32 %v2208, %v2212
        %s2215 = sld [smem:[#allocation12 + $0xae]]
        %v2216 = vstv %s2215
        %v2217 = vmul.f32 %v660, %v2216
        %v2218 = vmul.f32 %v661, %v2216
        %v2219 = vadd.f32 %v2213, %v2217
        %v2220 = vadd.f32 %v2214, %v2218
        %s2221 = sld [smem:[#allocation12 + $0xb3]]
        %v2222 = vstv %s2221
        %v2223 = vmul.f32 %v692, %v2222
        %v2224 = vmul.f32 %v693, %v2222
        %v2225 = vadd.f32 %v2219, %v2223
        %v2226 = vadd.f32 %v2220, %v2224
        %s2227 = sld [smem:[#allocation12 + $0xb8]]
        %v2228 = vstv %s2227
        %v2229 = vmul.f32 %v724, %v2228
        %v2230 = vmul.f32 %v725, %v2228
        %v2231 = vadd.f32 %v2225, %v2229
        %v2232 = vadd.f32 %v2226, %v2230
        %s2233 = sld [smem:[#allocation12 + $0xbd]]
        %v2234 = vstv %s2233
        %v2235 = vmul.f32 %v756, %v2234
        %v2236 = vmul.f32 %v757, %v2234
        %v2237 = vadd.f32 %v2231, %v2235
        %v2238 = vadd.f32 %v2232, %v2236
        %s2239 = sld [smem:[#allocation12 + $0xc2]]
        %v2240 = vstv %s2239
        %v2241 = vmul.f32 %v788, %v2240
        %v2242 = vmul.f32 %v789, %v2240
        %v2243 = vadd.f32 %v2237, %v2241
        %v2244 = vadd.f32 %v2238, %v2242
        %s2245 = sld [smem:[#allocation12 + $0xc7]]
        %v2246 = vstv %s2245
        %v2247 = vmul.f32 %v820, %v2246
        %v2248 = vmul.f32 %v821, %v2246
        %v2249 = vadd.f32 %v2243, %v2247
        %v2250 = vadd.f32 %v2244, %v2248
        %2251 = vrot.lane.b32.xlu0 %v2249, 126
        %v2252 = vpop.permute.xlu0 %2251
        %2253 = vrot.lane.b32.xlu0 %v2250, 126
        %v2254 = vpop.permute.xlu0 %2253
        %v2255 = vsel %vm437, %v2252, 0.0
        %v2256 = vsel %vm437, %v2254, 0.0
        %v2257 = vadd.f32 %v2203, %v2255
        %v2258 = vadd.f32 %v2204, %v2256
        %v2259 = vstv %s493
        %v2260 = vadd.f32 %v2257, %v2259
        %v2261 = vadd.f32 %v2258, %v2259
        %vm2262 = vcmp.ge.f32.partialorder %v2260, 0.0
        %vm2263 = vcmp.ge.f32.partialorder %v2261, 0.0
        %v2264 = vmul.f32 %v1089, %v2260
        %v2265 = vmul.f32 %v1089, %v2261
        %v2266 = vsel %vm2262, %v2260, %v2264
        %v2267 = vsel %vm2263, %v2261, %v2265
        %v2268 = vstv %s518
        %v2269 = vmul.f32 %v2266, %v2268
        %v2270 = vmul.f32 %v2267, %v2268
        %v2271 = vadd.f32 %v1975, %v2269
        %v2272 = vadd.f32 %v1976, %v2270
        %v2273 = vstv %s519
        %v2274 = vmul.f32 %v2266, %v2273
        %v2275 = vmul.f32 %v2267, %v2273
        %v2276 = vadd.f32 %v1980, %v2274
        %v2277 = vadd.f32 %v1981, %v2275
        %v2278 = vstv %s520
        %v2279 = vmul.f32 %v2266, %v2278
        %v2280 = vmul.f32 %v2267, %v2278
        %v2281 = vadd.f32 %v1985, %v2279
        %v2282 = vadd.f32 %v1986, %v2280
        %v2283 = vstv %s521
        %v2284 = vmul.f32 %v2266, %v2283
        %v2285 = vmul.f32 %v2267, %v2283
        %v2286 = vadd.f32 %v1990, %v2284
        %v2287 = vadd.f32 %v1991, %v2285
        %v2288 = vstv %s522
        %v2289 = vmul.f32 %v2266, %v2288
        %v2290 = vmul.f32 %v2267, %v2288
        %v2291 = vadd.f32 %v1995, %v2289
        %v2292 = vadd.f32 %v1996, %v2290
        %s2293 = sld [smem:[#allocation12 + $0xc8]]
        %v2294 = vstv %s2293
        %v2295 = vmul.f32 %v596, %v2294
        %v2296 = vmul.f32 %v597, %v2294
        %s2297 = sld [smem:[#allocation12 + $0xcd]]
        %v2298 = vstv %s2297
        %v2299 = vmul.f32 %v628, %v2298
        %v2300 = vmul.f32 %v629, %v2298
        %v2301 = vadd.f32 %v2295, %v2299
        %v2302 = vadd.f32 %v2296, %v2300
        %s2303 = sld [smem:[#allocation12 + $0xd2]]
        %v2304 = vstv %s2303
        %v2305 = vmul.f32 %v660, %v2304
        %v2306 = vmul.f32 %v661, %v2304
        %v2307 = vadd.f32 %v2301, %v2305
        %v2308 = vadd.f32 %v2302, %v2306
        %s2309 = sld [smem:[#allocation12 + $0xd7]]
        %v2310 = vstv %s2309
        %v2311 = vmul.f32 %v692, %v2310
        %v2312 = vmul.f32 %v693, %v2310
        %v2313 = vadd.f32 %v2307, %v2311
        %v2314 = vadd.f32 %v2308, %v2312
        %s2315 = sld [smem:[#allocation12 + $0xdc]]
        %v2316 = vstv %s2315
        %v2317 = vmul.f32 %v724, %v2316
        %v2318 = vmul.f32 %v725, %v2316
        %v2319 = vadd.f32 %v2313, %v2317
        %v2320 = vadd.f32 %v2314, %v2318
        %s2321 = sld [smem:[#allocation12 + $0xe1]]
        %v2322 = vstv %s2321
        %v2323 = vmul.f32 %v756, %v2322
        %v2324 = vmul.f32 %v757, %v2322
        %v2325 = vadd.f32 %v2319, %v2323
        %v2326 = vadd.f32 %v2320, %v2324
        %s2327 = sld [smem:[#allocation12 + $0xe6]]
        %v2328 = vstv %s2327
        %v2329 = vmul.f32 %v788, %v2328
        %v2330 = vmul.f32 %v789, %v2328
        %v2331 = vadd.f32 %v2325, %v2329
        %v2332 = vadd.f32 %v2326, %v2330
        %s2333 = sld [smem:[#allocation12 + $0xeb]]
        %v2334 = vstv %s2333
        %v2335 = vmul.f32 %v820, %v2334
        %v2336 = vmul.f32 %v821, %v2334
        %v2337 = vadd.f32 %v2331, %v2335
        %v2338 = vadd.f32 %v2332, %v2336
        %2339 = vrot.lane.b32.xlu0 %v2337, 2
        %v2340 = vpop.permute.xlu0 %2339
        %2341 = vrot.lane.b32.xlu0 %v2338, 2
        %v2342 = vpop.permute.xlu0 %2341
        %v2343 = vsel %vm439, %v2340, 0.0
        %v2344 = vsel %vm439, %v2342, 0.0
        %s2345 = sld [smem:[#allocation12 + $0xc9]]
        %v2346 = vstv %s2345
        %v2347 = vmul.f32 %v596, %v2346
        %v2348 = vmul.f32 %v597, %v2346
        %s2349 = sld [smem:[#allocation12 + $0xce]]
        %v2350 = vstv %s2349
        %v2351 = vmul.f32 %v628, %v2350
        %v2352 = vmul.f32 %v629, %v2350
        %v2353 = vadd.f32 %v2347, %v2351
        %v2354 = vadd.f32 %v2348, %v2352
        %s2355 = sld [smem:[#allocation12 + $0xd3]]
        %v2356 = vstv %s2355
        %v2357 = vmul.f32 %v660, %v2356
        %v2358 = vmul.f32 %v661, %v2356
        %v2359 = vadd.f32 %v2353, %v2357
        %v2360 = vadd.f32 %v2354, %v2358
        %s2361 = sld [smem:[#allocation12 + $0xd8]]
        %v2362 = vstv %s2361
        %v2363 = vmul.f32 %v692, %v2362
        %v2364 = vmul.f32 %v693, %v2362
        %v2365 = vadd.f32 %v2359, %v2363
        %v2366 = vadd.f32 %v2360, %v2364
        %s2367 = sld [smem:[#allocation12 + $0xdd]]
        %v2368 = vstv %s2367
        %v2369 = vmul.f32 %v724, %v2368
        %v2370 = vmul.f32 %v725, %v2368
        %v2371 = vadd.f32 %v2365, %v2369
        %v2372 = vadd.f32 %v2366, %v2370
        %s2373 = sld [smem:[#allocation12 + $0xe2]]
        %v2374 = vstv %s2373
        %v2375 = vmul.f32 %v756, %v2374
        %v2376 = vmul.f32 %v757, %v2374
        %v2377 = vadd.f32 %v2371, %v2375
        %v2378 = vadd.f32 %v2372, %v2376
        %s2379 = sld [smem:[#allocation12 + $0xe7]]
        %v2380 = vstv %s2379
        %v2381 = vmul.f32 %v788, %v2380
        %v2382 = vmul.f32 %v789, %v2380
        %v2383 = vadd.f32 %v2377, %v2381
        %v2384 = vadd.f32 %v2378, %v2382
        %s2385 = sld [smem:[#allocation12 + $0xec]]
        %v2386 = vstv %s2385
        %v2387 = vmul.f32 %v820, %v2386
        %v2388 = vmul.f32 %v821, %v2386
        %v2389 = vadd.f32 %v2383, %v2387
        %v2390 = vadd.f32 %v2384, %v2388
        %2391 = vrot.lane.b32.xlu0 %v2389, 1
        %v2392 = vpop.permute.xlu0 %2391
        %2393 = vrot.lane.b32.xlu0 %v2390, 1
        %v2394 = vpop.permute.xlu0 %2393
        %v2395 = vsel %vm438, %v2392, 0.0
        %v2396 = vsel %vm438, %v2394, 0.0
        %v2397 = vadd.f32 %v2343, %v2395
        %v2398 = vadd.f32 %v2344, %v2396
        %s2399 = sld [smem:[#allocation12 + $0xca]]
        %v2400 = vstv %s2399
        %v2401 = vmul.f32 %v596, %v2400
        %v2402 = vmul.f32 %v597, %v2400
        %s2403 = sld [smem:[#allocation12 + $0xcf]]
        %v2404 = vstv %s2403
        %v2405 = vmul.f32 %v628, %v2404
        %v2406 = vmul.f32 %v629, %v2404
        %v2407 = vadd.f32 %v2401, %v2405
        %v2408 = vadd.f32 %v2402, %v2406
        %s2409 = sld [smem:[#allocation12 + $0xd4]]
        %v2410 = vstv %s2409
        %v2411 = vmul.f32 %v660, %v2410
        %v2412 = vmul.f32 %v661, %v2410
        %v2413 = vadd.f32 %v2407, %v2411
        %v2414 = vadd.f32 %v2408, %v2412
        %s2415 = sld [smem:[#allocation12 + $0xd9]]
        %v2416 = vstv %s2415
        %v2417 = vmul.f32 %v692, %v2416
        %v2418 = vmul.f32 %v693, %v2416
        %v2419 = vadd.f32 %v2413, %v2417
        %v2420 = vadd.f32 %v2414, %v2418
        %s2421 = sld [smem:[#allocation12 + $0xde]]
        %v2422 = vstv %s2421
        %v2423 = vmul.f32 %v724, %v2422
        %v2424 = vmul.f32 %v725, %v2422
        %v2425 = vadd.f32 %v2419, %v2423
        %v2426 = vadd.f32 %v2420, %v2424
        %s2427 = sld [smem:[#allocation12 + $0xe3]]
        %v2428 = vstv %s2427
        %v2429 = vmul.f32 %v756, %v2428
        %v2430 = vmul.f32 %v757, %v2428
        %v2431 = vadd.f32 %v2425, %v2429
        %v2432 = vadd.f32 %v2426, %v2430
        %s2433 = sld [smem:[#allocation12 + $0xe8]]
        %v2434 = vstv %s2433
        %v2435 = vmul.f32 %v788, %v2434
        %v2436 = vmul.f32 %v789, %v2434
        %v2437 = vadd.f32 %v2431, %v2435
        %v2438 = vadd.f32 %v2432, %v2436
        %s2439 = sld [smem:[#allocation12 + $0xed]]
        %v2440 = vstv %s2439
        %v2441 = vmul.f32 %v820, %v2440
        %v2442 = vmul.f32 %v821, %v2440
        %v2443 = vadd.f32 %v2437, %v2441
        %v2444 = vadd.f32 %v2438, %v2442
        %v2445 = vadd.f32 %v2397, %v2443
        %v2446 = vadd.f32 %v2398, %v2444
        %s2447 = sld [smem:[#allocation12 + $0xcb]]
        %v2448 = vstv %s2447
        %v2449 = vmul.f32 %v596, %v2448
        %v2450 = vmul.f32 %v597, %v2448
        %s2451 = sld [smem:[#allocation12 + $0xd0]]
        %v2452 = vstv %s2451
        %v2453 = vmul.f32 %v628, %v2452
        %v2454 = vmul.f32 %v629, %v2452
        %v2455 = vadd.f32 %v2449, %v2453
        %v2456 = vadd.f32 %v2450, %v2454
        %s2457 = sld [smem:[#allocation12 + $0xd5]]
        %v2458 = vstv %s2457
        %v2459 = vmul.f32 %v660, %v2458
        %v2460 = vmul.f32 %v661, %v2458
        %v2461 = vadd.f32 %v2455, %v2459
        %v2462 = vadd.f32 %v2456, %v2460
        %s2463 = sld [smem:[#allocation12 + $0xda]]
        %v2464 = vstv %s2463
        %v2465 = vmul.f32 %v692, %v2464
        %v2466 = vmul.f32 %v693, %v2464
        %v2467 = vadd.f32 %v2461, %v2465
        %v2468 = vadd.f32 %v2462, %v2466
        %s2469 = sld [smem:[#allocation12 + $0xdf]]
        %v2470 = vstv %s2469
        %v2471 = vmul.f32 %v724, %v2470
        %v2472 = vmul.f32 %v725, %v2470
        %v2473 = vadd.f32 %v2467, %v2471
        %v2474 = vadd.f32 %v2468, %v2472
        %s2475 = sld [smem:[#allocation12 + $0xe4]]
        %v2476 = vstv %s2475
        %v2477 = vmul.f32 %v756, %v2476
        %v2478 = vmul.f32 %v757, %v2476
        %v2479 = vadd.f32 %v2473, %v2477
        %v2480 = vadd.f32 %v2474, %v2478
        %s2481 = sld [smem:[#allocation12 + $0xe9]]
        %v2482 = vstv %s2481
        %v2483 = vmul.f32 %v788, %v2482
        %v2484 = vmul.f32 %v789, %v2482
        %v2485 = vadd.f32 %v2479, %v2483
        %v2486 = vadd.f32 %v2480, %v2484
        %s2487 = sld [smem:[#allocation12 + $0xee]]
        %v2488 = vstv %s2487
        %v2489 = vmul.f32 %v820, %v2488
        %v2490 = vmul.f32 %v821, %v2488
        %v2491 = vadd.f32 %v2485, %v2489
        %v2492 = vadd.f32 %v2486, %v2490
        %2493 = vrot.lane.b32.xlu0 %v2491, 127
        %v2494 = vpop.permute.xlu0 %2493
        %2495 = vrot.lane.b32.xlu0 %v2492, 127
        %v2496 = vpop.permute.xlu0 %2495
        %v2497 = vsel %vm436, %v2494, 0.0
        %v2498 = vsel %vm436, %v2496, 0.0
        %v2499 = vadd.f32 %v2445, %v2497
        %v2500 = vadd.f32 %v2446, %v2498
        %s2501 = sld [smem:[#allocation12 + $0xcc]]
        %v2502 = vstv %s2501
        %v2503 = vmul.f32 %v596, %v2502
        %v2504 = vmul.f32 %v597, %v2502
        %s2505 = sld [smem:[#allocation12 + $0xd1]]
        %v2506 = vstv %s2505
        %v2507 = vmul.f32 %v628, %v2506
        %v2508 = vmul.f32 %v629, %v2506
        %v2509 = vadd.f32 %v2503, %v2507
        %v2510 = vadd.f32 %v2504, %v2508
        %s2511 = sld [smem:[#allocation12 + $0xd6]]
        %v2512 = vstv %s2511
        %v2513 = vmul.f32 %v660, %v2512
        %v2514 = vmul.f32 %v661, %v2512
        %v2515 = vadd.f32 %v2509, %v2513
        %v2516 = vadd.f32 %v2510, %v2514
        %s2517 = sld [smem:[#allocation12 + $0xdb]]
        %v2518 = vstv %s2517
        %v2519 = vmul.f32 %v692, %v2518
        %v2520 = vmul.f32 %v693, %v2518
        %v2521 = vadd.f32 %v2515, %v2519
        %v2522 = vadd.f32 %v2516, %v2520
        %s2523 = sld [smem:[#allocation12 + $0xe0]]
        %v2524 = vstv %s2523
        %v2525 = vmul.f32 %v724, %v2524
        %v2526 = vmul.f32 %v725, %v2524
        %v2527 = vadd.f32 %v2521, %v2525
        %v2528 = vadd.f32 %v2522, %v2526
        %s2529 = sld [smem:[#allocation12 + $0xe5]]
        %v2530 = vstv %s2529
        %v2531 = vmul.f32 %v756, %v2530
        %v2532 = vmul.f32 %v757, %v2530
        %v2533 = vadd.f32 %v2527, %v2531
        %v2534 = vadd.f32 %v2528, %v2532
        %s2535 = sld [smem:[#allocation12 + $0xea]]
        %v2536 = vstv %s2535
        %v2537 = vmul.f32 %v788, %v2536
        %v2538 = vmul.f32 %v789, %v2536
        %v2539 = vadd.f32 %v2533, %v2537
        %v2540 = vadd.f32 %v2534, %v2538
        %s2541 = sld [smem:[#allocation12 + $0xef]]
        %v2542 = vstv %s2541
        %v2543 = vmul.f32 %v820, %v2542
        %v2544 = vmul.f32 %v821, %v2542
        %v2545 = vadd.f32 %v2539, %v2543
        %v2546 = vadd.f32 %v2540, %v2544
        %2547 = vrot.lane.b32.xlu0 %v2545, 126
        %v2548 = vpop.permute.xlu0 %2547
        %2549 = vrot.lane.b32.xlu0 %v2546, 126
        %v2550 = vpop.permute.xlu0 %2549
        %v2551 = vsel %vm437, %v2548, 0.0
        %v2552 = vsel %vm437, %v2550, 0.0
        %v2553 = vadd.f32 %v2499, %v2551
        %v2554 = vadd.f32 %v2500, %v2552
        %v2555 = vstv %s494
        %v2556 = vadd.f32 %v2553, %v2555
        %v2557 = vadd.f32 %v2554, %v2555
        %vm2558 = vcmp.ge.f32.partialorder %v2556, 0.0
        %vm2559 = vcmp.ge.f32.partialorder %v2557, 0.0
        %v2560 = vmul.f32 %v1089, %v2556
        %v2561 = vmul.f32 %v1089, %v2557
        %v2562 = vsel %vm2558, %v2556, %v2560
        %v2563 = vsel %vm2559, %v2557, %v2561
        %v2564 = vstv %s523
        %v2565 = vmul.f32 %v2562, %v2564
        %v2566 = vmul.f32 %v2563, %v2564
        %v2567 = vadd.f32 %v2271, %v2565
        %v2568 = vadd.f32 %v2272, %v2566
        %v2569 = vstv %s524
        %v2570 = vmul.f32 %v2562, %v2569
        %v2571 = vmul.f32 %v2563, %v2569
        %v2572 = vadd.f32 %v2276, %v2570
        %v2573 = vadd.f32 %v2277, %v2571
        %v2574 = vstv %s525
        %v2575 = vmul.f32 %v2562, %v2574
        %v2576 = vmul.f32 %v2563, %v2574
        %v2577 = vadd.f32 %v2281, %v2575
        %v2578 = vadd.f32 %v2282, %v2576
        %v2579 = vstv %s526
        %v2580 = vmul.f32 %v2562, %v2579
        %v2581 = vmul.f32 %v2563, %v2579
        %v2582 = vadd.f32 %v2286, %v2580
        %v2583 = vadd.f32 %v2287, %v2581
        %v2584 = vstv %s527
        %v2585 = vmul.f32 %v2562, %v2584
        %v2586 = vmul.f32 %v2563, %v2584
        %v2587 = vadd.f32 %v2291, %v2585
        %v2588 = vadd.f32 %v2292, %v2586
        %s2589 = sld [smem:[#allocation12 + $0xf0]]
        %v2590 = vstv %s2589
        %v2591 = vmul.f32 %v596, %v2590
        %v2592 = vmul.f32 %v597, %v2590
        %s2593 = sld [smem:[#allocation12 + $0xf5]]
        %v2594 = vstv %s2593
        %v2595 = vmul.f32 %v628, %v2594
        %v2596 = vmul.f32 %v629, %v2594
        %v2597 = vadd.f32 %v2591, %v2595
        %v2598 = vadd.f32 %v2592, %v2596
        %s2599 = sld [smem:[#allocation12 + $0xfa]]
        %v2600 = vstv %s2599
        %v2601 = vmul.f32 %v660, %v2600
        %v2602 = vmul.f32 %v661, %v2600
        %v2603 = vadd.f32 %v2597, %v2601
        %v2604 = vadd.f32 %v2598, %v2602
        %s2605 = sld [smem:[#allocation12 + $0xff]]
        %v2606 = vstv %s2605
        %v2607 = vmul.f32 %v692, %v2606
        %v2608 = vmul.f32 %v693, %v2606
        %v2609 = vadd.f32 %v2603, %v2607
        %v2610 = vadd.f32 %v2604, %v2608
        %s2611 = sld [smem:[#allocation12 + $0x104]]
        %v2612 = vstv %s2611
        %v2613 = vmul.f32 %v724, %v2612
        %v2614 = vmul.f32 %v725, %v2612
        %v2615 = vadd.f32 %v2609, %v2613
        %v2616 = vadd.f32 %v2610, %v2614
        %s2617 = sld [smem:[#allocation12 + $0x109]]
        %v2618 = vstv %s2617
        %v2619 = vmul.f32 %v756, %v2618
        %v2620 = vmul.f32 %v757, %v2618
        %v2621 = vadd.f32 %v2615, %v2619
        %v2622 = vadd.f32 %v2616, %v2620
        %s2623 = sld [smem:[#allocation12 + $0x10e]]
        %v2624 = vstv %s2623
        %v2625 = vmul.f32 %v788, %v2624
        %v2626 = vmul.f32 %v789, %v2624
        %v2627 = vadd.f32 %v2621, %v2625
        %v2628 = vadd.f32 %v2622, %v2626
        %s2629 = sld [smem:[#allocation12 + $0x113]]
        %v2630 = vstv %s2629
        %v2631 = vmul.f32 %v820, %v2630
        %v2632 = vmul.f32 %v821, %v2630
        %v2633 = vadd.f32 %v2627, %v2631
        %v2634 = vadd.f32 %v2628, %v2632
        %2635 = vrot.lane.b32.xlu0 %v2633, 2
        %v2636 = vpop.permute.xlu0 %2635
        %2637 = vrot.lane.b32.xlu0 %v2634, 2
        %v2638 = vpop.permute.xlu0 %2637
        %v2639 = vsel %vm439, %v2636, 0.0
        %v2640 = vsel %vm439, %v2638, 0.0
        %s2641 = sld [smem:[#allocation12 + $0xf1]]
        %v2642 = vstv %s2641
        %v2643 = vmul.f32 %v596, %v2642
        %v2644 = vmul.f32 %v597, %v2642
        %s2645 = sld [smem:[#allocation12 + $0xf6]]
        %v2646 = vstv %s2645
        %v2647 = vmul.f32 %v628, %v2646
        %v2648 = vmul.f32 %v629, %v2646
        %v2649 = vadd.f32 %v2643, %v2647
        %v2650 = vadd.f32 %v2644, %v2648
        %s2651 = sld [smem:[#allocation12 + $0xfb]]
        %v2652 = vstv %s2651
        %v2653 = vmul.f32 %v660, %v2652
        %v2654 = vmul.f32 %v661, %v2652
        %v2655 = vadd.f32 %v2649, %v2653
        %v2656 = vadd.f32 %v2650, %v2654
        %s2657 = sld [smem:[#allocation12 + $0x100]]
        %v2658 = vstv %s2657
        %v2659 = vmul.f32 %v692, %v2658
        %v2660 = vmul.f32 %v693, %v2658
        %v2661 = vadd.f32 %v2655, %v2659
        %v2662 = vadd.f32 %v2656, %v2660
        %s2663 = sld [smem:[#allocation12 + $0x105]]
        %v2664 = vstv %s2663
        %v2665 = vmul.f32 %v724, %v2664
        %v2666 = vmul.f32 %v725, %v2664
        %v2667 = vadd.f32 %v2661, %v2665
        %v2668 = vadd.f32 %v2662, %v2666
        %s2669 = sld [smem:[#allocation12 + $0x10a]]
        %v2670 = vstv %s2669
        %v2671 = vmul.f32 %v756, %v2670
        %v2672 = vmul.f32 %v757, %v2670
        %v2673 = vadd.f32 %v2667, %v2671
        %v2674 = vadd.f32 %v2668, %v2672
        %s2675 = sld [smem:[#allocation12 + $0x10f]]
        %v2676 = vstv %s2675
        %v2677 = vmul.f32 %v788, %v2676
        %v2678 = vmul.f32 %v789, %v2676
        %v2679 = vadd.f32 %v2673, %v2677
        %v2680 = vadd.f32 %v2674, %v2678
        %s2681 = sld [smem:[#allocation12 + $0x114]]
        %v2682 = vstv %s2681
        %v2683 = vmul.f32 %v820, %v2682
        %v2684 = vmul.f32 %v821, %v2682
        %v2685 = vadd.f32 %v2679, %v2683
        %v2686 = vadd.f32 %v2680, %v2684
        %2687 = vrot.lane.b32.xlu0 %v2685, 1
        %v2688 = vpop.permute.xlu0 %2687
        %2689 = vrot.lane.b32.xlu0 %v2686, 1
        %v2690 = vpop.permute.xlu0 %2689
        %v2691 = vsel %vm438, %v2688, 0.0
        %v2692 = vsel %vm438, %v2690, 0.0
        %v2693 = vadd.f32 %v2639, %v2691
        %v2694 = vadd.f32 %v2640, %v2692
        %s2695 = sld [smem:[#allocation12 + $0xf2]]
        %v2696 = vstv %s2695
        %v2697 = vmul.f32 %v596, %v2696
        %v2698 = vmul.f32 %v597, %v2696
        %s2699 = sld [smem:[#allocation12 + $0xf7]]
        %v2700 = vstv %s2699
        %v2701 = vmul.f32 %v628, %v2700
        %v2702 = vmul.f32 %v629, %v2700
        %v2703 = vadd.f32 %v2697, %v2701
        %v2704 = vadd.f32 %v2698, %v2702
        %s2705 = sld [smem:[#allocation12 + $0xfc]]
        %v2706 = vstv %s2705
        %v2707 = vmul.f32 %v660, %v2706
        %v2708 = vmul.f32 %v661, %v2706
        %v2709 = vadd.f32 %v2703, %v2707
        %v2710 = vadd.f32 %v2704, %v2708
        %s2711 = sld [smem:[#allocation12 + $0x101]]
        %v2712 = vstv %s2711
        %v2713 = vmul.f32 %v692, %v2712
        %v2714 = vmul.f32 %v693, %v2712
        %v2715 = vadd.f32 %v2709, %v2713
        %v2716 = vadd.f32 %v2710, %v2714
        %s2717 = sld [smem:[#allocation12 + $0x106]]
        %v2718 = vstv %s2717
        %v2719 = vmul.f32 %v724, %v2718
        %v2720 = vmul.f32 %v725, %v2718
        %v2721 = vadd.f32 %v2715, %v2719
        %v2722 = vadd.f32 %v2716, %v2720
        %s2723 = sld [smem:[#allocation12 + $0x10b]]
        %v2724 = vstv %s2723
        %v2725 = vmul.f32 %v756, %v2724
        %v2726 = vmul.f32 %v757, %v2724
        %v2727 = vadd.f32 %v2721, %v2725
        %v2728 = vadd.f32 %v2722, %v2726
        %s2729 = sld [smem:[#allocation12 + $0x110]]
        %v2730 = vstv %s2729
        %v2731 = vmul.f32 %v788, %v2730
        %v2732 = vmul.f32 %v789, %v2730
        %v2733 = vadd.f32 %v2727, %v2731
        %v2734 = vadd.f32 %v2728, %v2732
        %s2735 = sld [smem:[#allocation12 + $0x115]]
        %v2736 = vstv %s2735
        %v2737 = vmul.f32 %v820, %v2736
        %v2738 = vmul.f32 %v821, %v2736
        %v2739 = vadd.f32 %v2733, %v2737
        %v2740 = vadd.f32 %v2734, %v2738
        %v2741 = vadd.f32 %v2693, %v2739
        %v2742 = vadd.f32 %v2694, %v2740
        %s2743 = sld [smem:[#allocation12 + $0xf3]]
        %v2744 = vstv %s2743
        %v2745 = vmul.f32 %v596, %v2744
        %v2746 = vmul.f32 %v597, %v2744
        %s2747 = sld [smem:[#allocation12 + $0xf8]]
        %v2748 = vstv %s2747
        %v2749 = vmul.f32 %v628, %v2748
        %v2750 = vmul.f32 %v629, %v2748
        %v2751 = vadd.f32 %v2745, %v2749
        %v2752 = vadd.f32 %v2746, %v2750
        %s2753 = sld [smem:[#allocation12 + $0xfd]]
        %v2754 = vstv %s2753
        %v2755 = vmul.f32 %v660, %v2754
        %v2756 = vmul.f32 %v661, %v2754
        %v2757 = vadd.f32 %v2751, %v2755
        %v2758 = vadd.f32 %v2752, %v2756
        %s2759 = sld [smem:[#allocation12 + $0x102]]
        %v2760 = vstv %s2759
        %v2761 = vmul.f32 %v692, %v2760
        %v2762 = vmul.f32 %v693, %v2760
        %v2763 = vadd.f32 %v2757, %v2761
        %v2764 = vadd.f32 %v2758, %v2762
        %s2765 = sld [smem:[#allocation12 + $0x107]]
        %v2766 = vstv %s2765
        %v2767 = vmul.f32 %v724, %v2766
        %v2768 = vmul.f32 %v725, %v2766
        %v2769 = vadd.f32 %v2763, %v2767
        %v2770 = vadd.f32 %v2764, %v2768
        %s2771 = sld [smem:[#allocation12 + $0x10c]]
        %v2772 = vstv %s2771
        %v2773 = vmul.f32 %v756, %v2772
        %v2774 = vmul.f32 %v757, %v2772
        %v2775 = vadd.f32 %v2769, %v2773
        %v2776 = vadd.f32 %v2770, %v2774
        %s2777 = sld [smem:[#allocation12 + $0x111]]
        %v2778 = vstv %s2777
        %v2779 = vmul.f32 %v788, %v2778
        %v2780 = vmul.f32 %v789, %v2778
        %v2781 = vadd.f32 %v2775, %v2779
        %v2782 = vadd.f32 %v2776, %v2780
        %s2783 = sld [smem:[#allocation12 + $0x116]]
        %v2784 = vstv %s2783
        %v2785 = vmul.f32 %v820, %v2784
        %v2786 = vmul.f32 %v821, %v2784
        %v2787 = vadd.f32 %v2781, %v2785
        %v2788 = vadd.f32 %v2782, %v2786
        %2789 = vrot.lane.b32.xlu0 %v2787, 127
        %v2790 = vpop.permute.xlu0 %2789
        %2791 = vrot.lane.b32.xlu0 %v2788, 127
        %v2792 = vpop.permute.xlu0 %2791
        %v2793 = vsel %vm436, %v2790, 0.0
        %v2794 = vsel %vm436, %v2792, 0.0
        %v2795 = vadd.f32 %v2741, %v2793
        %v2796 = vadd.f32 %v2742, %v2794
        %s2797 = sld [smem:[#allocation12 + $0xf4]]
        %v2798 = vstv %s2797
        %v2799 = vmul.f32 %v596, %v2798
        %v2800 = vmul.f32 %v597, %v2798
        %s2801 = sld [smem:[#allocation12 + $0xf9]]
        %v2802 = vstv %s2801
        %v2803 = vmul.f32 %v628, %v2802
        %v2804 = vmul.f32 %v629, %v2802
        %v2805 = vadd.f32 %v2799, %v2803
        %v2806 = vadd.f32 %v2800, %v2804
        %s2807 = sld [smem:[#allocation12 + $0xfe]]
        %v2808 = vstv %s2807
        %v2809 = vmul.f32 %v660, %v2808
        %v2810 = vmul.f32 %v661, %v2808
        %v2811 = vadd.f32 %v2805, %v2809
        %v2812 = vadd.f32 %v2806, %v2810
        %s2813 = sld [smem:[#allocation12 + $0x103]]
        %v2814 = vstv %s2813
        %v2815 = vmul.f32 %v692, %v2814
        %v2816 = vmul.f32 %v693, %v2814
        %v2817 = vadd.f32 %v2811, %v2815
        %v2818 = vadd.f32 %v2812, %v2816
        %s2819 = sld [smem:[#allocation12 + $0x108]]
        %v2820 = vstv %s2819
        %v2821 = vmul.f32 %v724, %v2820
        %v2822 = vmul.f32 %v725, %v2820
        %v2823 = vadd.f32 %v2817, %v2821
        %v2824 = vadd.f32 %v2818, %v2822
        %s2825 = sld [smem:[#allocation12 + $0x10d]]
        %v2826 = vstv %s2825
        %v2827 = vmul.f32 %v756, %v2826
        %v2828 = vmul.f32 %v757, %v2826
        %v2829 = vadd.f32 %v2823, %v2827
        %v2830 = vadd.f32 %v2824, %v2828
        %s2831 = sld [smem:[#allocation12 + $0x112]]
        %v2832 = vstv %s2831
        %v2833 = vmul.f32 %v788, %v2832
        %v2834 = vmul.f32 %v789, %v2832
        %v2835 = vadd.f32 %v2829, %v2833
        %v2836 = vadd.f32 %v2830, %v2834
        %s2837 = sld [smem:[#allocation12 + $0x117]]
        %v2838 = vstv %s2837
        %v2839 = vmul.f32 %v820, %v2838
        %v2840 = vmul.f32 %v821, %v2838
        %v2841 = vadd.f32 %v2835, %v2839
        %v2842 = vadd.f32 %v2836, %v2840
        %2843 = vrot.lane.b32.xlu0 %v2841, 126
        %v2844 = vpop.permute.xlu0 %2843
        %2845 = vrot.lane.b32.xlu0 %v2842, 126
        %v2846 = vpop.permute.xlu0 %2845
        %v2847 = vsel %vm437, %v2844, 0.0
        %v2848 = vsel %vm437, %v2846, 0.0
        %v2849 = vadd.f32 %v2795, %v2847
        %v2850 = vadd.f32 %v2796, %v2848
        %v2851 = vstv %s495
        %v2852 = vadd.f32 %v2849, %v2851
        %v2853 = vadd.f32 %v2850, %v2851
        %vm2854 = vcmp.ge.f32.partialorder %v2852, 0.0
        %vm2855 = vcmp.ge.f32.partialorder %v2853, 0.0
        %v2856 = vmul.f32 %v1089, %v2852
        %v2857 = vmul.f32 %v1089, %v2853
        %v2858 = vsel %vm2854, %v2852, %v2856
        %v2859 = vsel %vm2855, %v2853, %v2857
        %v2860 = vstv %s528
        %v2861 = vmul.f32 %v2858, %v2860
        %v2862 = vmul.f32 %v2859, %v2860
        %v2863 = vadd.f32 %v2567, %v2861
        %v2864 = vadd.f32 %v2568, %v2862
        %v2865 = vstv %s529
        %v2866 = vmul.f32 %v2858, %v2865
        %v2867 = vmul.f32 %v2859, %v2865
        %v2868 = vadd.f32 %v2572, %v2866
        %v2869 = vadd.f32 %v2573, %v2867
        %v2870 = vstv %s530
        %v2871 = vmul.f32 %v2858, %v2870
        %v2872 = vmul.f32 %v2859, %v2870
        %v2873 = vadd.f32 %v2577, %v2871
        %v2874 = vadd.f32 %v2578, %v2872
        %v2875 = vstv %s531
        %v2876 = vmul.f32 %v2858, %v2875
        %v2877 = vmul.f32 %v2859, %v2875
        %v2878 = vadd.f32 %v2582, %v2876
        %v2879 = vadd.f32 %v2583, %v2877
        %v2880 = vstv %s532
        %v2881 = vmul.f32 %v2858, %v2880
        %v2882 = vmul.f32 %v2859, %v2880
        %v2883 = vadd.f32 %v2587, %v2881
        %v2884 = vadd.f32 %v2588, %v2882
        %s2885 = sld [smem:[#allocation12 + $0x118]]
        %v2886 = vstv %s2885
        %v2887 = vmul.f32 %v596, %v2886
        %v2888 = vmul.f32 %v597, %v2886
        %s2889 = sld [smem:[#allocation12 + $0x11d]]
        %v2890 = vstv %s2889
        %v2891 = vmul.f32 %v628, %v2890
        %v2892 = vmul.f32 %v629, %v2890
        %v2893 = vadd.f32 %v2887, %v2891
        %v2894 = vadd.f32 %v2888, %v2892
        %s2895 = sld [smem:[#allocation12 + $0x122]]
        %v2896 = vstv %s2895
        %v2897 = vmul.f32 %v660, %v2896
        %v2898 = vmul.f32 %v661, %v2896
        %v2899 = vadd.f32 %v2893, %v2897
        %v2900 = vadd.f32 %v2894, %v2898
        %s2901 = sld [smem:[#allocation12 + $0x127]]
        %v2902 = vstv %s2901
        %v2903 = vmul.f32 %v692, %v2902
        %v2904 = vmul.f32 %v693, %v2902
        %v2905 = vadd.f32 %v2899, %v2903
        %v2906 = vadd.f32 %v2900, %v2904
        %s2907 = sld [smem:[#allocation12 + $0x12c]]
        %v2908 = vstv %s2907
        %v2909 = vmul.f32 %v724, %v2908
        %v2910 = vmul.f32 %v725, %v2908
        %v2911 = vadd.f32 %v2905, %v2909
        %v2912 = vadd.f32 %v2906, %v2910
        %s2913 = sld [smem:[#allocation12 + $0x131]]
        %v2914 = vstv %s2913
        %v2915 = vmul.f32 %v756, %v2914
        %v2916 = vmul.f32 %v757, %v2914
        %v2917 = vadd.f32 %v2911, %v2915
        %v2918 = vadd.f32 %v2912, %v2916
        %s2919 = sld [smem:[#allocation12 + $0x136]]
        %v2920 = vstv %s2919
        %v2921 = vmul.f32 %v788, %v2920
        %v2922 = vmul.f32 %v789, %v2920
        %v2923 = vadd.f32 %v2917, %v2921
        %v2924 = vadd.f32 %v2918, %v2922
        %s2925 = sld [smem:[#allocation12 + $0x13b]]
        %v2926 = vstv %s2925
        %v2927 = vmul.f32 %v820, %v2926
        %v2928 = vmul.f32 %v821, %v2926
        %v2929 = vadd.f32 %v2923, %v2927
        %v2930 = vadd.f32 %v2924, %v2928
        %2931 = vrot.lane.b32.xlu0 %v2929, 2
        %v2932 = vpop.permute.xlu0 %2931
        %2933 = vrot.lane.b32.xlu0 %v2930, 2
        %v2934 = vpop.permute.xlu0 %2933
        %v2935 = vsel %vm439, %v2932, 0.0
        %v2936 = vsel %vm439, %v2934, 0.0
        %s2937 = sld [smem:[#allocation12 + $0x119]]
        %v2938 = vstv %s2937
        %v2939 = vmul.f32 %v596, %v2938
        %v2940 = vmul.f32 %v597, %v2938
        %s2941 = sld [smem:[#allocation12 + $0x11e]]
        %v2942 = vstv %s2941
        %v2943 = vmul.f32 %v628, %v2942
        %v2944 = vmul.f32 %v629, %v2942
        %v2945 = vadd.f32 %v2939, %v2943
        %v2946 = vadd.f32 %v2940, %v2944
        %s2947 = sld [smem:[#allocation12 + $0x123]]
        %v2948 = vstv %s2947
        %v2949 = vmul.f32 %v660, %v2948
        %v2950 = vmul.f32 %v661, %v2948
        %v2951 = vadd.f32 %v2945, %v2949
        %v2952 = vadd.f32 %v2946, %v2950
        %s2953 = sld [smem:[#allocation12 + $0x128]]
        %v2954 = vstv %s2953
        %v2955 = vmul.f32 %v692, %v2954
        %v2956 = vmul.f32 %v693, %v2954
        %v2957 = vadd.f32 %v2951, %v2955
        %v2958 = vadd.f32 %v2952, %v2956
        %s2959 = sld [smem:[#allocation12 + $0x12d]]
        %v2960 = vstv %s2959
        %v2961 = vmul.f32 %v724, %v2960
        %v2962 = vmul.f32 %v725, %v2960
        %v2963 = vadd.f32 %v2957, %v2961
        %v2964 = vadd.f32 %v2958, %v2962
        %s2965 = sld [smem:[#allocation12 + $0x132]]
        %v2966 = vstv %s2965
        %v2967 = vmul.f32 %v756, %v2966
        %v2968 = vmul.f32 %v757, %v2966
        %v2969 = vadd.f32 %v2963, %v2967
        %v2970 = vadd.f32 %v2964, %v2968
        %s2971 = sld [smem:[#allocation12 + $0x137]]
        %v2972 = vstv %s2971
        %v2973 = vmul.f32 %v788, %v2972
        %v2974 = vmul.f32 %v789, %v2972
        %v2975 = vadd.f32 %v2969, %v2973
        %v2976 = vadd.f32 %v2970, %v2974
        %s2977 = sld [smem:[#allocation12 + $0x13c]]
        %v2978 = vstv %s2977
        %v2979 = vmul.f32 %v820, %v2978
        %v2980 = vmul.f32 %v821, %v2978
        %v2981 = vadd.f32 %v2975, %v2979
        %v2982 = vadd.f32 %v2976, %v2980
        %2983 = vrot.lane.b32.xlu0 %v2981, 1
        %v2984 = vpop.permute.xlu0 %2983
        %2985 = vrot.lane.b32.xlu0 %v2982, 1
        %v2986 = vpop.permute.xlu0 %2985
        %v2987 = vsel %vm438, %v2984, 0.0
        %v2988 = vsel %vm438, %v2986, 0.0
        %v2989 = vadd.f32 %v2935, %v2987
        %v2990 = vadd.f32 %v2936, %v2988
        %s2991 = sld [smem:[#allocation12 + $0x11a]]
        %v2992 = vstv %s2991
        %v2993 = vmul.f32 %v596, %v2992
        %v2994 = vmul.f32 %v597, %v2992
        %s2995 = sld [smem:[#allocation12 + $0x11f]]
        %v2996 = vstv %s2995
        %v2997 = vmul.f32 %v628, %v2996
        %v2998 = vmul.f32 %v629, %v2996
        %v2999 = vadd.f32 %v2993, %v2997
        %v3000 = vadd.f32 %v2994, %v2998
        %s3001 = sld [smem:[#allocation12 + $0x124]]
        %v3002 = vstv %s3001
        %v3003 = vmul.f32 %v660, %v3002
        %v3004 = vmul.f32 %v661, %v3002
        %v3005 = vadd.f32 %v2999, %v3003
        %v3006 = vadd.f32 %v3000, %v3004
        %s3007 = sld [smem:[#allocation12 + $0x129]]
        %v3008 = vstv %s3007
        %v3009 = vmul.f32 %v692, %v3008
        %v3010 = vmul.f32 %v693, %v3008
        %v3011 = vadd.f32 %v3005, %v3009
        %v3012 = vadd.f32 %v3006, %v3010
        %s3013 = sld [smem:[#allocation12 + $0x12e]]
        %v3014 = vstv %s3013
        %v3015 = vmul.f32 %v724, %v3014
        %v3016 = vmul.f32 %v725, %v3014
        %v3017 = vadd.f32 %v3011, %v3015
        %v3018 = vadd.f32 %v3012, %v3016
        %s3019 = sld [smem:[#allocation12 + $0x133]]
        %v3020 = vstv %s3019
        %v3021 = vmul.f32 %v756, %v3020
        %v3022 = vmul.f32 %v757, %v3020
        %v3023 = vadd.f32 %v3017, %v3021
        %v3024 = vadd.f32 %v3018, %v3022
        %s3025 = sld [smem:[#allocation12 + $0x138]]
        %v3026 = vstv %s3025
        %v3027 = vmul.f32 %v788, %v3026
        %v3028 = vmul.f32 %v789, %v3026
        %v3029 = vadd.f32 %v3023, %v3027
        %v3030 = vadd.f32 %v3024, %v3028
        %s3031 = sld [smem:[#allocation12 + $0x13d]]
        %v3032 = vstv %s3031
        %v3033 = vmul.f32 %v820, %v3032
        %v3034 = vmul.f32 %v821, %v3032
        %v3035 = vadd.f32 %v3029, %v3033
        %v3036 = vadd.f32 %v3030, %v3034
        %v3037 = vadd.f32 %v2989, %v3035
        %v3038 = vadd.f32 %v2990, %v3036
        %s3039 = sld [smem:[#allocation12 + $0x11b]]
        %v3040 = vstv %s3039
        %v3041 = vmul.f32 %v596, %v3040
        %v3042 = vmul.f32 %v597, %v3040
        %s3043 = sld [smem:[#allocation12 + $0x120]]
        %v3044 = vstv %s3043
        %v3045 = vmul.f32 %v628, %v3044
        %v3046 = vmul.f32 %v629, %v3044
        %v3047 = vadd.f32 %v3041, %v3045
        %v3048 = vadd.f32 %v3042, %v3046
        %s3049 = sld [smem:[#allocation12 + $0x125]]
        %v3050 = vstv %s3049
        %v3051 = vmul.f32 %v660, %v3050
        %v3052 = vmul.f32 %v661, %v3050
        %v3053 = vadd.f32 %v3047, %v3051
        %v3054 = vadd.f32 %v3048, %v3052
        %s3055 = sld [smem:[#allocation12 + $0x12a]]
        %v3056 = vstv %s3055
        %v3057 = vmul.f32 %v692, %v3056
        %v3058 = vmul.f32 %v693, %v3056
        %v3059 = vadd.f32 %v3053, %v3057
        %v3060 = vadd.f32 %v3054, %v3058
        %s3061 = sld [smem:[#allocation12 + $0x12f]]
        %v3062 = vstv %s3061
        %v3063 = vmul.f32 %v724, %v3062
        %v3064 = vmul.f32 %v725, %v3062
        %v3065 = vadd.f32 %v3059, %v3063
        %v3066 = vadd.f32 %v3060, %v3064
        %s3067 = sld [smem:[#allocation12 + $0x134]]
        %v3068 = vstv %s3067
        %v3069 = vmul.f32 %v756, %v3068
        %v3070 = vmul.f32 %v757, %v3068
        %v3071 = vadd.f32 %v3065, %v3069
        %v3072 = vadd.f32 %v3066, %v3070
        %s3073 = sld [smem:[#allocation12 + $0x139]]
        %v3074 = vstv %s3073
        %v3075 = vmul.f32 %v788, %v3074
        %v3076 = vmul.f32 %v789, %v3074
        %v3077 = vadd.f32 %v3071, %v3075
        %v3078 = vadd.f32 %v3072, %v3076
        %s3079 = sld [smem:[#allocation12 + $0x13e]]
        %v3080 = vstv %s3079
        %v3081 = vmul.f32 %v820, %v3080
        %v3082 = vmul.f32 %v821, %v3080
        %v3083 = vadd.f32 %v3077, %v3081
        %v3084 = vadd.f32 %v3078, %v3082
        %3085 = vrot.lane.b32.xlu0 %v3083, 127
        %v3086 = vpop.permute.xlu0 %3085
        %3087 = vrot.lane.b32.xlu0 %v3084, 127
        %v3088 = vpop.permute.xlu0 %3087
        %v3089 = vsel %vm436, %v3086, 0.0
        %v3090 = vsel %vm436, %v3088, 0.0
        %v3091 = vadd.f32 %v3037, %v3089
        %v3092 = vadd.f32 %v3038, %v3090
        %s3093 = sld [smem:[#allocation12 + $0x11c]]
        %v3094 = vstv %s3093
        %v3095 = vmul.f32 %v596, %v3094
        %v3096 = vmul.f32 %v597, %v3094
        %s3097 = sld [smem:[#allocation12 + $0x121]]
        %v3098 = vstv %s3097
        %v3099 = vmul.f32 %v628, %v3098
        %v3100 = vmul.f32 %v629, %v3098
        %v3101 = vadd.f32 %v3095, %v3099
        %v3102 = vadd.f32 %v3096, %v3100
        %s3103 = sld [smem:[#allocation12 + $0x126]]
        %v3104 = vstv %s3103
        %v3105 = vmul.f32 %v660, %v3104
        %v3106 = vmul.f32 %v661, %v3104
        %v3107 = vadd.f32 %v3101, %v3105
        %v3108 = vadd.f32 %v3102, %v3106
        %s3109 = sld [smem:[#allocation12 + $0x12b]]
        %v3110 = vstv %s3109
        %v3111 = vmul.f32 %v692, %v3110
        %v3112 = vmul.f32 %v693, %v3110
        %v3113 = vadd.f32 %v3107, %v3111
        %v3114 = vadd.f32 %v3108, %v3112
        %s3115 = sld [smem:[#allocation12 + $0x130]]
        %v3116 = vstv %s3115
        %v3117 = vmul.f32 %v724, %v3116
        %v3118 = vmul.f32 %v725, %v3116
        %v3119 = vadd.f32 %v3113, %v3117
        %v3120 = vadd.f32 %v3114, %v3118
        %s3121 = sld [smem:[#allocation12 + $0x135]]
        %v3122 = vstv %s3121
        %v3123 = vmul.f32 %v756, %v3122
        %v3124 = vmul.f32 %v757, %v3122
        %v3125 = vadd.f32 %v3119, %v3123
        %v3126 = vadd.f32 %v3120, %v3124
        %s3127 = sld [smem:[#allocation12 + $0x13a]]
        %v3128 = vstv %s3127
        %v3129 = vmul.f32 %v788, %v3128
        %v3130 = vmul.f32 %v789, %v3128
        %v3131 = vadd.f32 %v3125, %v3129
        %v3132 = vadd.f32 %v3126, %v3130
        %s3133 = sld [smem:[#allocation12 + $0x13f]]
        %v3134 = vstv %s3133
        %v3135 = vmul.f32 %v820, %v3134
        %v3136 = vmul.f32 %v821, %v3134
        %v3137 = vadd.f32 %v3131, %v3135
        %v3138 = vadd.f32 %v3132, %v3136
        %3139 = vrot.lane.b32.xlu0 %v3137, 126
        %v3140 = vpop.permute.xlu0 %3139
        %3141 = vrot.lane.b32.xlu0 %v3138, 126
        %v3142 = vpop.permute.xlu0 %3141
        %v3143 = vsel %vm437, %v3140, 0.0
        %v3144 = vsel %vm437, %v3142, 0.0
        %v3145 = vadd.f32 %v3091, %v3143
        %v3146 = vadd.f32 %v3092, %v3144
        %v3147 = vstv %s496
        %v3148 = vadd.f32 %v3145, %v3147
        %v3149 = vadd.f32 %v3146, %v3147
        %vm3150 = vcmp.ge.f32.partialorder %v3148, 0.0
        %vm3151 = vcmp.ge.f32.partialorder %v3149, 0.0
        %v3152 = vmul.f32 %v1089, %v3148
        %v3153 = vmul.f32 %v1089, %v3149
        %v3154 = vsel %vm3150, %v3148, %v3152
        %v3155 = vsel %vm3151, %v3149, %v3153
        %v3156 = vstv %s533
        %v3157 = vmul.f32 %v3154, %v3156
        %v3158 = vmul.f32 %v3155, %v3156
        %v3159 = vadd.f32 %v2863, %v3157
        %v3160 = vadd.f32 %v2864, %v3158
        %v3161 = vstv %s534
        %v3162 = vmul.f32 %v3154, %v3161
        %v3163 = vmul.f32 %v3155, %v3161
        %v3164 = vadd.f32 %v2868, %v3162
        %v3165 = vadd.f32 %v2869, %v3163
        %v3166 = vstv %s535
        %v3167 = vmul.f32 %v3154, %v3166
        %v3168 = vmul.f32 %v3155, %v3166
        %v3169 = vadd.f32 %v2873, %v3167
        %v3170 = vadd.f32 %v2874, %v3168
        %v3171 = vstv %s536
        %v3172 = vmul.f32 %v3154, %v3171
        %v3173 = vmul.f32 %v3155, %v3171
        %v3174 = vadd.f32 %v2878, %v3172
        %v3175 = vadd.f32 %v2879, %v3173
        %v3176 = vstv %s537
        %v3177 = vmul.f32 %v3154, %v3176
        %v3178 = vmul.f32 %v3155, %v3176
        %v3179 = vadd.f32 %v2883, %v3177
        %v3180 = vadd.f32 %v2884, %v3178
        %3181 = vrot.lane.b32.xlu0 %v3159, 2
        %v3182 = vpop.permute.xlu0 %3181
        %3183 = vrot.lane.b32.xlu0 %v3160, 2
        %v3184 = vpop.permute.xlu0 %3183
        %v3185 = vsel %vm439, %v3182, 0.0
        %v3186 = vsel %vm439, %v3184, 0.0
        %3187 = vrot.lane.b32.xlu0 %v3164, 1
        %v3188 = vpop.permute.xlu0 %3187
        %3189 = vrot.lane.b32.xlu0 %v3165, 1
        %v3190 = vpop.permute.xlu0 %3189
        %v3191 = vsel %vm438, %v3188, 0.0
        %v3192 = vsel %vm438, %v3190, 0.0
        %v3193 = vadd.f32 %v3185, %v3191
        %v3194 = vadd.f32 %v3186, %v3192
        %v3195 = vadd.f32 %v3193, %v3169
        %v3196 = vadd.f32 %v3194, %v3170
        %3197 = vrot.lane.b32.xlu0 %v3174, 127
        %v3198 = vpop.permute.xlu0 %3197
        %3199 = vrot.lane.b32.xlu0 %v3175, 127
        %v3200 = vpop.permute.xlu0 %3199
        %v3201 = vsel %vm436, %v3198, 0.0
        %v3202 = vsel %vm436, %v3200, 0.0
        %v3203 = vadd.f32 %v3195, %v3201
        %v3204 = vadd.f32 %v3196, %v3202
        %3205 = vrot.lane.b32.xlu0 %v3179, 126
        %v3206 = vpop.permute.xlu0 %3205
        %3207 = vrot.lane.b32.xlu0 %v3180, 126
        %v3208 = vpop.permute.xlu0 %3207
        %v3209 = vsel %vm437, %v3206, 0.0
        %v3210 = vsel %vm437, %v3208, 0.0
        %v3211 = vadd.f32 %v3203, %v3209
        %v3212 = vadd.f32 %v3204, %v3210
        %v3213 = vstv %s538
        %v3214 = vadd.f32 %v3211, %v3213
        %v3215 = vadd.f32 %v3212, %v3213
        %3216 = vst [vmem:[%s423] sm:$0xff] %v3214
        %3217 = vst [vmem:[%s423 + $0x8] sm:$0xff] %v3215
        %s3218 = sand.u32 %s234, 1
        %s3219 = scalar_lea.sflag [#allocation7], %s3218
        %s3220 = sand.u32 %s234, 1
        %s3221 = smul.addr %s3220, 16
        %s3222 = scalar_lea.vmem [#allocation16], %s3221
        // Predicated region
        $region81: #{tpu_custom_call.1} parent=55 // pred_check
          %p3223 = pneg %p244
        $region82: #{tpu_custom_call.1} parent=55 // pred_check_branch
          %3225 = sbr.rel (%p3223) target = $region84
        $region83: #{tpu_custom_call.1} parent=55 // pred_region
          %s3226 = smul.u32 2, %s32
          %s3227 = ssub.s32 3, %s3226
          %p3228 = scmp.lt.s32.totalorder %s3227, 2
          %s3229 = scalar_select %p3228, %s3227, 2
          %s3230 = smul.u32 128, %s3229
          %s3232 = ssub.s32 256, %s3230
          %3233 = vsyncadd %s3219, %s3232
          %p3234 = scmp.ne.s32.totalorder 0, %s3230
          %s3235 = smul.addr %s3226, 128
          %s3236 = scalar_lea.hbm %s9, %s3235
          %s3237 = smul.u32 8, %s3229
          %s3238 = sshll.u32 %s3222, 4
          %s3239 = int_to_ptr.vmem [resolvable:$true] %s3238
          %s3240 = sshll.u32 %s3237, 4
          %3244 = dma.vmem_to_hbm [thread:$0]  (%p3234), %s3239, %s3240, %s3236, %s3219, 128, 128, 8
        $region84: #{tpu_custom_call.1} parent=55 // pred_fallthru
          _
      $region56: #{tpu_custom_call.1} parent=5 // pred_fallthru
        _
      %p3245 = scmp.le.s32.totalorder 2, %s27
      // Predicated region
      $region85: #{tpu_custom_call.1} parent=5 // pred_check
        %p3246 = pneg %p3245
      $region86: #{tpu_custom_call.1} parent=5 // pred_check_branch
        %3248 = sbr.rel (%p3246) target = $region88
      $region87: #{tpu_custom_call.1} parent=5 // pred_region
        %s3249 = ssub.s32 %s27, 2
        // Predicated region
        $region89: #{tpu_custom_call.1} parent=87 // pred_check
          %p3250 = pneg %p250
        $region90: #{tpu_custom_call.1} parent=87 // pred_check_branch
          %3252 = sbr.rel (%p3250) target = $region92
        $region91: #{tpu_custom_call.1} parent=87 // pred_region
          %s3253 = sand.u32 %s235, 1
          %s3254 = scalar_lea.sflag [#allocation7], %s3253
          %s3255 = sand.u32 %s235, 1
          %s3256 = smul.addr %s3255, 16
          %s3257 = scalar_lea.vmem [#allocation16], %s3256
          %3258 = dma.done %s3254, 256
        $region92: #{tpu_custom_call.1} parent=87 // pred_fallthru
          _
      $region88: #{tpu_custom_call.1} parent=5 // pred_fallthru
        _
    $region6: #{tpu_custom_call.1} parent=1 // loop_footer
      %s31 = sadd.s32 1, %s27
    $region7: #{tpu_custom_call.1} parent=1 // loop_footer_branch
      %26 = sbr.rel target = $region3
    $region8: #{tpu_custom_call.1} parent=1 // loop_exit
      _
    %3259 = vsyncpa [#allocation6], 1
    %s3260 = scalar_lea.sflag [#allocation6], 1
    %3261 = vsyncpa %s3260, 1
    %3262 = vsyncpa [#allocation7], 1
    %s3263 = scalar_lea.sflag [#allocation7], 1
    %3264 = vsyncpa %s3263, 1
    %3265 = vsyncpa [#allocation8], 1
    %s3266 = scalar_lea.sflag [#allocation8], 1
    %3267 = vsyncpa %s3266, 1
    %3268 = vsyncpa [#allocation11], 1
    %3269 = vsyncpa [#allocation14], 1

</llo_original>
